<compile_context>
chip_gen: v6e
topology: v6e:2x2x1
jax: 0.10.0
libtpu: 0.0.40
codegen_flags: <defaults>
</compile_context>

<pallas_src>
import numpy as np
import jax
import jax.numpy as jnp
from jax import lax
from jax.experimental import pallas as pl
from jax.experimental.pallas import tpu as pltpu


# ---------------------------------------------------------------------------
# Fused Pallas kernel: the whole forward pass in one invocation.
# ---------------------------------------------------------------------------
def _lenet_fused_kernel(x_ref,
                        b1m_ref, b1b_ref, s1h_ref, s1wa_ref, s1wb_ref,
                        b2m_ref, b2b_ref, s2h_ref, s2wa_ref, s2wb_ref,
                        wf1_ref, bf1_ref, wf2_ref, bf2_ref, wf3_ref, bf3_ref,
                        o_ref):
    f32 = jnp.float32
    dot = lambda a, b: jnp.dot(a, b, preferred_element_type=f32)

    n_batch = x_ref.shape[0]

    # Weights become VMEM-resident values once, reused for every sample.
    b1m = [b1m_ref[k] for k in range(b1m_ref.shape[0])]     # 5 x [28, 144]
    b2m = [b2m_ref[k] for k in range(b2m_ref.shape[0])]     # 5 x [72,  96]
    b1b, b2b = b1b_ref[...], b2b_ref[...]
    s1h, s1wa, s1wb = s1h_ref[...], s1wa_ref[...], s1wb_ref[...]
    s2h, s2wa, s2wb = s2h_ref[...], s2wa_ref[...], s2wb_ref[...]

    flats = []
    for n in range(n_batch):
        xn = x_ref[n]                                        # [28, 28]

        # ---- conv1 (1->6, 5x5, valid): 5 accumulated banded matmuls ----
        # output layout [24, 24*6]; lane index = w_out*6 + c_out
        c1 = dot(xn[0:24, :], b1m[0])
        for ki in range(1, 5):
            c1 = c1 + dot(xn[ki:ki + 24, :], b1m[ki])
        c1 = c1 + b1b                                        # [24, 144]

        # ---- maxpool 2x2 -> [12, 12*6] ---------------------------------
        rm = jnp.maximum(c1[0:23, :], c1[1:24, :])           # adjacent-row max
        ph = dot(s1h, rm)                                    # keep even rows  [12, 144]
        p1 = jnp.maximum(dot(ph, s1wa), dot(ph, s1wb))       # even/odd w-groups [12, 72]

        # ---- conv2 (6->12, 5x5, valid) -> [8, 8*12] --------------------
        c2 = dot(p1[0:8, :], b2m[0])
        for ki in range(1, 5):
            c2 = c2 + dot(p1[ki:ki + 8, :], b2m[ki])
        c2 = c2 + b2b                                        # [8, 96]

        # ---- maxpool 2x2 -> [4, 4*12] ----------------------------------
        rm2 = jnp.maximum(c2[0:7, :], c2[1:8, :])
        ph2 = dot(s2h, rm2)                                  # [4, 96]
        p2 = jnp.maximum(dot(ph2, s2wa), dot(ph2, s2wb))     # [4, 48]

        # ---- flatten in (h, w, c) order; fc1 rows are reordered to match
        flats.append(jnp.concatenate(
            [p2[0:1, :], p2[1:2, :], p2[2:3, :], p2[3:4, :]], axis=1))  # [1, 192]

    flat = jnp.concatenate(flats, axis=0) if n_batch > 1 else flats[0]  # [N, 192]

    # ---- classifier MLP on the whole batch at once ----------------------
    h = jnp.maximum(dot(flat, wf1_ref[...]) + bf1_ref[...], 0.0)
    h = jnp.maximum(dot(h, wf2_ref[...]) + bf2_ref[...], 0.0)
    # TODO(synk): nn.Dropout is eval-mode identity (no RNG mask); add
    # pltpu.prng_seed + prng_random_bits if train-mode semantics are needed.
    out = dot(h, wf3_ref[...]) + bf3_ref[...]
    o_ref[...] = out.astype(o_ref.dtype)


def model_d_forward(x, prepped):
    """x: [N, 1, 28, 28] -> logits [N, 10]; one fused pallas_call."""
    (b1m, b1b, s1h, s1wa, s1wb, b2m, b2b, s2h, s2wa, s2wb,
     wf1r, bf1, wf2, bf2, wf3, bf3) = prepped
    n = x.shape[0]
    x3 = x.reshape(n, 28, 28)
    return pl.pallas_call(
        _lenet_fused_kernel,
        out_shape=jax.ShapeDtypeStruct((n, 10), jnp.float32),
    )(x3, b1m, b1b, s1h, s1wa, s1wb, b2m, b2b, s2h, s2wa, s2wb,
      wf1r, bf1, wf2, bf2, wf3, bf3)


# ---------------------------------------------------------------------------
# One-time host-side parameter repack (numpy; not part of the jitted forward)
# ---------------------------------------------------------------------------
def _conv_band_matrices(w, w_in):
    """w: [Cout, Cin, kh, kw] (OIHW). Returns [kh, w_in*Cin, w_out*Cout] with
    B[ki, wi*Cin+ci, wo*Cout+co] = w[co, ci, ki, wi-wo] for 0 <= wi-wo < kw."""
    w = np.asarray(w)
    cout, cin, kh, kw = w.shape
    w_out = w_in - kw + 1
    b = np.zeros((kh, w_in * cin, w_out * cout), np.float32)
    for ki in range(kh):
        for wo in range(w_out):
            for kj in range(kw):
                wi = wo + kj
                b[ki, wi * cin:(wi + 1) * cin,
                  wo * cout:(wo + 1) * cout] = w[:, :, ki, kj].T
    return jnp.asarray(b)


def _pool_row_select(h):
    """[h//2, h-1] selecting even rows of the adjacent-row-max matrix."""
    s = np.zeros((h // 2, h - 1), np.float32)
    s[np.arange(h // 2), 2 * np.arange(h // 2)] = 1.0
    return jnp.asarray(s)


def _pool_col_select(w, c):
    """Two [w*c, (w//2)*c] selectors picking even / odd width groups."""
    sa = np.zeros((w * c, (w // 2) * c), np.float32)
    sb = np.zeros_like(sa)
    for j in range(w // 2):
        for ch in range(c):
            sa[(2 * j) * c + ch, j * c + ch] = 1.0
            sb[(2 * j + 1) * c + ch, j * c + ch] = 1.0
    return jnp.asarray(sa), jnp.asarray(sb)


def prepare_params(params):
    w1, b1, w2, b2, wf1, bf1, wf2, bf2, wf3, bf3 = params
    b1m = _conv_band_matrices(w1, 28)                           # [5, 28, 144]
    b1b = jnp.asarray(np.tile(np.asarray(b1), 24).reshape(1, 144))
    s1h = _pool_row_select(24)                                  # [12, 23]
    s1wa, s1wb = _pool_col_select(24, 6)                        # [144, 72] x2
    b2m = _conv_band_matrices(w2, 12)                           # [5, 72, 96]
    b2b = jnp.asarray(np.tile(np.asarray(b2), 8).reshape(1, 96))
    s2h = _pool_row_select(8)                                   # [4, 7]
    s2wa, s2wb = _pool_col_select(8, 12)                        # [96, 48] x2
    # Reorder fc1 rows: PyTorch NCHW flatten (c*16 + h*4 + w)  ->  (h*48 + w*12 + c)
    wf1r = jnp.asarray(np.asarray(wf1).reshape(12, 4, 4, 50)
                       .transpose(1, 2, 0, 3).reshape(192, 50))
    return (b1m, b1b, s1h, s1wa, s1wb, b2m, b2b, s2h, s2wa, s2wb,
            wf1r, bf1.reshape(1, -1), wf2, bf2.reshape(1, -1),
            wf3, bf3.reshape(1, -1))


# ---------------------------------------------------------------------------
# Deterministic synthetic parameters (PyTorch-like uniform(-1/sqrt(fan_in), .))
# ---------------------------------------------------------------------------
def init_params(key):
    ks = jax.random.split(key, 10)

    def u(k, shape, fan_in):
        bound = 1.0 / float(fan_in) ** 0.5
        return jax.random.uniform(k, shape, jnp.float32, -bound, bound)

    w1 = u(ks[0], (6, 1, 5, 5), 25);    b1 = u(ks[1], (6,), 25)
    w2 = u(ks[2], (12, 6, 5, 5), 150);  b2 = u(ks[3], (12,), 150)
    wf1 = u(ks[4], (192, 50), 192);     bf1 = u(ks[5], (50,), 192)
    wf2 = u(ks[6], (50, 100), 50);      bf2 = u(ks[7], (100,), 50)
    wf3 = u(ks[8], (100, 10), 100);     bf3 = u(ks[9], (10,), 100)
    return (w1, b1, w2, b2, wf1, bf1, wf2, bf2, wf3, bf3)


# ---------------------------------------------------------------------------
# Pure-JAX reference (correctness check)
# ---------------------------------------------------------------------------
def reference_forward(x, params):
    w1, b1, w2, b2, wf1, bf1, wf2, bf2, wf3, bf3 = params

    def conv(t, w, b):
        y = lax.conv_general_dilated(t, w, (1, 1), "VALID",
                                     dimension_numbers=("NCHW", "OIHW", "NCHW"))
        return y + b[None, :, None, None]

    def pool(t):
        n, c, hh, ww = t.shape
        return t.reshape(n, c, hh // 2, 2, ww // 2, 2).max(axis=(3, 5))

    t = pool(conv(x, w1, b1))
    t = pool(conv(t, w2, b2))
    t = t.reshape(t.shape[0], -1)
    t = jnp.maximum(t @ wf1 + bf1, 0.0)
    t = jnp.maximum(t @ wf2 + bf2, 0.0)
    return t @ wf3 + bf3


if __name__ == "__main__":
    key = jax.random.PRNGKey(0)
    k_x, k_p = jax.random.split(key)
    x = jax.random.normal(k_x, (2, 1, 28, 28), jnp.float32)   # NCHW, MNIST-like
    params = init_params(k_p)
    prepped = prepare_params(params)

    out = jax.jit(model_d_forward)(x, prepped)
    out = jax.block_until_ready(out)

    ref = reference_forward(x, params)
    assert out.shape == (2, 10), out.shape
    assert jnp.allclose(out, ref, rtol=1e-4, atol=1e-4), (out, ref)
    print("KERNEL_OK")
</pallas_src>

<mosaic_0001>
module attributes {stable_mosaic.version = 11 : i64} {
  func.func @_lenet_fused_kernel(%arg0: memref<2x28x28xf32, #tpu.memory_space<vmem>>, %arg1: memref<5x28x144xf32, #tpu.memory_space<vmem>>, %arg2: memref<1x144xf32, #tpu.memory_space<vmem>>, %arg3: memref<12x23xf32, #tpu.memory_space<vmem>>, %arg4: memref<144x72xf32, #tpu.memory_space<vmem>>, %arg5: memref<144x72xf32, #tpu.memory_space<vmem>>, %arg6: memref<5x72x96xf32, #tpu.memory_space<vmem>>, %arg7: memref<1x96xf32, #tpu.memory_space<vmem>>, %arg8: memref<4x7xf32, #tpu.memory_space<vmem>>, %arg9: memref<96x48xf32, #tpu.memory_space<vmem>>, %arg10: memref<96x48xf32, #tpu.memory_space<vmem>>, %arg11: memref<192x50xf32, #tpu.memory_space<vmem>>, %arg12: memref<1x50xf32, #tpu.memory_space<vmem>>, %arg13: memref<50x100xf32, #tpu.memory_space<vmem>>, %arg14: memref<1x100xf32, #tpu.memory_space<vmem>>, %arg15: memref<100x10xf32, #tpu.memory_space<vmem>>, %arg16: memref<1x10xf32, #tpu.memory_space<vmem>>, %arg17: memref<2x10xf32, #tpu.memory_space<vmem>>) attributes {dimension_semantics = [], scalar_prefetch = 0 : i64, scratch_operands = 0 : i64, tpu.core_type = #tpu.core_type<tc>} {
    %c0 = arith.constant 0 : index
    %c0_0 = arith.constant 0 : index
    %c0_1 = arith.constant 0 : index
    %0 = vector.load %arg1[%c0, %c0_0, %c0_1] : memref<5x28x144xf32, #tpu.memory_space<vmem>>, vector<1x28x144xf32>
    %1 = vector.shape_cast %0 : vector<1x28x144xf32> to vector<28x144xf32>
    %c1 = arith.constant 1 : index
    %c0_2 = arith.constant 0 : index
    %c0_3 = arith.constant 0 : index
    %2 = vector.load %arg1[%c1, %c0_2, %c0_3] : memref<5x28x144xf32, #tpu.memory_space<vmem>>, vector<1x28x144xf32>
    %3 = vector.shape_cast %2 : vector<1x28x144xf32> to vector<28x144xf32>
    %c2 = arith.constant 2 : index
    %c0_4 = arith.constant 0 : index
    %c0_5 = arith.constant 0 : index
    %4 = vector.load %arg1[%c2, %c0_4, %c0_5] : memref<5x28x144xf32, #tpu.memory_space<vmem>>, vector<1x28x144xf32>
    %5 = vector.shape_cast %4 : vector<1x28x144xf32> to vector<28x144xf32>
    %c3 = arith.constant 3 : index
    %c0_6 = arith.constant 0 : index
    %c0_7 = arith.constant 0 : index
    %6 = vector.load %arg1[%c3, %c0_6, %c0_7] : memref<5x28x144xf32, #tpu.memory_space<vmem>>, vector<1x28x144xf32>
    %7 = vector.shape_cast %6 : vector<1x28x144xf32> to vector<28x144xf32>
    %c4 = arith.constant 4 : index
    %c0_8 = arith.constant 0 : index
    %c0_9 = arith.constant 0 : index
    %8 = vector.load %arg1[%c4, %c0_8, %c0_9] : memref<5x28x144xf32, #tpu.memory_space<vmem>>, vector<1x28x144xf32>
    %9 = vector.shape_cast %8 : vector<1x28x144xf32> to vector<28x144xf32>
    %c0_10 = arith.constant 0 : index
    %c0_11 = arith.constant 0 : index
    %c0_12 = arith.constant 0 : index
    %10 = vector.load %arg6[%c0_10, %c0_11, %c0_12] : memref<5x72x96xf32, #tpu.memory_space<vmem>>, vector<1x72x96xf32>
    %11 = vector.shape_cast %10 : vector<1x72x96xf32> to vector<72x96xf32>
    %c1_13 = arith.constant 1 : index
    %c0_14 = arith.constant 0 : index
    %c0_15 = arith.constant 0 : index
    %12 = vector.load %arg6[%c1_13, %c0_14, %c0_15] : memref<5x72x96xf32, #tpu.memory_space<vmem>>, vector<1x72x96xf32>
    %13 = vector.shape_cast %12 : vector<1x72x96xf32> to vector<72x96xf32>
    %c2_16 = arith.constant 2 : index
    %c0_17 = arith.constant 0 : index
    %c0_18 = arith.constant 0 : index
    %14 = vector.load %arg6[%c2_16, %c0_17, %c0_18] : memref<5x72x96xf32, #tpu.memory_space<vmem>>, vector<1x72x96xf32>
    %15 = vector.shape_cast %14 : vector<1x72x96xf32> to vector<72x96xf32>
    %c3_19 = arith.constant 3 : index
    %c0_20 = arith.constant 0 : index
    %c0_21 = arith.constant 0 : index
    %16 = vector.load %arg6[%c3_19, %c0_20, %c0_21] : memref<5x72x96xf32, #tpu.memory_space<vmem>>, vector<1x72x96xf32>
    %17 = vector.shape_cast %16 : vector<1x72x96xf32> to vector<72x96xf32>
    %c4_22 = arith.constant 4 : index
    %c0_23 = arith.constant 0 : index
    %c0_24 = arith.constant 0 : index
    %18 = vector.load %arg6[%c4_22, %c0_23, %c0_24] : memref<5x72x96xf32, #tpu.memory_space<vmem>>, vector<1x72x96xf32>
    %19 = vector.shape_cast %18 : vector<1x72x96xf32> to vector<72x96xf32>
    %c0_25 = arith.constant 0 : index
    %c0_26 = arith.constant 0 : index
    %20 = vector.load %arg2[%c0_25, %c0_26] : memref<1x144xf32, #tpu.memory_space<vmem>>, vector<1x144xf32>
    %c0_27 = arith.constant 0 : index
    %c0_28 = arith.constant 0 : index
    %21 = vector.load %arg7[%c0_27, %c0_28] : memref<1x96xf32, #tpu.memory_space<vmem>>, vector<1x96xf32>
    %c0_29 = arith.constant 0 : index
    %c0_30 = arith.constant 0 : index
    %22 = vector.load %arg3[%c0_29, %c0_30] : memref<12x23xf32, #tpu.memory_space<vmem>>, vector<12x23xf32>
    %c0_31 = arith.constant 0 : index
    %c0_32 = arith.constant 0 : index
    %23 = vector.load %arg4[%c0_31, %c0_32] : memref<144x72xf32, #tpu.memory_space<vmem>>, vector<144x72xf32>
    %c0_33 = arith.constant 0 : index
    %c0_34 = arith.constant 0 : index
    %24 = vector.load %arg5[%c0_33, %c0_34] : memref<144x72xf32, #tpu.memory_space<vmem>>, vector<144x72xf32>
    %c0_35 = arith.constant 0 : index
    %c0_36 = arith.constant 0 : index
    %25 = vector.load %arg8[%c0_35, %c0_36] : memref<4x7xf32, #tpu.memory_space<vmem>>, vector<4x7xf32>
    %c0_37 = arith.constant 0 : index
    %c0_38 = arith.constant 0 : index
    %26 = vector.load %arg9[%c0_37, %c0_38] : memref<96x48xf32, #tpu.memory_space<vmem>>, vector<96x48xf32>
    %c0_39 = arith.constant 0 : index
    %c0_40 = arith.constant 0 : index
    %27 = vector.load %arg10[%c0_39, %c0_40] : memref<96x48xf32, #tpu.memory_space<vmem>>, vector<96x48xf32>
    %c0_41 = arith.constant 0 : index
    %c0_42 = arith.constant 0 : index
    %c0_43 = arith.constant 0 : index
    %28 = vector.load %arg0[%c0_41, %c0_42, %c0_43] : memref<2x28x28xf32, #tpu.memory_space<vmem>>, vector<1x28x28xf32>
    %29 = vector.shape_cast %28 : vector<1x28x28xf32> to vector<28x28xf32>
    %30 = vector.extract_strided_slice %29 {offsets = [0, 0], sizes = [24, 28], strides = [1, 1]} : vector<28x28xf32> to vector<24x28xf32>
    %cst = arith.constant dense<0.000000e+00> : vector<24x144xf32>
    %31 = tpu.matmul %30, %1, %cst {dimension_numbers = #tpu.dot_dimension_numbers<[1], [0], [0], [1], [0, 0, 1, 1], [], []>} : vector<24x28xf32>, vector<28x144xf32>, vector<24x144xf32> -> vector<24x144xf32>
    %32 = vector.extract_strided_slice %29 {offsets = [1, 0], sizes = [24, 28], strides = [1, 1]} : vector<28x28xf32> to vector<24x28xf32>
    %cst_44 = arith.constant dense<0.000000e+00> : vector<24x144xf32>
    %33 = tpu.matmul %32, %3, %cst_44 {dimension_numbers = #tpu.dot_dimension_numbers<[1], [0], [0], [1], [0, 0, 1, 1], [], []>} : vector<24x28xf32>, vector<28x144xf32>, vector<24x144xf32> -> vector<24x144xf32>
    %34 = arith.addf %31, %33 : vector<24x144xf32>
    %35 = vector.extract_strided_slice %29 {offsets = [2, 0], sizes = [24, 28], strides = [1, 1]} : vector<28x28xf32> to vector<24x28xf32>
    %cst_45 = arith.constant dense<0.000000e+00> : vector<24x144xf32>
    %36 = tpu.matmul %35, %5, %cst_45 {dimension_numbers = #tpu.dot_dimension_numbers<[1], [0], [0], [1], [0, 0, 1, 1], [], []>} : vector<24x28xf32>, vector<28x144xf32>, vector<24x144xf32> -> vector<24x144xf32>
    %37 = arith.addf %34, %36 : vector<24x144xf32>
    %38 = vector.extract_strided_slice %29 {offsets = [3, 0], sizes = [24, 28], strides = [1, 1]} : vector<28x28xf32> to vector<24x28xf32>
    %cst_46 = arith.constant dense<0.000000e+00> : vector<24x144xf32>
    %39 = tpu.matmul %38, %7, %cst_46 {dimension_numbers = #tpu.dot_dimension_numbers<[1], [0], [0], [1], [0, 0, 1, 1], [], []>} : vector<24x28xf32>, vector<28x144xf32>, vector<24x144xf32> -> vector<24x144xf32>
    %40 = arith.addf %37, %39 : vector<24x144xf32>
    %41 = vector.extract_strided_slice %29 {offsets = [4, 0], sizes = [24, 28], strides = [1, 1]} : vector<28x28xf32> to vector<24x28xf32>
    %cst_47 = arith.constant dense<0.000000e+00> : vector<24x144xf32>
    %42 = tpu.matmul %41, %9, %cst_47 {dimension_numbers = #tpu.dot_dimension_numbers<[1], [0], [0], [1], [0, 0, 1, 1], [], []>} : vector<24x28xf32>, vector<28x144xf32>, vector<24x144xf32> -> vector<24x144xf32>
    %43 = arith.addf %40, %42 : vector<24x144xf32>
    %44 = vector.broadcast %20 : vector<1x144xf32> to vector<24x144xf32>
    %45 = arith.addf %43, %44 : vector<24x144xf32>
    %46 = vector.extract_strided_slice %45 {offsets = [0, 0], sizes = [23, 144], strides = [1, 1]} : vector<24x144xf32> to vector<23x144xf32>
    %47 = vector.extract_strided_slice %45 {offsets = [1, 0], sizes = [23, 144], strides = [1, 1]} : vector<24x144xf32> to vector<23x144xf32>
    %48 = arith.maximumf %46, %47 : vector<23x144xf32>
    %cst_48 = arith.constant dense<0.000000e+00> : vector<12x144xf32>
    %49 = tpu.matmul %22, %48, %cst_48 {dimension_numbers = #tpu.dot_dimension_numbers<[1], [0], [0], [1], [0, 0, 1, 1], [], []>} : vector<12x23xf32>, vector<23x144xf32>, vector<12x144xf32> -> vector<12x144xf32>
    %cst_49 = arith.constant dense<0.000000e+00> : vector<12x72xf32>
    %50 = tpu.matmul %49, %23, %cst_49 {dimension_numbers = #tpu.dot_dimension_numbers<[1], [0], [0], [1], [0, 0, 1, 1], [], []>} : vector<12x144xf32>, vector<144x72xf32>, vector<12x72xf32> -> vector<12x72xf32>
    %cst_50 = arith.constant dense<0.000000e+00> : vector<12x72xf32>
    %51 = tpu.matmul %49, %24, %cst_50 {dimension_numbers = #tpu.dot_dimension_numbers<[1], [0], [0], [1], [0, 0, 1, 1], [], []>} : vector<12x144xf32>, vector<144x72xf32>, vector<12x72xf32> -> vector<12x72xf32>
    %52 = arith.maximumf %50, %51 : vector<12x72xf32>
    %53 = vector.extract_strided_slice %52 {offsets = [0, 0], sizes = [8, 72], strides = [1, 1]} : vector<12x72xf32> to vector<8x72xf32>
    %cst_51 = arith.constant dense<0.000000e+00> : vector<8x96xf32>
    %54 = tpu.matmul %53, %11, %cst_51 {dimension_numbers = #tpu.dot_dimension_numbers<[1], [0], [0], [1], [0, 0, 1, 1], [], []>} : vector<8x72xf32>, vector<72x96xf32>, vector<8x96xf32> -> vector<8x96xf32>
    %55 = vector.extract_strided_slice %52 {offsets = [1, 0], sizes = [8, 72], strides = [1, 1]} : vector<12x72xf32> to vector<8x72xf32>
    %cst_52 = arith.constant dense<0.000000e+00> : vector<8x96xf32>
    %56 = tpu.matmul %55, %13, %cst_52 {dimension_numbers = #tpu.dot_dimension_numbers<[1], [0], [0], [1], [0, 0, 1, 1], [], []>} : vector<8x72xf32>, vector<72x96xf32>, vector<8x96xf32> -> vector<8x96xf32>
    %57 = arith.addf %54, %56 : vector<8x96xf32>
    %58 = vector.extract_strided_slice %52 {offsets = [2, 0], sizes = [8, 72], strides = [1, 1]} : vector<12x72xf32> to vector<8x72xf32>
    %cst_53 = arith.constant dense<0.000000e+00> : vector<8x96xf32>
    %59 = tpu.matmul %58, %15, %cst_53 {dimension_numbers = #tpu.dot_dimension_numbers<[1], [0], [0], [1], [0, 0, 1, 1], [], []>} : vector<8x72xf32>, vector<72x96xf32>, vector<8x96xf32> -> vector<8x96xf32>
    %60 = arith.addf %57, %59 : vector<8x96xf32>
    %61 = vector.extract_strided_slice %52 {offsets = [3, 0], sizes = [8, 72], strides = [1, 1]} : vector<12x72xf32> to vector<8x72xf32>
    %cst_54 = arith.constant dense<0.000000e+00> : vector<8x96xf32>
    %62 = tpu.matmul %61, %17, %cst_54 {dimension_numbers = #tpu.dot_dimension_numbers<[1], [0], [0], [1], [0, 0, 1, 1], [], []>} : vector<8x72xf32>, vector<72x96xf32>, vector<8x96xf32> -> vector<8x96xf32>
    %63 = arith.addf %60, %62 : vector<8x96xf32>
    %64 = vector.extract_strided_slice %52 {offsets = [4, 0], sizes = [8, 72], strides = [1, 1]} : vector<12x72xf32> to vector<8x72xf32>
    %cst_55 = arith.constant dense<0.000000e+00> : vector<8x96xf32>
    %65 = tpu.matmul %64, %19, %cst_55 {dimension_numbers = #tpu.dot_dimension_numbers<[1], [0], [0], [1], [0, 0, 1, 1], [], []>} : vector<8x72xf32>, vector<72x96xf32>, vector<8x96xf32> -> vector<8x96xf32>
    %66 = arith.addf %63, %65 : vector<8x96xf32>
    %67 = vector.broadcast %21 : vector<1x96xf32> to vector<8x96xf32>
    %68 = arith.addf %66, %67 : vector<8x96xf32>
    %69 = vector.extract_strided_slice %68 {offsets = [0, 0], sizes = [7, 96], strides = [1, 1]} : vector<8x96xf32> to vector<7x96xf32>
    %70 = vector.extract_strided_slice %68 {offsets = [1, 0], sizes = [7, 96], strides = [1, 1]} : vector<8x96xf32> to vector<7x96xf32>
    %71 = arith.maximumf %69, %70 : vector<7x96xf32>
    %cst_56 = arith.constant dense<0.000000e+00> : vector<4x96xf32>
    %72 = tpu.matmul %25, %71, %cst_56 {dimension_numbers = #tpu.dot_dimension_numbers<[1], [0], [0], [1], [0, 0, 1, 1], [], []>} : vector<4x7xf32>, vector<7x96xf32>, vector<4x96xf32> -> vector<4x96xf32>
    %cst_57 = arith.constant dense<0.000000e+00> : vector<4x48xf32>
    %73 = tpu.matmul %72, %26, %cst_57 {dimension_numbers = #tpu.dot_dimension_numbers<[1], [0], [0], [1], [0, 0, 1, 1], [], []>} : vector<4x96xf32>, vector<96x48xf32>, vector<4x48xf32> -> vector<4x48xf32>
    %cst_58 = arith.constant dense<0.000000e+00> : vector<4x48xf32>
    %74 = tpu.matmul %72, %27, %cst_58 {dimension_numbers = #tpu.dot_dimension_numbers<[1], [0], [0], [1], [0, 0, 1, 1], [], []>} : vector<4x96xf32>, vector<96x48xf32>, vector<4x48xf32> -> vector<4x48xf32>
    %75 = arith.maximumf %73, %74 : vector<4x48xf32>
    %76 = vector.extract_strided_slice %75 {offsets = [0, 0], sizes = [1, 48], strides = [1, 1]} : vector<4x48xf32> to vector<1x48xf32>
    %77 = vector.extract_strided_slice %75 {offsets = [1, 0], sizes = [1, 48], strides = [1, 1]} : vector<4x48xf32> to vector<1x48xf32>
    %78 = vector.extract_strided_slice %75 {offsets = [2, 0], sizes = [1, 48], strides = [1, 1]} : vector<4x48xf32> to vector<1x48xf32>
    %79 = vector.extract_strided_slice %75 {offsets = [3, 0], sizes = [1, 48], strides = [1, 1]} : vector<4x48xf32> to vector<1x48xf32>
    %80 = tpu.concatenate %76, %77, %78, %79 in 1 : vector<1x48xf32>, vector<1x48xf32>, vector<1x48xf32>, vector<1x48xf32> -> vector<1x192xf32>
    %c1_59 = arith.constant 1 : index
    %c0_60 = arith.constant 0 : index
    %c0_61 = arith.constant 0 : index
    %81 = vector.load %arg0[%c1_59, %c0_60, %c0_61] : memref<2x28x28xf32, #tpu.memory_space<vmem>>, vector<1x28x28xf32>
    %82 = vector.shape_cast %81 : vector<1x28x28xf32> to vector<28x28xf32>
    %83 = vector.extract_strided_slice %82 {offsets = [0, 0], sizes = [24, 28], strides = [1, 1]} : vector<28x28xf32> to vector<24x28xf32>
    %cst_62 = arith.constant dense<0.000000e+00> : vector<24x144xf32>
    %84 = tpu.matmul %83, %1, %cst_62 {dimension_numbers = #tpu.dot_dimension_numbers<[1], [0], [0], [1], [0, 0, 1, 1], [], []>} : vector<24x28xf32>, vector<28x144xf32>, vector<24x144xf32> -> vector<24x144xf32>
    %85 = vector.extract_strided_slice %82 {offsets = [1, 0], sizes = [24, 28], strides = [1, 1]} : vector<28x28xf32> to vector<24x28xf32>
    %cst_63 = arith.constant dense<0.000000e+00> : vector<24x144xf32>
    %86 = tpu.matmul %85, %3, %cst_63 {dimension_numbers = #tpu.dot_dimension_numbers<[1], [0], [0], [1], [0, 0, 1, 1], [], []>} : vector<24x28xf32>, vector<28x144xf32>, vector<24x144xf32> -> vector<24x144xf32>
    %87 = arith.addf %84, %86 : vector<24x144xf32>
    %88 = vector.extract_strided_slice %82 {offsets = [2, 0], sizes = [24, 28], strides = [1, 1]} : vector<28x28xf32> to vector<24x28xf32>
    %cst_64 = arith.constant dense<0.000000e+00> : vector<24x144xf32>
    %89 = tpu.matmul %88, %5, %cst_64 {dimension_numbers = #tpu.dot_dimension_numbers<[1], [0], [0], [1], [0, 0, 1, 1], [], []>} : vector<24x28xf32>, vector<28x144xf32>, vector<24x144xf32> -> vector<24x144xf32>
    %90 = arith.addf %87, %89 : vector<24x144xf32>
    %91 = vector.extract_strided_slice %82 {offsets = [3, 0], sizes = [24, 28], strides = [1, 1]} : vector<28x28xf32> to vector<24x28xf32>
    %cst_65 = arith.constant dense<0.000000e+00> : vector<24x144xf32>
    %92 = tpu.matmul %91, %7, %cst_65 {dimension_numbers = #tpu.dot_dimension_numbers<[1], [0], [0], [1], [0, 0, 1, 1], [], []>} : vector<24x28xf32>, vector<28x144xf32>, vector<24x144xf32> -> vector<24x144xf32>
    %93 = arith.addf %90, %92 : vector<24x144xf32>
    %94 = vector.extract_strided_slice %82 {offsets = [4, 0], sizes = [24, 28], strides = [1, 1]} : vector<28x28xf32> to vector<24x28xf32>
    %cst_66 = arith.constant dense<0.000000e+00> : vector<24x144xf32>
    %95 = tpu.matmul %94, %9, %cst_66 {dimension_numbers = #tpu.dot_dimension_numbers<[1], [0], [0], [1], [0, 0, 1, 1], [], []>} : vector<24x28xf32>, vector<28x144xf32>, vector<24x144xf32> -> vector<24x144xf32>
    %96 = arith.addf %93, %95 : vector<24x144xf32>
    %97 = vector.broadcast %20 : vector<1x144xf32> to vector<24x144xf32>
    %98 = arith.addf %96, %97 : vector<24x144xf32>
    %99 = vector.extract_strided_slice %98 {offsets = [0, 0], sizes = [23, 144], strides = [1, 1]} : vector<24x144xf32> to vector<23x144xf32>
    %100 = vector.extract_strided_slice %98 {offsets = [1, 0], sizes = [23, 144], strides = [1, 1]} : vector<24x144xf32> to vector<23x144xf32>
    %101 = arith.maximumf %99, %100 : vector<23x144xf32>
    %cst_67 = arith.constant dense<0.000000e+00> : vector<12x144xf32>
    %102 = tpu.matmul %22, %101, %cst_67 {dimension_numbers = #tpu.dot_dimension_numbers<[1], [0], [0], [1], [0, 0, 1, 1], [], []>} : vector<12x23xf32>, vector<23x144xf32>, vector<12x144xf32> -> vector<12x144xf32>
    %cst_68 = arith.constant dense<0.000000e+00> : vector<12x72xf32>
    %103 = tpu.matmul %102, %23, %cst_68 {dimension_numbers = #tpu.dot_dimension_numbers<[1], [0], [0], [1], [0, 0, 1, 1], [], []>} : vector<12x144xf32>, vector<144x72xf32>, vector<12x72xf32> -> vector<12x72xf32>
    %cst_69 = arith.constant dense<0.000000e+00> : vector<12x72xf32>
    %104 = tpu.matmul %102, %24, %cst_69 {dimension_numbers = #tpu.dot_dimension_numbers<[1], [0], [0], [1], [0, 0, 1, 1], [], []>} : vector<12x144xf32>, vector<144x72xf32>, vector<12x72xf32> -> vector<12x72xf32>
    %105 = arith.maximumf %103, %104 : vector<12x72xf32>
    %106 = vector.extract_strided_slice %105 {offsets = [0, 0], sizes = [8, 72], strides = [1, 1]} : vector<12x72xf32> to vector<8x72xf32>
    %cst_70 = arith.constant dense<0.000000e+00> : vector<8x96xf32>
    %107 = tpu.matmul %106, %11, %cst_70 {dimension_numbers = #tpu.dot_dimension_numbers<[1], [0], [0], [1], [0, 0, 1, 1], [], []>} : vector<8x72xf32>, vector<72x96xf32>, vector<8x96xf32> -> vector<8x96xf32>
    %108 = vector.extract_strided_slice %105 {offsets = [1, 0], sizes = [8, 72], strides = [1, 1]} : vector<12x72xf32> to vector<8x72xf32>
    %cst_71 = arith.constant dense<0.000000e+00> : vector<8x96xf32>
    %109 = tpu.matmul %108, %13, %cst_71 {dimension_numbers = #tpu.dot_dimension_numbers<[1], [0], [0], [1], [0, 0, 1, 1], [], []>} : vector<8x72xf32>, vector<72x96xf32>, vector<8x96xf32> -> vector<8x96xf32>
    %110 = arith.addf %107, %109 : vector<8x96xf32>
    %111 = vector.extract_strided_slice %105 {offsets = [2, 0], sizes = [8, 72], strides = [1, 1]} : vector<12x72xf32> to vector<8x72xf32>
    %cst_72 = arith.constant dense<0.000000e+00> : vector<8x96xf32>
    %112 = tpu.matmul %111, %15, %cst_72 {dimension_numbers = #tpu.dot_dimension_numbers<[1], [0], [0], [1], [0, 0, 1, 1], [], []>} : vector<8x72xf32>, vector<72x96xf32>, vector<8x96xf32> -> vector<8x96xf32>
    %113 = arith.addf %110, %112 : vector<8x96xf32>
    %114 = vector.extract_strided_slice %105 {offsets = [3, 0], sizes = [8, 72], strides = [1, 1]} : vector<12x72xf32> to vector<8x72xf32>
    %cst_73 = arith.constant dense<0.000000e+00> : vector<8x96xf32>
    %115 = tpu.matmul %114, %17, %cst_73 {dimension_numbers = #tpu.dot_dimension_numbers<[1], [0], [0], [1], [0, 0, 1, 1], [], []>} : vector<8x72xf32>, vector<72x96xf32>, vector<8x96xf32> -> vector<8x96xf32>
    %116 = arith.addf %113, %115 : vector<8x96xf32>
    %117 = vector.extract_strided_slice %105 {offsets = [4, 0], sizes = [8, 72], strides = [1, 1]} : vector<12x72xf32> to vector<8x72xf32>
    %cst_74 = arith.constant dense<0.000000e+00> : vector<8x96xf32>
    %118 = tpu.matmul %117, %19, %cst_74 {dimension_numbers = #tpu.dot_dimension_numbers<[1], [0], [0], [1], [0, 0, 1, 1], [], []>} : vector<8x72xf32>, vector<72x96xf32>, vector<8x96xf32> -> vector<8x96xf32>
    %119 = arith.addf %116, %118 : vector<8x96xf32>
    %120 = vector.broadcast %21 : vector<1x96xf32> to vector<8x96xf32>
    %121 = arith.addf %119, %120 : vector<8x96xf32>
    %122 = vector.extract_strided_slice %121 {offsets = [0, 0], sizes = [7, 96], strides = [1, 1]} : vector<8x96xf32> to vector<7x96xf32>
    %123 = vector.extract_strided_slice %121 {offsets = [1, 0], sizes = [7, 96], strides = [1, 1]} : vector<8x96xf32> to vector<7x96xf32>
    %124 = arith.maximumf %122, %123 : vector<7x96xf32>
    %cst_75 = arith.constant dense<0.000000e+00> : vector<4x96xf32>
    %125 = tpu.matmul %25, %124, %cst_75 {dimension_numbers = #tpu.dot_dimension_numbers<[1], [0], [0], [1], [0, 0, 1, 1], [], []>} : vector<4x7xf32>, vector<7x96xf32>, vector<4x96xf32> -> vector<4x96xf32>
    %cst_76 = arith.constant dense<0.000000e+00> : vector<4x48xf32>
    %126 = tpu.matmul %125, %26, %cst_76 {dimension_numbers = #tpu.dot_dimension_numbers<[1], [0], [0], [1], [0, 0, 1, 1], [], []>} : vector<4x96xf32>, vector<96x48xf32>, vector<4x48xf32> -> vector<4x48xf32>
    %cst_77 = arith.constant dense<0.000000e+00> : vector<4x48xf32>
    %127 = tpu.matmul %125, %27, %cst_77 {dimension_numbers = #tpu.dot_dimension_numbers<[1], [0], [0], [1], [0, 0, 1, 1], [], []>} : vector<4x96xf32>, vector<96x48xf32>, vector<4x48xf32> -> vector<4x48xf32>
    %128 = arith.maximumf %126, %127 : vector<4x48xf32>
    %129 = vector.extract_strided_slice %128 {offsets = [0, 0], sizes = [1, 48], strides = [1, 1]} : vector<4x48xf32> to vector<1x48xf32>
    %130 = vector.extract_strided_slice %128 {offsets = [1, 0], sizes = [1, 48], strides = [1, 1]} : vector<4x48xf32> to vector<1x48xf32>
    %131 = vector.extract_strided_slice %128 {offsets = [2, 0], sizes = [1, 48], strides = [1, 1]} : vector<4x48xf32> to vector<1x48xf32>
    %132 = vector.extract_strided_slice %128 {offsets = [3, 0], sizes = [1, 48], strides = [1, 1]} : vector<4x48xf32> to vector<1x48xf32>
    %133 = tpu.concatenate %129, %130, %131, %132 in 1 : vector<1x48xf32>, vector<1x48xf32>, vector<1x48xf32>, vector<1x48xf32> -> vector<1x192xf32>
    %134 = tpu.concatenate %80, %133 in 0 : vector<1x192xf32>, vector<1x192xf32> -> vector<2x192xf32>
    %c0_78 = arith.constant 0 : index
    %c0_79 = arith.constant 0 : index
    %135 = vector.load %arg11[%c0_78, %c0_79] : memref<192x50xf32, #tpu.memory_space<vmem>>, vector<192x50xf32>
    %cst_80 = arith.constant dense<0.000000e+00> : vector<2x50xf32>
    %136 = tpu.matmul %134, %135, %cst_80 {dimension_numbers = #tpu.dot_dimension_numbers<[1], [0], [0], [1], [0, 0, 1, 1], [], []>} : vector<2x192xf32>, vector<192x50xf32>, vector<2x50xf32> -> vector<2x50xf32>
    %c0_81 = arith.constant 0 : index
    %c0_82 = arith.constant 0 : index
    %137 = vector.load %arg12[%c0_81, %c0_82] : memref<1x50xf32, #tpu.memory_space<vmem>>, vector<1x50xf32>
    %138 = vector.broadcast %137 : vector<1x50xf32> to vector<2x50xf32>
    %139 = arith.addf %136, %138 : vector<2x50xf32>
    %cst_83 = arith.constant 0.000000e+00 : f32
    %140 = vector.broadcast %cst_83 : f32 to vector<2x50xf32>
    %141 = arith.maximumf %139, %140 : vector<2x50xf32>
    %c0_84 = arith.constant 0 : index
    %c0_85 = arith.constant 0 : index
    %142 = vector.load %arg13[%c0_84, %c0_85] : memref<50x100xf32, #tpu.memory_space<vmem>>, vector<50x100xf32>
    %cst_86 = arith.constant dense<0.000000e+00> : vector<2x100xf32>
    %143 = tpu.matmul %141, %142, %cst_86 {dimension_numbers = #tpu.dot_dimension_numbers<[1], [0], [0], [1], [0, 0, 1, 1], [], []>} : vector<2x50xf32>, vector<50x100xf32>, vector<2x100xf32> -> vector<2x100xf32>
    %c0_87 = arith.constant 0 : index
    %c0_88 = arith.constant 0 : index
    %144 = vector.load %arg14[%c0_87, %c0_88] : memref<1x100xf32, #tpu.memory_space<vmem>>, vector<1x100xf32>
    %145 = vector.broadcast %144 : vector<1x100xf32> to vector<2x100xf32>
    %146 = arith.addf %143, %145 : vector<2x100xf32>
    %cst_89 = arith.constant 0.000000e+00 : f32
    %147 = vector.broadcast %cst_89 : f32 to vector<2x100xf32>
    %148 = arith.maximumf %146, %147 : vector<2x100xf32>
    %c0_90 = arith.constant 0 : index
    %c0_91 = arith.constant 0 : index
    %149 = vector.load %arg15[%c0_90, %c0_91] : memref<100x10xf32, #tpu.memory_space<vmem>>, vector<100x10xf32>
    %cst_92 = arith.constant dense<0.000000e+00> : vector<2x10xf32>
    %150 = tpu.matmul %148, %149, %cst_92 {dimension_numbers = #tpu.dot_dimension_numbers<[1], [0], [0], [1], [0, 0, 1, 1], [], []>} : vector<2x100xf32>, vector<100x10xf32>, vector<2x10xf32> -> vector<2x10xf32>
    %c0_93 = arith.constant 0 : index
    %c0_94 = arith.constant 0 : index
    %151 = vector.load %arg16[%c0_93, %c0_94] : memref<1x10xf32, #tpu.memory_space<vmem>>, vector<1x10xf32>
    %152 = vector.broadcast %151 : vector<1x10xf32> to vector<2x10xf32>
    %153 = arith.addf %150, %152 : vector<2x10xf32>
    %c0_95 = arith.constant 0 : index
    %c0_96 = arith.constant 0 : index
    %154 = vector.load %arg17[%c0_95, %c0_96] : memref<2x10xf32, #tpu.memory_space<vmem>>, vector<2x10xf32>
    tpu.vector_store %arg17[%c0_95, %c0_96], %153 {strides = array<i32>} : memref<2x10xf32, #tpu.memory_space<vmem>>, vector<2x10xf32>,
    return
  }
}

</mosaic_0001>

<llo_original>
// kernel: model_d_forward.1
$region0: #{model_d_forward.1}
  #allocation0 [shape = 'u32[]', space=smem, size = 0x4, offset = 0x4, fixed_abs, tag = 'smem constant byte address 0x4 - core index']
  #allocation1 [shape = 'u32[144,128]{1,0:T(1,128)}', space=vmem, size = 0x12000, scoped, tag = 'internal scratch']
  %s0 = inlined_call_operand.vmem [shape: f32[2,28,28], index: 0, kind: input, shape index: {}]
  %s1 = inlined_call_operand.vmem [shape: f32[5,28,144], index: 1, kind: input, shape index: {}]
  %s2 = inlined_call_operand.vmem [shape: f32[1,144], index: 2, kind: input, shape index: {}]
  %s3 = inlined_call_operand.hbm [shape: f32[12,23], index: 3, kind: input, shape index: {}]
  %s4 = inlined_call_operand.vmem [shape: f32[144,72], index: 4, kind: input, shape index: {}]
  %s5 = inlined_call_operand.hbm [shape: f32[144,72], index: 5, kind: input, shape index: {}]
  %s6 = inlined_call_operand.vmem [shape: f32[5,72,96], index: 6, kind: input, shape index: {}]
  %s7 = inlined_call_operand.hbm [shape: f32[1,96], index: 7, kind: input, shape index: {}]
  %s8 = inlined_call_operand.hbm [shape: f32[4,7], index: 8, kind: input, shape index: {}]
  %s9 = inlined_call_operand.vmem [shape: f32[96,48], index: 9, kind: input, shape index: {}]
  %s10 = inlined_call_operand.vmem [shape: f32[96,48], index: 10, kind: input, shape index: {}]
  %s11 = inlined_call_operand.vmem [shape: f32[192,50], index: 11, kind: input, shape index: {}]
  %s12 = inlined_call_operand.vmem [shape: f32[1,50], index: 12, kind: input, shape index: {}]
  %s13 = inlined_call_operand.hbm [shape: f32[50,100], index: 13, kind: input, shape index: {}]
  %s14 = inlined_call_operand.vmem [shape: f32[1,100], index: 14, kind: input, shape index: {}]
  %s15 = inlined_call_operand.vmem [shape: f32[100,10], index: 15, kind: input, shape index: {}]
  %s16 = inlined_call_operand.vmem [shape: f32[1,10], index: 16, kind: input, shape index: {}]
  %s17 = inlined_call_operand.hbm [shape: f32[2,10], index: 17, kind: output, shape index: {}]
  %s18 = sld [smem:[#allocation0]]
  $region98: #{model_d_forward.1} parent=0
    _
  %s20 = ssub.s32 1, %s18
  %s21 = scalar_select 0, %s20, %s18
  $region1: #{model_d_forward.1} parent=0
    #allocation2 [shape = 'u8[8192]{0}', space=vmem, size = 0x2000, scoped, tag = 'input window, operand 3, single buffered']
    #allocation3 [shape = 's32[1]{0}', space=sflag, size = 0x4, scoped, tag = 'scoped memory for model_d_forward.1']
    #allocation4 [shape = 's32[1]{0}', space=sflag, size = 0x4, scoped, tag = 'scoped memory for model_d_forward.1']
    #allocation5 [shape = 'u8[73728]{0}', space=vmem, size = 0x12000, scoped, tag = 'input window, operand 5, single buffered']
    #allocation6 [shape = 's32[1]{0}', space=sflag, size = 0x4, scoped, tag = 'scoped memory for model_d_forward.1']
    #allocation7 [shape = 'u8[512]{0}', space=vmem, size = 0x400, scoped, tag = 'input window, operand 7, single buffered']
    #allocation8 [shape = 'u8[2048]{0}', space=vmem, size = 0x800, scoped, tag = 'input window, operand 8, single buffered']
    #allocation9 [shape = 's32[1]{0}', space=sflag, size = 0x4, scoped, tag = 'scoped memory for model_d_forward.1']
    #allocation10 [shape = 'u8[28672]{0}', space=vmem, size = 0x7000, scoped, tag = 'input window, operand 13, single buffered']
    #allocation11 [shape = 'u8[1024]{0}', space=vmem, size = 0x400, scoped, tag = 'output window, operand 0, single buffered']
    %22 = vsyncpa [#allocation3], 0
    %23 = vsyncpa [#allocation6], 0
    %24 = vsyncpa [#allocation9], 0
    %25 = vsyncpa [#allocation4], 0
    // Predicated region
    $region2: #{model_d_forward.1} parent=1 // pred_check
      _
    $region3: #{model_d_forward.1} parent=1 // pred_check_branch
      %27 = sbr.rel (0) target = $region5
    $region4: #{model_d_forward.1} parent=1 // pred_region
      _
    $region5: #{model_d_forward.1} parent=1 // pred_fallthru
      _
    // Predicated region
    $region6: #{model_d_forward.1} parent=1 // pred_check
      _
    $region7: #{model_d_forward.1} parent=1 // pred_check_branch
      %29 = sbr.rel (0) target = $region9
    $region8: #{model_d_forward.1} parent=1 // pred_region
      _
    $region9: #{model_d_forward.1} parent=1 // pred_fallthru
      _
    // Predicated region
    $region10: #{model_d_forward.1} parent=1 // pred_check
      _
    $region11: #{model_d_forward.1} parent=1 // pred_check_branch
      %31 = sbr.rel (0) target = $region13
    $region12: #{model_d_forward.1} parent=1 // pred_region
      _
    $region13: #{model_d_forward.1} parent=1 // pred_fallthru
      _
    // Predicated region
    $region14: #{model_d_forward.1} parent=1 // pred_check
      _
    $region15: #{model_d_forward.1} parent=1 // pred_check_branch
      %33 = sbr.rel (0) target = $region17
    $region16: #{model_d_forward.1} parent=1 // pred_region
      %s35 = ssub.s32 256, 256
      %36 = vsyncadd [#allocation3], %s35
      %s37 = sshll.u32 [#allocation2], 4
      %s38 = int_to_ptr.vmem [resolvable:$true] %s37
      %43 = dma.hbm_to_vmem [thread:$0]  %s3, 256, %s38, [#allocation3], 128, 128, 8
    $region17: #{model_d_forward.1} parent=1 // pred_fallthru
      _
    // Predicated region
    $region18: #{model_d_forward.1} parent=1 // pred_check
      _
    $region19: #{model_d_forward.1} parent=1 // pred_check_branch
      %45 = sbr.rel (0) target = $region21
    $region20: #{model_d_forward.1} parent=1 // pred_region
      _
    $region21: #{model_d_forward.1} parent=1 // pred_fallthru
      _
    // Predicated region
    $region22: #{model_d_forward.1} parent=1 // pred_check
      _
    $region23: #{model_d_forward.1} parent=1 // pred_check_branch
      %47 = sbr.rel (0) target = $region25
    $region24: #{model_d_forward.1} parent=1 // pred_region
      %s49 = ssub.s32 2304, 2304
      %50 = vsyncadd [#allocation6], %s49
      %s51 = sshll.u32 [#allocation5], 4
      %s52 = int_to_ptr.vmem [resolvable:$true] %s51
      %57 = dma.hbm_to_vmem [thread:$0]  %s5, 2304, %s52, [#allocation6], 128, 128, 8
    $region25: #{model_d_forward.1} parent=1 // pred_fallthru
      _
    // Predicated region
    $region26: #{model_d_forward.1} parent=1 // pred_check
      _
    $region27: #{model_d_forward.1} parent=1 // pred_check_branch
      %59 = sbr.rel (0) target = $region29
    $region28: #{model_d_forward.1} parent=1 // pred_region
      _
    $region29: #{model_d_forward.1} parent=1 // pred_fallthru
      _
    // Predicated region
    $region30: #{model_d_forward.1} parent=1 // pred_check
      _
    $region31: #{model_d_forward.1} parent=1 // pred_check_branch
      %61 = sbr.rel (0) target = $region33
    $region32: #{model_d_forward.1} parent=1 // pred_region
      %s63 = ssub.s32 16, 16
      %64 = vsyncadd [#allocation6], %s63
      %s66 = sshll.u32 [#allocation7], 4
      %s67 = int_to_ptr.vmem [resolvable:$true] %s66
      %69 = dma.hbm_to_vmem [thread:$0]  %s7, 16, %s67, [#allocation6]
    $region33: #{model_d_forward.1} parent=1 // pred_fallthru
      _
    // Predicated region
    $region34: #{model_d_forward.1} parent=1 // pred_check
      _
    $region35: #{model_d_forward.1} parent=1 // pred_check_branch
      %71 = sbr.rel (0) target = $region37
    $region36: #{model_d_forward.1} parent=1 // pred_region
      %s73 = ssub.s32 64, 64
      %74 = vsyncadd [#allocation9], %s73
      %s76 = sshll.u32 [#allocation8], 4
      %s77 = int_to_ptr.vmem [resolvable:$true] %s76
      %79 = dma.hbm_to_vmem [thread:$0]  %s8, 64, %s77, [#allocation9]
    $region37: #{model_d_forward.1} parent=1 // pred_fallthru
      _
    // Predicated region
    $region38: #{model_d_forward.1} parent=1 // pred_check
      _
    $region39: #{model_d_forward.1} parent=1 // pred_check_branch
      %81 = sbr.rel (0) target = $region41
    $region40: #{model_d_forward.1} parent=1 // pred_region
      _
    $region41: #{model_d_forward.1} parent=1 // pred_fallthru
      _
    // Predicated region
    $region42: #{model_d_forward.1} parent=1 // pred_check
      _
    $region43: #{model_d_forward.1} parent=1 // pred_check_branch
      %83 = sbr.rel (0) target = $region45
    $region44: #{model_d_forward.1} parent=1 // pred_region
      _
    $region45: #{model_d_forward.1} parent=1 // pred_fallthru
      _
    // Predicated region
    $region46: #{model_d_forward.1} parent=1 // pred_check
      _
    $region47: #{model_d_forward.1} parent=1 // pred_check_branch
      %85 = sbr.rel (0) target = $region49
    $region48: #{model_d_forward.1} parent=1 // pred_region
      _
    $region49: #{model_d_forward.1} parent=1 // pred_fallthru
      _
    // Predicated region
    $region50: #{model_d_forward.1} parent=1 // pred_check
      _
    $region51: #{model_d_forward.1} parent=1 // pred_check_branch
      %87 = sbr.rel (0) target = $region53
    $region52: #{model_d_forward.1} parent=1 // pred_region
      _
    $region53: #{model_d_forward.1} parent=1 // pred_fallthru
      _
    // Predicated region
    $region54: #{model_d_forward.1} parent=1 // pred_check
      _
    $region55: #{model_d_forward.1} parent=1 // pred_check_branch
      %89 = sbr.rel (0) target = $region57
    $region56: #{model_d_forward.1} parent=1 // pred_region
      %s91 = ssub.s32 896, 896
      %92 = vsyncadd [#allocation9], %s91
      %s93 = sshll.u32 [#allocation10], 4
      %s94 = int_to_ptr.vmem [resolvable:$true] %s93
      %99 = dma.hbm_to_vmem [thread:$0]  %s13, 896, %s94, [#allocation9], 128, 128, 8
    $region57: #{model_d_forward.1} parent=1 // pred_fallthru
      _
    // Predicated region
    $region58: #{model_d_forward.1} parent=1 // pred_check
      _
    $region59: #{model_d_forward.1} parent=1 // pred_check_branch
      %101 = sbr.rel (0) target = $region61
    $region60: #{model_d_forward.1} parent=1 // pred_region
      _
    $region61: #{model_d_forward.1} parent=1 // pred_fallthru
      _
    // Predicated region
    $region62: #{model_d_forward.1} parent=1 // pred_check
      _
    $region63: #{model_d_forward.1} parent=1 // pred_check_branch
      %103 = sbr.rel (0) target = $region65
    $region64: #{model_d_forward.1} parent=1 // pred_region
      _
    $region65: #{model_d_forward.1} parent=1 // pred_fallthru
      _
    // Predicated region
    $region66: #{model_d_forward.1} parent=1 // pred_check
      _
    $region67: #{model_d_forward.1} parent=1 // pred_check_branch
      %105 = sbr.rel (0) target = $region69
    $region68: #{model_d_forward.1} parent=1 // pred_region
      _
    $region69: #{model_d_forward.1} parent=1 // pred_fallthru
      _
    // Predicated region
    $region70: #{model_d_forward.1} parent=1 // pred_check
      _
    $region71: #{model_d_forward.1} parent=1 // pred_check_branch
      %107 = sbr.rel (0) target = $region73
    $region72: #{model_d_forward.1} parent=1 // pred_region
      %108 = dma.done [#allocation3], 256
    $region73: #{model_d_forward.1} parent=1 // pred_fallthru
      _
    // Predicated region
    $region74: #{model_d_forward.1} parent=1 // pred_check
      _
    $region75: #{model_d_forward.1} parent=1 // pred_check_branch
      %110 = sbr.rel (0) target = $region77
    $region76: #{model_d_forward.1} parent=1 // pred_region
      %111 = dma.done [#allocation6], 2304
    $region77: #{model_d_forward.1} parent=1 // pred_fallthru
      _
    // Predicated region
    $region78: #{model_d_forward.1} parent=1 // pred_check
      _
    $region79: #{model_d_forward.1} parent=1 // pred_check_branch
      %113 = sbr.rel (0) target = $region81
    $region80: #{model_d_forward.1} parent=1 // pred_region
      %114 = dma.done [#allocation6], 16
    $region81: #{model_d_forward.1} parent=1 // pred_fallthru
      _
    // Predicated region
    $region82: #{model_d_forward.1} parent=1 // pred_check
      _
    $region83: #{model_d_forward.1} parent=1 // pred_check_branch
      %116 = sbr.rel (0) target = $region85
    $region84: #{model_d_forward.1} parent=1 // pred_region
      %117 = dma.done [#allocation9], 64
    $region85: #{model_d_forward.1} parent=1 // pred_fallthru
      _
    // Predicated region
    $region86: #{model_d_forward.1} parent=1 // pred_check
      _
    $region87: #{model_d_forward.1} parent=1 // pred_check_branch
      %119 = sbr.rel (0) target = $region89
    $region88: #{model_d_forward.1} parent=1 // pred_region
      %120 = dma.done [#allocation9], 896
    $region89: #{model_d_forward.1} parent=1 // pred_fallthru
      _
    %v121 = vld [vmem:[%s1] sm:$0xff]
    %v122 = vld [vmem:[%s1 + $0x8] sm:$0xff]
    %v123 = vld [vmem:[%s1 + $0x10] sm:$0xff]
    %v124 = vld [vmem:[%s1 + $0x18] sm:$0xff]
    %v125 = vld [vmem:[%s1 + $0x20] sm:$0xff]
    %v126 = vld [vmem:[%s1 + $0x28] sm:$0xff]
    %v127 = vld [vmem:[%s1 + $0x30] sm:$0xf]
    %v128 = vld [vmem:[%s1 + $0x38] sm:$0xf]
    %s129 = scalar_lea.vmem %s1, 64
    %v130 = vld [vmem:[%s129] sm:$0xff]
    %v131 = vld [vmem:[%s129 + $0x8] sm:$0xff]
    %v132 = vld [vmem:[%s129 + $0x10] sm:$0xff]
    %v133 = vld [vmem:[%s129 + $0x18] sm:$0xff]
    %v134 = vld [vmem:[%s129 + $0x20] sm:$0xff]
    %v135 = vld [vmem:[%s129 + $0x28] sm:$0xff]
    %v136 = vld [vmem:[%s129 + $0x30] sm:$0xf]
    %v137 = vld [vmem:[%s129 + $0x38] sm:$0xf]
    %s138 = scalar_lea.vmem %s1, 128
    %v139 = vld [vmem:[%s138] sm:$0xff]
    %v140 = vld [vmem:[%s138 + $0x8] sm:$0xff]
    %v141 = vld [vmem:[%s138 + $0x10] sm:$0xff]
    %v142 = vld [vmem:[%s138 + $0x18] sm:$0xff]
    %v143 = vld [vmem:[%s138 + $0x20] sm:$0xff]
    %v144 = vld [vmem:[%s138 + $0x28] sm:$0xff]
    %v145 = vld [vmem:[%s138 + $0x30] sm:$0xf]
    %v146 = vld [vmem:[%s138 + $0x38] sm:$0xf]
    %s147 = scalar_lea.vmem %s1, 192
    %v148 = vld [vmem:[%s147] sm:$0xff]
    %v149 = vld [vmem:[%s147 + $0x8] sm:$0xff]
    %v150 = vld [vmem:[%s147 + $0x10] sm:$0xff]
    %v151 = vld [vmem:[%s147 + $0x18] sm:$0xff]
    %v152 = vld [vmem:[%s147 + $0x20] sm:$0xff]
    %v153 = vld [vmem:[%s147 + $0x28] sm:$0xff]
    %v154 = vld [vmem:[%s147 + $0x30] sm:$0xf]
    %v155 = vld [vmem:[%s147 + $0x38] sm:$0xf]
    %s156 = scalar_lea.vmem %s1, 256
    %v157 = vld [vmem:[%s156] sm:$0xff]
    %v158 = vld [vmem:[%s156 + $0x8] sm:$0xff]
    %v159 = vld [vmem:[%s156 + $0x10] sm:$0xff]
    %v160 = vld [vmem:[%s156 + $0x18] sm:$0xff]
    %v161 = vld [vmem:[%s156 + $0x20] sm:$0xff]
    %v162 = vld [vmem:[%s156 + $0x28] sm:$0xff]
    %v163 = vld [vmem:[%s156 + $0x30] sm:$0xf]
    %v164 = vld [vmem:[%s156 + $0x38] sm:$0xf]
    %v165 = vld [vmem:[%s6] sm:$0xff]
    %v166 = vld [vmem:[%s6 + $0x8] sm:$0xff]
    %v167 = vld [vmem:[%s6 + $0x10] sm:$0xff]
    %v168 = vld [vmem:[%s6 + $0x18] sm:$0xff]
    %v169 = vld [vmem:[%s6 + $0x20] sm:$0xff]
    %v170 = vld [vmem:[%s6 + $0x28] sm:$0xff]
    %v171 = vld [vmem:[%s6 + $0x30] sm:$0xff]
    %v172 = vld [vmem:[%s6 + $0x38] sm:$0xff]
    %v173 = vld [vmem:[%s6 + $0x40] sm:$0xff]
    %s174 = scalar_lea.vmem %s6, 72
    %v175 = vld [vmem:[%s174] sm:$0xff]
    %v176 = vld [vmem:[%s174 + $0x8] sm:$0xff]
    %v177 = vld [vmem:[%s174 + $0x10] sm:$0xff]
    %v178 = vld [vmem:[%s174 + $0x18] sm:$0xff]
    %v179 = vld [vmem:[%s174 + $0x20] sm:$0xff]
    %v180 = vld [vmem:[%s174 + $0x28] sm:$0xff]
    %v181 = vld [vmem:[%s174 + $0x30] sm:$0xff]
    %v182 = vld [vmem:[%s174 + $0x38] sm:$0xff]
    %v183 = vld [vmem:[%s174 + $0x40] sm:$0xff]
    %s184 = scalar_lea.vmem %s6, 144
    %v185 = vld [vmem:[%s184] sm:$0xff]
    %v186 = vld [vmem:[%s184 + $0x8] sm:$0xff]
    %v187 = vld [vmem:[%s184 + $0x10] sm:$0xff]
    %v188 = vld [vmem:[%s184 + $0x18] sm:$0xff]
    %v189 = vld [vmem:[%s184 + $0x20] sm:$0xff]
    %v190 = vld [vmem:[%s184 + $0x28] sm:$0xff]
    %v191 = vld [vmem:[%s184 + $0x30] sm:$0xff]
    %v192 = vld [vmem:[%s184 + $0x38] sm:$0xff]
    %v193 = vld [vmem:[%s184 + $0x40] sm:$0xff]
    %s194 = scalar_lea.vmem %s6, 216
    %v195 = vld [vmem:[%s194] sm:$0xff]
    %v196 = vld [vmem:[%s194 + $0x8] sm:$0xff]
    %v197 = vld [vmem:[%s194 + $0x10] sm:$0xff]
    %v198 = vld [vmem:[%s194 + $0x18] sm:$0xff]
    %v199 = vld [vmem:[%s194 + $0x20] sm:$0xff]
    %v200 = vld [vmem:[%s194 + $0x28] sm:$0xff]
    %v201 = vld [vmem:[%s194 + $0x30] sm:$0xff]
    %v202 = vld [vmem:[%s194 + $0x38] sm:$0xff]
    %v203 = vld [vmem:[%s194 + $0x40] sm:$0xff]
    %s204 = scalar_lea.vmem %s6, 288
    %v205 = vld [vmem:[%s204] sm:$0xff]
    %v206 = vld [vmem:[%s204 + $0x8] sm:$0xff]
    %v207 = vld [vmem:[%s204 + $0x10] sm:$0xff]
    %v208 = vld [vmem:[%s204 + $0x18] sm:$0xff]
    %v209 = vld [vmem:[%s204 + $0x20] sm:$0xff]
    %v210 = vld [vmem:[%s204 + $0x28] sm:$0xff]
    %v211 = vld [vmem:[%s204 + $0x30] sm:$0xff]
    %v212 = vld [vmem:[%s204 + $0x38] sm:$0xff]
    %v213 = vld [vmem:[%s204 + $0x40] sm:$0xff]
    %v214 = vld [vmem:[%s2] sm:$0x3]
    %v215 = vld [vmem:[#allocation7] sm:$0x1]
    %v216 = vld [vmem:[#allocation2] sm:$0xff]
    %v217 = vld [vmem:[#allocation2 + $0x8] sm:$0xf]
    %v218 = vld [vmem:[%s4] sm:$0xff]
    %v219 = vld [vmem:[%s4 + $0x8] sm:$0xff]
    %v220 = vld [vmem:[%s4 + $0x10] sm:$0xff]
    %v221 = vld [vmem:[%s4 + $0x18] sm:$0xff]
    %v222 = vld [vmem:[%s4 + $0x20] sm:$0xff]
    %v223 = vld [vmem:[%s4 + $0x28] sm:$0xff]
    %v224 = vld [vmem:[%s4 + $0x30] sm:$0xff]
    %v225 = vld [vmem:[%s4 + $0x38] sm:$0xff]
    %v226 = vld [vmem:[%s4 + $0x40] sm:$0xff]
    %v227 = vld [vmem:[%s4 + $0x48] sm:$0xff]
    %v228 = vld [vmem:[%s4 + $0x50] sm:$0xff]
    %v229 = vld [vmem:[%s4 + $0x58] sm:$0xff]
    %v230 = vld [vmem:[%s4 + $0x60] sm:$0xff]
    %v231 = vld [vmem:[%s4 + $0x68] sm:$0xff]
    %v232 = vld [vmem:[%s4 + $0x70] sm:$0xff]
    %v233 = vld [vmem:[%s4 + $0x78] sm:$0xff]
    %v234 = vld [vmem:[%s4 + $0x80] sm:$0xff]
    %v235 = vld [vmem:[%s4 + $0x88] sm:$0xff]
    %v236 = vld [vmem:[#allocation5] sm:$0xff]
    %v237 = vld [vmem:[#allocation5 + $0x8] sm:$0xff]
    %v238 = vld [vmem:[#allocation5 + $0x10] sm:$0xff]
    %v239 = vld [vmem:[#allocation5 + $0x18] sm:$0xff]
    %v240 = vld [vmem:[#allocation5 + $0x20] sm:$0xff]
    %v241 = vld [vmem:[#allocation5 + $0x28] sm:$0xff]
    %v242 = vld [vmem:[#allocation5 + $0x30] sm:$0xff]
    %v243 = vld [vmem:[#allocation5 + $0x38] sm:$0xff]
    %v244 = vld [vmem:[#allocation5 + $0x40] sm:$0xff]
    %v245 = vld [vmem:[#allocation5 + $0x48] sm:$0xff]
    %v246 = vld [vmem:[#allocation5 + $0x50] sm:$0xff]
    %v247 = vld [vmem:[#allocation5 + $0x58] sm:$0xff]
    %v248 = vld [vmem:[#allocation5 + $0x60] sm:$0xff]
    %v249 = vld [vmem:[#allocation5 + $0x68] sm:$0xff]
    %v250 = vld [vmem:[#allocation5 + $0x70] sm:$0xff]
    %v251 = vld [vmem:[#allocation5 + $0x78] sm:$0xff]
    %v252 = vld [vmem:[#allocation5 + $0x80] sm:$0xff]
    %v253 = vld [vmem:[#allocation5 + $0x88] sm:$0xff]
    %v254 = vld [vmem:[#allocation8] sm:$0xf]
    %v255 = vld [vmem:[%s9] sm:$0xff]
    %v256 = vld [vmem:[%s9 + $0x8] sm:$0xff]
    %v257 = vld [vmem:[%s9 + $0x10] sm:$0xff]
    %v258 = vld [vmem:[%s9 + $0x18] sm:$0xff]
    %v259 = vld [vmem:[%s9 + $0x20] sm:$0xff]
    %v260 = vld [vmem:[%s9 + $0x28] sm:$0xff]
    %v261 = vld [vmem:[%s9 + $0x30] sm:$0xff]
    %v262 = vld [vmem:[%s9 + $0x38] sm:$0xff]
    %v263 = vld [vmem:[%s9 + $0x40] sm:$0xff]
    %v264 = vld [vmem:[%s9 + $0x48] sm:$0xff]
    %v265 = vld [vmem:[%s9 + $0x50] sm:$0xff]
    %v266 = vld [vmem:[%s9 + $0x58] sm:$0xff]
    %v267 = vld [vmem:[%s10] sm:$0xff]
    %v268 = vld [vmem:[%s10 + $0x8] sm:$0xff]
    %v269 = vld [vmem:[%s10 + $0x10] sm:$0xff]
    %v270 = vld [vmem:[%s10 + $0x18] sm:$0xff]
    %v271 = vld [vmem:[%s10 + $0x20] sm:$0xff]
    %v272 = vld [vmem:[%s10 + $0x28] sm:$0xff]
    %v273 = vld [vmem:[%s10 + $0x30] sm:$0xff]
    %v274 = vld [vmem:[%s10 + $0x38] sm:$0xff]
    %v275 = vld [vmem:[%s10 + $0x40] sm:$0xff]
    %v276 = vld [vmem:[%s10 + $0x48] sm:$0xff]
    %v277 = vld [vmem:[%s10 + $0x50] sm:$0xff]
    %v278 = vld [vmem:[%s10 + $0x58] sm:$0xff]
    %v279 = vld [vmem:[%s0] sm:$0xff]
    %v280 = vld [vmem:[%s0 + $0x8] sm:$0xff]
    %v281 = vld [vmem:[%s0 + $0x10] sm:$0xff]
    %v282 = vld [vmem:[%s0 + $0x18] sm:$0xf]
    %vm287 = vcmask 1046528
    %v288 = vrot.slane %v279, 1
    %v289 = vrot.slane %v280, 1
    %v290 = vsel %vm287, %v288, %v289
    %v291 = vrot.slane %v281, 1
    %v292 = vsel %vm287, %v289, %v291
    %v293 = vrot.slane %v282, 1
    %v294 = vsel %vm287, %v291, %v293
    %vm295 = vcmask 228352
    %v296 = vsel %vm295, %v290, 0
    %v298 = vsel %vm295, %v292, 0
    %v300 = vsel %vm295, %v294, 0
    %vm302 = vcmask 1043456
    %v304 = vsel %vm302, %v136, 0
    %v307 = vsel %vm302, %v137, 0
    %309 = vmatprep.subr.mxu0 0.0
    %310 = vmatpush1.msra.mxu0 0.0
    %311 = vmatprep.subr.mxu0 0.0
    %312 = vmatpush1.msra.mxu0 0.0
    %313 = vmatprep.subr.mxu0 0.0
    %314 = vmatpush1.msra.mxu0 0.0
    %315 = vmatprep.subr.mxu0 0.0
    %316 = vmatpush1.msra.mxu0 0.0
    %317 = vmatprep.subr.mxu0 0.0
    %318 = vmatpush1.msra.mxu0 0.0
    %319 = vmatprep.subr.mxu0 0.0
    %320 = vmatpush1.msra.mxu0 0.0
    %321 = vmatprep.subr.mxu0 0.0
    %322 = vmatpush1.msra.mxu0 0.0
    %323 = vmatprep.subr.mxu0 0.0
    %324 = vmatpush1.msra.mxu0 0.0
    %325 = vmatprep.subr.mxu0 0.0
    %326 = vmatpush1.msra.mxu0 0.0
    %327 = vmatprep.subr.mxu0 0.0
    %328 = vmatpush1.msra.mxu0 0.0
    %329 = vmatprep.subr.mxu0 0.0
    %330 = vmatpush1.msra.mxu0 0.0
    %331 = vmatprep.subr.mxu0 0.0
    %332 = vmatpush1.msra.mxu0 0.0
    %333 = vmatprep.subr.mxu0 %v307
    %334 = vmatpush1.msra.mxu0 %v304
    %335 = vmatprep.subr.mxu0 %v135
    %336 = vmatpush1.msra.mxu0 %v134
    %337 = vmatprep.subr.mxu0 %v133
    %338 = vmatpush1.msra.mxu0 %v132
    %339 = vmatprep.subr.mxu0 %v131
    %340 = vmatpush1.msra.mxu0 %v130
    %341 = vmatprep.subr.mxu0 0.0
    %342 = vmatpush2.msra.mxu0 0.0
    %343 = vmatprep.subr.mxu0 0.0
    %344 = vmatpush2.msra.mxu0 0.0
    %345 = vmatprep.subr.mxu0 0.0
    %346 = vmatpush2.msra.mxu0 0.0
    %347 = vmatprep.subr.mxu0 0.0
    %348 = vmatpush2.msra.mxu0 0.0
    %349 = vmatprep.subr.mxu0 0.0
    %350 = vmatpush2.msra.mxu0 0.0
    %351 = vmatprep.subr.mxu0 0.0
    %352 = vmatpush2.msra.mxu0 0.0
    %353 = vmatprep.subr.mxu0 0.0
    %354 = vmatpush2.msra.mxu0 0.0
    %355 = vmatprep.subr.mxu0 0.0
    %356 = vmatpush2.msra.mxu0 0.0
    %357 = vmatprep.subr.mxu0 0.0
    %358 = vmatpush2.msra.mxu0 0.0
    %359 = vmatprep.subr.mxu0 0.0
    %360 = vmatpush2.msra.mxu0 0.0
    %361 = vmatprep.subr.mxu0 0.0
    %362 = vmatpush2.msra.mxu0 0.0
    %363 = vmatprep.subr.mxu0 0.0
    %364 = vmatpush2.msra.mxu0 0.0
    %365 = vmatprep.subr.mxu0 0.0
    %366 = vmatpush2.msra.mxu0 0.0
    %367 = vmatprep.subr.mxu0 0.0
    %368 = vmatpush2.msra.mxu0 0.0
    %369 = vmatprep.subr.mxu0 0.0
    %370 = vmatpush2.msra.mxu0 0.0
    %371 = vmatprep.subr.mxu0 0.0
    %372 = vmatpush2.msra.mxu0 0.0
    %373 = vmatprep.mubr.f32.mxu0 0.0
    %374 = vmatmul.mubr.f32.gmra.mxu0 %v296
    %v375 = vpop.f32.mrf.mxu0
    %v376 = vadd.f32 0.0, %v375
    %v377 = vpop.f32.mrf.mxu0
    %v378 = vadd.f32 0.0, %v377
    %379 = vmatprep.mubr.f32.mxu0 0.0
    %380 = vmatmul.mubr.f32.gmra.mxu0 %v298
    %v381 = vpop.f32.mrf.mxu0
    %v382 = vadd.f32 0.0, %v381
    %v383 = vpop.f32.mrf.mxu0
    %v384 = vadd.f32 0.0, %v383
    %385 = vmatprep.mubr.f32.mxu0 0.0
    %386 = vmatmul.mubr.f32.gmra.mxu0 %v300
    %v387 = vpop.f32.mrf.mxu0
    %v388 = vadd.f32 0.0, %v387
    %v389 = vpop.f32.mrf.mxu0
    %v390 = vadd.f32 0.0, %v389
    %391 = vdwg.mxu0
    %v392 = vsel %vm295, %v279, 0
    %v394 = vsel %vm295, %v280, 0
    %v396 = vsel %vm295, %v281, 0
    %v399 = vsel %vm302, %v127, 0
    %v402 = vsel %vm302, %v128, 0
    %404 = vmatprep.subr.mxu0 0.0
    %405 = vmatpush1.msra.mxu0 0.0
    %406 = vmatprep.subr.mxu0 0.0
    %407 = vmatpush1.msra.mxu0 0.0
    %408 = vmatprep.subr.mxu0 0.0
    %409 = vmatpush1.msra.mxu0 0.0
    %410 = vmatprep.subr.mxu0 0.0
    %411 = vmatpush1.msra.mxu0 0.0
    %412 = vmatprep.subr.mxu0 0.0
    %413 = vmatpush1.msra.mxu0 0.0
    %414 = vmatprep.subr.mxu0 0.0
    %415 = vmatpush1.msra.mxu0 0.0
    %416 = vmatprep.subr.mxu0 0.0
    %417 = vmatpush1.msra.mxu0 0.0
    %418 = vmatprep.subr.mxu0 0.0
    %419 = vmatpush1.msra.mxu0 0.0
    %420 = vmatprep.subr.mxu0 0.0
    %421 = vmatpush1.msra.mxu0 0.0
    %422 = vmatprep.subr.mxu0 0.0
    %423 = vmatpush1.msra.mxu0 0.0
    %424 = vmatprep.subr.mxu0 0.0
    %425 = vmatpush1.msra.mxu0 0.0
    %426 = vmatprep.subr.mxu0 0.0
    %427 = vmatpush1.msra.mxu0 0.0
    %428 = vmatprep.subr.mxu0 %v402
    %429 = vmatpush1.msra.mxu0 %v399
    %430 = vmatprep.subr.mxu0 %v126
    %431 = vmatpush1.msra.mxu0 %v125
    %432 = vmatprep.subr.mxu0 %v124
    %433 = vmatpush1.msra.mxu0 %v123
    %434 = vmatprep.subr.mxu0 %v122
    %435 = vmatpush1.msra.mxu0 %v121
    %436 = vmatprep.subr.mxu0 0.0
    %437 = vmatpush2.msra.mxu0 0.0
    %438 = vmatprep.subr.mxu0 0.0
    %439 = vmatpush2.msra.mxu0 0.0
    %440 = vmatprep.subr.mxu0 0.0
    %441 = vmatpush2.msra.mxu0 0.0
    %442 = vmatprep.subr.mxu0 0.0
    %443 = vmatpush2.msra.mxu0 0.0
    %444 = vmatprep.subr.mxu0 0.0
    %445 = vmatpush2.msra.mxu0 0.0
    %446 = vmatprep.subr.mxu0 0.0
    %447 = vmatpush2.msra.mxu0 0.0
    %448 = vmatprep.subr.mxu0 0.0
    %449 = vmatpush2.msra.mxu0 0.0
    %450 = vmatprep.subr.mxu0 0.0
    %451 = vmatpush2.msra.mxu0 0.0
    %452 = vmatprep.subr.mxu0 0.0
    %453 = vmatpush2.msra.mxu0 0.0
    %454 = vmatprep.subr.mxu0 0.0
    %455 = vmatpush2.msra.mxu0 0.0
    %456 = vmatprep.subr.mxu0 0.0
    %457 = vmatpush2.msra.mxu0 0.0
    %458 = vmatprep.subr.mxu0 0.0
    %459 = vmatpush2.msra.mxu0 0.0
    %460 = vmatprep.subr.mxu0 0.0
    %461 = vmatpush2.msra.mxu0 0.0
    %462 = vmatprep.subr.mxu0 0.0
    %463 = vmatpush2.msra.mxu0 0.0
    %464 = vmatprep.subr.mxu0 0.0
    %465 = vmatpush2.msra.mxu0 0.0
    %466 = vmatprep.subr.mxu0 0.0
    %467 = vmatpush2.msra.mxu0 0.0
    %468 = vmatprep.mubr.f32.mxu0 0.0
    %469 = vmatmul.mubr.f32.gmra.mxu0 %v392
    %v470 = vpop.f32.mrf.mxu0
    %v471 = vadd.f32 %v376, %v470
    %v472 = vpop.f32.mrf.mxu0
    %v473 = vadd.f32 %v378, %v472
    %474 = vmatprep.mubr.f32.mxu0 0.0
    %475 = vmatmul.mubr.f32.gmra.mxu0 %v394
    %v476 = vpop.f32.mrf.mxu0
    %v477 = vadd.f32 %v382, %v476
    %v478 = vpop.f32.mrf.mxu0
    %v479 = vadd.f32 %v384, %v478
    %480 = vmatprep.mubr.f32.mxu0 0.0
    %481 = vmatmul.mubr.f32.gmra.mxu0 %v396
    %v482 = vpop.f32.mrf.mxu0
    %v483 = vadd.f32 %v388, %v482
    %v484 = vpop.f32.mrf.mxu0
    %v485 = vadd.f32 %v390, %v484
    %486 = vdwg.mxu0
    %vm487 = vcmask 1045504
    %v488 = vrot.slane %v279, 2
    %v489 = vrot.slane %v280, 2
    %v490 = vsel %vm487, %v488, %v489
    %v491 = vrot.slane %v281, 2
    %v492 = vsel %vm487, %v489, %v491
    %v493 = vrot.slane %v282, 2
    %v494 = vsel %vm487, %v491, %v493
    %v495 = vsel %vm295, %v490, 0
    %v497 = vsel %vm295, %v492, 0
    %v499 = vsel %vm295, %v494, 0
    %v502 = vsel %vm302, %v145, 0
    %v505 = vsel %vm302, %v146, 0
    %507 = vmatprep.subr.mxu0 0.0
    %508 = vmatpush1.msra.mxu0 0.0
    %509 = vmatprep.subr.mxu0 0.0
    %510 = vmatpush1.msra.mxu0 0.0
    %511 = vmatprep.subr.mxu0 0.0
    %512 = vmatpush1.msra.mxu0 0.0
    %513 = vmatprep.subr.mxu0 0.0
    %514 = vmatpush1.msra.mxu0 0.0
    %515 = vmatprep.subr.mxu0 0.0
    %516 = vmatpush1.msra.mxu0 0.0
    %517 = vmatprep.subr.mxu0 0.0
    %518 = vmatpush1.msra.mxu0 0.0
    %519 = vmatprep.subr.mxu0 0.0
    %520 = vmatpush1.msra.mxu0 0.0
    %521 = vmatprep.subr.mxu0 0.0
    %522 = vmatpush1.msra.mxu0 0.0
    %523 = vmatprep.subr.mxu0 0.0
    %524 = vmatpush1.msra.mxu0 0.0
    %525 = vmatprep.subr.mxu0 0.0
    %526 = vmatpush1.msra.mxu0 0.0
    %527 = vmatprep.subr.mxu0 0.0
    %528 = vmatpush1.msra.mxu0 0.0
    %529 = vmatprep.subr.mxu0 0.0
    %530 = vmatpush1.msra.mxu0 0.0
    %531 = vmatprep.subr.mxu0 %v505
    %532 = vmatpush1.msra.mxu0 %v502
    %533 = vmatprep.subr.mxu0 %v144
    %534 = vmatpush1.msra.mxu0 %v143
    %535 = vmatprep.subr.mxu0 %v142
    %536 = vmatpush1.msra.mxu0 %v141
    %537 = vmatprep.subr.mxu0 %v140
    %538 = vmatpush1.msra.mxu0 %v139
    %539 = vmatprep.subr.mxu0 0.0
    %540 = vmatpush2.msra.mxu0 0.0
    %541 = vmatprep.subr.mxu0 0.0
    %542 = vmatpush2.msra.mxu0 0.0
    %543 = vmatprep.subr.mxu0 0.0
    %544 = vmatpush2.msra.mxu0 0.0
    %545 = vmatprep.subr.mxu0 0.0
    %546 = vmatpush2.msra.mxu0 0.0
    %547 = vmatprep.subr.mxu0 0.0
    %548 = vmatpush2.msra.mxu0 0.0
    %549 = vmatprep.subr.mxu0 0.0
    %550 = vmatpush2.msra.mxu0 0.0
    %551 = vmatprep.subr.mxu0 0.0
    %552 = vmatpush2.msra.mxu0 0.0
    %553 = vmatprep.subr.mxu0 0.0
    %554 = vmatpush2.msra.mxu0 0.0
    %555 = vmatprep.subr.mxu0 0.0
    %556 = vmatpush2.msra.mxu0 0.0
    %557 = vmatprep.subr.mxu0 0.0
    %558 = vmatpush2.msra.mxu0 0.0
    %559 = vmatprep.subr.mxu0 0.0
    %560 = vmatpush2.msra.mxu0 0.0
    %561 = vmatprep.subr.mxu0 0.0
    %562 = vmatpush2.msra.mxu0 0.0
    %563 = vmatprep.subr.mxu0 0.0
    %564 = vmatpush2.msra.mxu0 0.0
    %565 = vmatprep.subr.mxu0 0.0
    %566 = vmatpush2.msra.mxu0 0.0
    %567 = vmatprep.subr.mxu0 0.0
    %568 = vmatpush2.msra.mxu0 0.0
    %569 = vmatprep.subr.mxu0 0.0
    %570 = vmatpush2.msra.mxu0 0.0
    %571 = vmatprep.mubr.f32.mxu0 0.0
    %572 = vmatmul.mubr.f32.gmra.mxu0 %v495
    %v573 = vpop.f32.mrf.mxu0
    %v574 = vadd.f32 0.0, %v573
    %v575 = vpop.f32.mrf.mxu0
    %v576 = vadd.f32 0.0, %v575
    %577 = vmatprep.mubr.f32.mxu0 0.0
    %578 = vmatmul.mubr.f32.gmra.mxu0 %v497
    %v579 = vpop.f32.mrf.mxu0
    %v580 = vadd.f32 0.0, %v579
    %v581 = vpop.f32.mrf.mxu0
    %v582 = vadd.f32 0.0, %v581
    %583 = vmatprep.mubr.f32.mxu0 0.0
    %584 = vmatmul.mubr.f32.gmra.mxu0 %v499
    %v585 = vpop.f32.mrf.mxu0
    %v586 = vadd.f32 0.0, %v585
    %v587 = vpop.f32.mrf.mxu0
    %v588 = vadd.f32 0.0, %v587
    %589 = vdwg.mxu0
    %v590 = vadd.f32 %v471, %v574
    %v591 = vadd.f32 %v473, %v576
    %v592 = vadd.f32 %v477, %v580
    %v593 = vadd.f32 %v479, %v582
    %v594 = vadd.f32 %v483, %v586
    %v595 = vadd.f32 %v485, %v588
    %vm596 = vcmask 1044480
    %v597 = vrot.slane %v279, 3
    %v598 = vrot.slane %v280, 3
    %v599 = vsel %vm596, %v597, %v598
    %v600 = vrot.slane %v281, 3
    %v601 = vsel %vm596, %v598, %v600
    %v602 = vrot.slane %v282, 3
    %v603 = vsel %vm596, %v600, %v602
    %v604 = vsel %vm295, %v599, 0
    %v606 = vsel %vm295, %v601, 0
    %v608 = vsel %vm295, %v603, 0
    %v611 = vsel %vm302, %v154, 0
    %v614 = vsel %vm302, %v155, 0
    %616 = vmatprep.subr.mxu0 0.0
    %617 = vmatpush1.msra.mxu0 0.0
    %618 = vmatprep.subr.mxu0 0.0
    %619 = vmatpush1.msra.mxu0 0.0
    %620 = vmatprep.subr.mxu0 0.0
    %621 = vmatpush1.msra.mxu0 0.0
    %622 = vmatprep.subr.mxu0 0.0
    %623 = vmatpush1.msra.mxu0 0.0
    %624 = vmatprep.subr.mxu0 0.0
    %625 = vmatpush1.msra.mxu0 0.0
    %626 = vmatprep.subr.mxu0 0.0
    %627 = vmatpush1.msra.mxu0 0.0
    %628 = vmatprep.subr.mxu0 0.0
    %629 = vmatpush1.msra.mxu0 0.0
    %630 = vmatprep.subr.mxu0 0.0
    %631 = vmatpush1.msra.mxu0 0.0
    %632 = vmatprep.subr.mxu0 0.0
    %633 = vmatpush1.msra.mxu0 0.0
    %634 = vmatprep.subr.mxu0 0.0
    %635 = vmatpush1.msra.mxu0 0.0
    %636 = vmatprep.subr.mxu0 0.0
    %637 = vmatpush1.msra.mxu0 0.0
    %638 = vmatprep.subr.mxu0 0.0
    %639 = vmatpush1.msra.mxu0 0.0
    %640 = vmatprep.subr.mxu0 %v614
    %641 = vmatpush1.msra.mxu0 %v611
    %642 = vmatprep.subr.mxu0 %v153
    %643 = vmatpush1.msra.mxu0 %v152
    %644 = vmatprep.subr.mxu0 %v151
    %645 = vmatpush1.msra.mxu0 %v150
    %646 = vmatprep.subr.mxu0 %v149
    %647 = vmatpush1.msra.mxu0 %v148
    %648 = vmatprep.subr.mxu0 0.0
    %649 = vmatpush2.msra.mxu0 0.0
    %650 = vmatprep.subr.mxu0 0.0
    %651 = vmatpush2.msra.mxu0 0.0
    %652 = vmatprep.subr.mxu0 0.0
    %653 = vmatpush2.msra.mxu0 0.0
    %654 = vmatprep.subr.mxu0 0.0
    %655 = vmatpush2.msra.mxu0 0.0
    %656 = vmatprep.subr.mxu0 0.0
    %657 = vmatpush2.msra.mxu0 0.0
    %658 = vmatprep.subr.mxu0 0.0
    %659 = vmatpush2.msra.mxu0 0.0
    %660 = vmatprep.subr.mxu0 0.0
    %661 = vmatpush2.msra.mxu0 0.0
    %662 = vmatprep.subr.mxu0 0.0
    %663 = vmatpush2.msra.mxu0 0.0
    %664 = vmatprep.subr.mxu0 0.0
    %665 = vmatpush2.msra.mxu0 0.0
    %666 = vmatprep.subr.mxu0 0.0
    %667 = vmatpush2.msra.mxu0 0.0
    %668 = vmatprep.subr.mxu0 0.0
    %669 = vmatpush2.msra.mxu0 0.0
    %670 = vmatprep.subr.mxu0 0.0
    %671 = vmatpush2.msra.mxu0 0.0
    %672 = vmatprep.subr.mxu0 0.0
    %673 = vmatpush2.msra.mxu0 0.0
    %674 = vmatprep.subr.mxu0 0.0
    %675 = vmatpush2.msra.mxu0 0.0
    %676 = vmatprep.subr.mxu0 0.0
    %677 = vmatpush2.msra.mxu0 0.0
    %678 = vmatprep.subr.mxu0 0.0
    %679 = vmatpush2.msra.mxu0 0.0
    %680 = vmatprep.mubr.f32.mxu0 0.0
    %681 = vmatmul.mubr.f32.gmra.mxu0 %v604
    %v682 = vpop.f32.mrf.mxu0
    %v683 = vadd.f32 0.0, %v682
    %v684 = vpop.f32.mrf.mxu0
    %v685 = vadd.f32 0.0, %v684
    %686 = vmatprep.mubr.f32.mxu0 0.0
    %687 = vmatmul.mubr.f32.gmra.mxu0 %v606
    %v688 = vpop.f32.mrf.mxu0
    %v689 = vadd.f32 0.0, %v688
    %v690 = vpop.f32.mrf.mxu0
    %v691 = vadd.f32 0.0, %v690
    %692 = vmatprep.mubr.f32.mxu0 0.0
    %693 = vmatmul.mubr.f32.gmra.mxu0 %v608
    %v694 = vpop.f32.mrf.mxu0
    %v695 = vadd.f32 0.0, %v694
    %v696 = vpop.f32.mrf.mxu0
    %v697 = vadd.f32 0.0, %v696
    %698 = vdwg.mxu0
    %v699 = vadd.f32 %v590, %v683
    %v700 = vadd.f32 %v591, %v685
    %v701 = vadd.f32 %v592, %v689
    %v702 = vadd.f32 %v593, %v691
    %v703 = vadd.f32 %v594, %v695
    %v704 = vadd.f32 %v595, %v697
    %v705 = vrot.slane %v279, 4
    %v706 = vrot.slane %v280, 4
    %v707 = vsel %vm302, %v705, %v706
    %v708 = vrot.slane %v281, 4
    %v709 = vsel %vm302, %v706, %v708
    %v710 = vrot.slane %v282, 4
    %v711 = vsel %vm302, %v708, %v710
    %v712 = vsel %vm295, %v707, 0
    %v714 = vsel %vm295, %v709, 0
    %v716 = vsel %vm295, %v711, 0
    %v719 = vsel %vm302, %v163, 0
    %v722 = vsel %vm302, %v164, 0
    %724 = vmatprep.subr.mxu0 0.0
    %725 = vmatpush1.msra.mxu0 0.0
    %726 = vmatprep.subr.mxu0 0.0
    %727 = vmatpush1.msra.mxu0 0.0
    %728 = vmatprep.subr.mxu0 0.0
    %729 = vmatpush1.msra.mxu0 0.0
    %730 = vmatprep.subr.mxu0 0.0
    %731 = vmatpush1.msra.mxu0 0.0
    %732 = vmatprep.subr.mxu0 0.0
    %733 = vmatpush1.msra.mxu0 0.0
    %734 = vmatprep.subr.mxu0 0.0
    %735 = vmatpush1.msra.mxu0 0.0
    %736 = vmatprep.subr.mxu0 0.0
    %737 = vmatpush1.msra.mxu0 0.0
    %738 = vmatprep.subr.mxu0 0.0
    %739 = vmatpush1.msra.mxu0 0.0
    %740 = vmatprep.subr.mxu0 0.0
    %741 = vmatpush1.msra.mxu0 0.0
    %742 = vmatprep.subr.mxu0 0.0
    %743 = vmatpush1.msra.mxu0 0.0
    %744 = vmatprep.subr.mxu0 0.0
    %745 = vmatpush1.msra.mxu0 0.0
    %746 = vmatprep.subr.mxu0 0.0
    %747 = vmatpush1.msra.mxu0 0.0
    %748 = vmatprep.subr.mxu0 %v722
    %749 = vmatpush1.msra.mxu0 %v719
    %750 = vmatprep.subr.mxu0 %v162
    %751 = vmatpush1.msra.mxu0 %v161
    %752 = vmatprep.subr.mxu0 %v160
    %753 = vmatpush1.msra.mxu0 %v159
    %754 = vmatprep.subr.mxu0 %v158
    %755 = vmatpush1.msra.mxu0 %v157
    %756 = vmatprep.subr.mxu0 0.0
    %757 = vmatpush2.msra.mxu0 0.0
    %758 = vmatprep.subr.mxu0 0.0
    %759 = vmatpush2.msra.mxu0 0.0
    %760 = vmatprep.subr.mxu0 0.0
    %761 = vmatpush2.msra.mxu0 0.0
    %762 = vmatprep.subr.mxu0 0.0
    %763 = vmatpush2.msra.mxu0 0.0
    %764 = vmatprep.subr.mxu0 0.0
    %765 = vmatpush2.msra.mxu0 0.0
    %766 = vmatprep.subr.mxu0 0.0
    %767 = vmatpush2.msra.mxu0 0.0
    %768 = vmatprep.subr.mxu0 0.0
    %769 = vmatpush2.msra.mxu0 0.0
    %770 = vmatprep.subr.mxu0 0.0
    %771 = vmatpush2.msra.mxu0 0.0
    %772 = vmatprep.subr.mxu0 0.0
    %773 = vmatpush2.msra.mxu0 0.0
    %774 = vmatprep.subr.mxu0 0.0
    %775 = vmatpush2.msra.mxu0 0.0
    %776 = vmatprep.subr.mxu0 0.0
    %777 = vmatpush2.msra.mxu0 0.0
    %778 = vmatprep.subr.mxu0 0.0
    %779 = vmatpush2.msra.mxu0 0.0
    %780 = vmatprep.subr.mxu0 0.0
    %781 = vmatpush2.msra.mxu0 0.0
    %782 = vmatprep.subr.mxu0 0.0
    %783 = vmatpush2.msra.mxu0 0.0
    %784 = vmatprep.subr.mxu0 0.0
    %785 = vmatpush2.msra.mxu0 0.0
    %786 = vmatprep.subr.mxu0 0.0
    %787 = vmatpush2.msra.mxu0 0.0
    %788 = vmatprep.mubr.f32.mxu0 0.0
    %789 = vmatmul.mubr.f32.gmra.mxu0 %v712
    %v790 = vpop.f32.mrf.mxu0
    %v791 = vadd.f32 0.0, %v790
    %v792 = vpop.f32.mrf.mxu0
    %v793 = vadd.f32 0.0, %v792
    %794 = vmatprep.mubr.f32.mxu0 0.0
    %795 = vmatmul.mubr.f32.gmra.mxu0 %v714
    %v796 = vpop.f32.mrf.mxu0
    %v797 = vadd.f32 0.0, %v796
    %v798 = vpop.f32.mrf.mxu0
    %v799 = vadd.f32 0.0, %v798
    %800 = vmatprep.mubr.f32.mxu0 0.0
    %801 = vmatmul.mubr.f32.gmra.mxu0 %v716
    %v802 = vpop.f32.mrf.mxu0
    %v803 = vadd.f32 0.0, %v802
    %v804 = vpop.f32.mrf.mxu0
    %v805 = vadd.f32 0.0, %v804
    %806 = vdwg.mxu0
    %v807 = vadd.f32 %v699, %v791
    %v808 = vadd.f32 %v700, %v793
    %v809 = vadd.f32 %v701, %v797
    %v810 = vadd.f32 %v702, %v799
    %v811 = vadd.f32 %v703, %v803
    %v812 = vadd.f32 %v704, %v805
    %v814 = vlaneseq
    %v815 = vshrl.u32 %v814, 7
    %v816 = vsub.s32 0, %v815
    %v817 = vrot.slane %v214, %v816
    %v818 = vlaneseq
    %v819 = vshrl.u32 %v818, 7
    %v820 = vsub.s32 1, %v819
    %v821 = vrot.slane %v214, %v820
    %v824 = vadd.f32 %v807, %v817
    %v825 = vadd.f32 %v808, %v821
    %v826 = vadd.f32 %v809, %v817
    %v827 = vadd.f32 %v810, %v821
    %v828 = vadd.f32 %v811, %v817
    %v829 = vadd.f32 %v812, %v821
    %v836 = vrot.slane %v824, 1
    %v837 = vrot.slane %v826, 1
    %v838 = vsel %vm287, %v836, %v837
    %v839 = vrot.slane %v825, 1
    %v840 = vrot.slane %v827, 1
    %v841 = vsel %vm287, %v839, %v840
    %v842 = vrot.slane %v828, 1
    %v843 = vsel %vm287, %v837, %v842
    %v844 = vrot.slane %v829, 1
    %v845 = vsel %vm287, %v840, %v844
    %v852 = vmax.f32 %v824, %v838
    %v853 = vmax.f32 %v825, %v841
    %v854 = vmax.f32 %v826, %v843
    %v855 = vmax.f32 %v827, %v845
    %v856 = vmax.f32 %v828, %v842
    %v857 = vmax.f32 %v829, %v844
    %vm858 = vcmask 187392
    %v860 = vsel %vm858, %v216, 0
    %v863 = vsel %vm858, %v217, 0
    %v866 = vsel %vm287, %v856, 0
    %v869 = vsel %vm287, %v857, 0
    %871 = vmatprep.subr.mxu0 0.0
    %872 = vmatpush1.msra.mxu0 0.0
    %873 = vmatprep.subr.mxu0 0.0
    %874 = vmatpush1.msra.mxu0 0.0
    %875 = vmatprep.subr.mxu0 0.0
    %876 = vmatpush1.msra.mxu0 0.0
    %877 = vmatprep.subr.mxu0 0.0
    %878 = vmatpush1.msra.mxu0 0.0
    %879 = vmatprep.subr.mxu0 0.0
    %880 = vmatpush1.msra.mxu0 0.0
    %881 = vmatprep.subr.mxu0 0.0
    %882 = vmatpush1.msra.mxu0 0.0
    %883 = vmatprep.subr.mxu0 0.0
    %884 = vmatpush1.msra.mxu0 0.0
    %885 = vmatprep.subr.mxu0 0.0
    %886 = vmatpush1.msra.mxu0 0.0
    %887 = vmatprep.subr.mxu0 0.0
    %888 = vmatpush1.msra.mxu0 0.0
    %889 = vmatprep.subr.mxu0 0.0
    %890 = vmatpush1.msra.mxu0 0.0
    %891 = vmatprep.subr.mxu0 0.0
    %892 = vmatpush1.msra.mxu0 0.0
    %893 = vmatprep.subr.mxu0 0.0
    %894 = vmatpush1.msra.mxu0 0.0
    %895 = vmatprep.subr.mxu0 0.0
    %896 = vmatpush1.msra.mxu0 0.0
    %897 = vmatprep.subr.mxu0 %v869
    %898 = vmatpush1.msra.mxu0 %v866
    %899 = vmatprep.subr.mxu0 %v855
    %900 = vmatpush1.msra.mxu0 %v854
    %901 = vmatprep.subr.mxu0 %v853
    %902 = vmatpush1.msra.mxu0 %v852
    %903 = vmatprep.subr.mxu0 0.0
    %904 = vmatpush2.msra.mxu0 0.0
    %905 = vmatprep.subr.mxu0 0.0
    %906 = vmatpush2.msra.mxu0 0.0
    %907 = vmatprep.subr.mxu0 0.0
    %908 = vmatpush2.msra.mxu0 0.0
    %909 = vmatprep.subr.mxu0 0.0
    %910 = vmatpush2.msra.mxu0 0.0
    %911 = vmatprep.subr.mxu0 0.0
    %912 = vmatpush2.msra.mxu0 0.0
    %913 = vmatprep.subr.mxu0 0.0
    %914 = vmatpush2.msra.mxu0 0.0
    %915 = vmatprep.subr.mxu0 0.0
    %916 = vmatpush2.msra.mxu0 0.0
    %917 = vmatprep.subr.mxu0 0.0
    %918 = vmatpush2.msra.mxu0 0.0
    %919 = vmatprep.subr.mxu0 0.0
    %920 = vmatpush2.msra.mxu0 0.0
    %921 = vmatprep.subr.mxu0 0.0
    %922 = vmatpush2.msra.mxu0 0.0
    %923 = vmatprep.subr.mxu0 0.0
    %924 = vmatpush2.msra.mxu0 0.0
    %925 = vmatprep.subr.mxu0 0.0
    %926 = vmatpush2.msra.mxu0 0.0
    %927 = vmatprep.subr.mxu0 0.0
    %928 = vmatpush2.msra.mxu0 0.0
    %929 = vmatprep.subr.mxu0 0.0
    %930 = vmatpush2.msra.mxu0 0.0
    %931 = vmatprep.subr.mxu0 0.0
    %932 = vmatpush2.msra.mxu0 0.0
    %933 = vmatprep.subr.mxu0 0.0
    %934 = vmatpush2.msra.mxu0 0.0
    %935 = vmatprep.mubr.f32.mxu0 0.0
    %936 = vmatmul.mubr.f32.gmra.mxu0 %v860
    %v937 = vpop.f32.mrf.mxu0
    %v938 = vadd.f32 0.0, %v937
    %v939 = vpop.f32.mrf.mxu0
    %v940 = vadd.f32 0.0, %v939
    %941 = vmatprep.mubr.f32.mxu0 0.0
    %942 = vmatmul.mubr.f32.gmra.mxu0 %v863
    %v943 = vpop.f32.mrf.mxu0
    %v944 = vadd.f32 0.0, %v943
    %v945 = vpop.f32.mrf.mxu0
    %v946 = vadd.f32 0.0, %v945
    %947 = vdwg.mxu0
    %vm948 = vcmask 130048
    %v950 = vsel %vm948, %v940, 0
    %v953 = vsel %vm948, %v946, 0
    %955 = vmatprep.subr.mxu0 0.0
    %956 = vmatpush1.msra.mxu0 %v233
    %957 = vmatprep.subr.mxu0 0.0
    %958 = vmatpush1.msra.mxu0 %v232
    %959 = vmatprep.subr.mxu0 0.0
    %960 = vmatpush1.msra.mxu0 %v231
    %961 = vmatprep.subr.mxu0 0.0
    %962 = vmatpush1.msra.mxu0 %v230
    %963 = vmatprep.subr.mxu0 0.0
    %964 = vmatpush1.msra.mxu0 %v229
    %965 = vmatprep.subr.mxu0 0.0
    %966 = vmatpush1.msra.mxu0 %v228
    %967 = vmatprep.subr.mxu0 0.0
    %968 = vmatpush1.msra.mxu0 %v227
    %969 = vmatprep.subr.mxu0 0.0
    %970 = vmatpush1.msra.mxu0 %v226
    %971 = vmatprep.subr.mxu0 0.0
    %972 = vmatpush1.msra.mxu0 %v225
    %973 = vmatprep.subr.mxu0 0.0
    %974 = vmatpush1.msra.mxu0 %v224
    %975 = vmatprep.subr.mxu0 0.0
    %976 = vmatpush1.msra.mxu0 %v223
    %977 = vmatprep.subr.mxu0 0.0
    %978 = vmatpush1.msra.mxu0 %v222
    %979 = vmatprep.subr.mxu0 0.0
    %980 = vmatpush1.msra.mxu0 %v221
    %981 = vmatprep.subr.mxu0 0.0
    %982 = vmatpush1.msra.mxu0 %v220
    %983 = vmatprep.subr.mxu0 0.0
    %984 = vmatpush1.msra.mxu0 %v219
    %985 = vmatprep.subr.mxu0 0.0
    %986 = vmatpush1.msra.mxu0 %v218
    %987 = vmatprep.subr.mxu0 0.0
    %988 = vmatpush2.msra.mxu0 0.0
    %989 = vmatprep.subr.mxu0 0.0
    %990 = vmatpush2.msra.mxu0 0.0
    %991 = vmatprep.subr.mxu0 0.0
    %992 = vmatpush2.msra.mxu0 0.0
    %993 = vmatprep.subr.mxu0 0.0
    %994 = vmatpush2.msra.mxu0 0.0
    %995 = vmatprep.subr.mxu0 0.0
    %996 = vmatpush2.msra.mxu0 0.0
    %997 = vmatprep.subr.mxu0 0.0
    %998 = vmatpush2.msra.mxu0 0.0
    %999 = vmatprep.subr.mxu0 0.0
    %1000 = vmatpush2.msra.mxu0 0.0
    %1001 = vmatprep.subr.mxu0 0.0
    %1002 = vmatpush2.msra.mxu0 0.0
    %1003 = vmatprep.subr.mxu0 0.0
    %1004 = vmatpush2.msra.mxu0 0.0
    %1005 = vmatprep.subr.mxu0 0.0
    %1006 = vmatpush2.msra.mxu0 0.0
    %1007 = vmatprep.subr.mxu0 0.0
    %1008 = vmatpush2.msra.mxu0 0.0
    %1009 = vmatprep.subr.mxu0 0.0
    %1010 = vmatpush2.msra.mxu0 0.0
    %1011 = vmatprep.subr.mxu0 0.0
    %1012 = vmatpush2.msra.mxu0 0.0
    %1013 = vmatprep.subr.mxu0 0.0
    %1014 = vmatpush2.msra.mxu0 0.0
    %1015 = vmatprep.subr.mxu0 0.0
    %1016 = vmatpush2.msra.mxu0 %v235
    %1017 = vmatprep.subr.mxu0 0.0
    %1018 = vmatpush2.msra.mxu0 %v234
    %1019 = vmatprep.mubr.f32.mxu0 %v950
    %1020 = vmatmul.mubr.f32.gmra.mxu0 %v938
    %v1021 = vpop.f32.mrf.mxu0
    %v1022 = vadd.f32 0.0, %v1021
    %v1023 = vpop.f32.mrf.mxu0
    %1024 = vmatprep.mubr.f32.mxu0 %v953
    %1025 = vmatmul.mubr.f32.gmra.mxu0 %v944
    %v1026 = vpop.f32.mrf.mxu0
    %v1027 = vadd.f32 0.0, %v1026
    %v1028 = vpop.f32.mrf.mxu0
    %1029 = vdwg.mxu0
    %1030 = vmatprep.subr.mxu0 0.0
    %1031 = vmatpush1.msra.mxu0 %v251
    %1032 = vmatprep.subr.mxu0 0.0
    %1033 = vmatpush1.msra.mxu0 %v250
    %1034 = vmatprep.subr.mxu0 0.0
    %1035 = vmatpush1.msra.mxu0 %v249
    %1036 = vmatprep.subr.mxu0 0.0
    %1037 = vmatpush1.msra.mxu0 %v248
    %1038 = vmatprep.subr.mxu0 0.0
    %1039 = vmatpush1.msra.mxu0 %v247
    %1040 = vmatprep.subr.mxu0 0.0
    %1041 = vmatpush1.msra.mxu0 %v246
    %1042 = vmatprep.subr.mxu0 0.0
    %1043 = vmatpush1.msra.mxu0 %v245
    %1044 = vmatprep.subr.mxu0 0.0
    %1045 = vmatpush1.msra.mxu0 %v244
    %1046 = vmatprep.subr.mxu0 0.0
    %1047 = vmatpush1.msra.mxu0 %v243
    %1048 = vmatprep.subr.mxu0 0.0
    %1049 = vmatpush1.msra.mxu0 %v242
    %1050 = vmatprep.subr.mxu0 0.0
    %1051 = vmatpush1.msra.mxu0 %v241
    %1052 = vmatprep.subr.mxu0 0.0
    %1053 = vmatpush1.msra.mxu0 %v240
    %1054 = vmatprep.subr.mxu0 0.0
    %1055 = vmatpush1.msra.mxu0 %v239
    %1056 = vmatprep.subr.mxu0 0.0
    %1057 = vmatpush1.msra.mxu0 %v238
    %1058 = vmatprep.subr.mxu0 0.0
    %1059 = vmatpush1.msra.mxu0 %v237
    %1060 = vmatprep.subr.mxu0 0.0
    %1061 = vmatpush1.msra.mxu0 %v236
    %1062 = vmatprep.subr.mxu0 0.0
    %1063 = vmatpush2.msra.mxu0 0.0
    %1064 = vmatprep.subr.mxu0 0.0
    %1065 = vmatpush2.msra.mxu0 0.0
    %1066 = vmatprep.subr.mxu0 0.0
    %1067 = vmatpush2.msra.mxu0 0.0
    %1068 = vmatprep.subr.mxu0 0.0
    %1069 = vmatpush2.msra.mxu0 0.0
    %1070 = vmatprep.subr.mxu0 0.0
    %1071 = vmatpush2.msra.mxu0 0.0
    %1072 = vmatprep.subr.mxu0 0.0
    %1073 = vmatpush2.msra.mxu0 0.0
    %1074 = vmatprep.subr.mxu0 0.0
    %1075 = vmatpush2.msra.mxu0 0.0
    %1076 = vmatprep.subr.mxu0 0.0
    %1077 = vmatpush2.msra.mxu0 0.0
    %1078 = vmatprep.subr.mxu0 0.0
    %1079 = vmatpush2.msra.mxu0 0.0
    %1080 = vmatprep.subr.mxu0 0.0
    %1081 = vmatpush2.msra.mxu0 0.0
    %1082 = vmatprep.subr.mxu0 0.0
    %1083 = vmatpush2.msra.mxu0 0.0
    %1084 = vmatprep.subr.mxu0 0.0
    %1085 = vmatpush2.msra.mxu0 0.0
    %1086 = vmatprep.subr.mxu0 0.0
    %1087 = vmatpush2.msra.mxu0 0.0
    %1088 = vmatprep.subr.mxu0 0.0
    %1089 = vmatpush2.msra.mxu0 0.0
    %1090 = vmatprep.subr.mxu0 0.0
    %1091 = vmatpush2.msra.mxu0 %v253
    %1092 = vmatprep.subr.mxu0 0.0
    %1093 = vmatpush2.msra.mxu0 %v252
    %1094 = vmatprep.mubr.f32.mxu0 %v950
    %1095 = vmatmul.mubr.f32.gmra.mxu0 %v938
    %v1096 = vpop.f32.mrf.mxu0
    %v1097 = vadd.f32 0.0, %v1096
    %v1098 = vpop.f32.mrf.mxu0
    %1099 = vmatprep.mubr.f32.mxu0 %v953
    %1100 = vmatmul.mubr.f32.gmra.mxu0 %v944
    %v1101 = vpop.f32.mrf.mxu0
    %v1102 = vadd.f32 0.0, %v1101
    %v1103 = vpop.f32.mrf.mxu0
    %1104 = vdwg.mxu0
    %v1105 = vmax.f32 %v1022, %v1097
    %v1106 = vmax.f32 %v1027, %v1102
    %v1109 = vrot.slane %v1105, 1
    %v1110 = vrot.slane %v1106, 1
    %v1111 = vsel %vm287, %v1109, %v1110
    %vm1112 = vcmask 588800
    %v1113 = vsel %vm1112, %v1111, 0
    %1115 = vmatprep.subr.mxu0 0.0
    %1116 = vmatpush1.msra.mxu0 0.0
    %1117 = vmatprep.subr.mxu0 0.0
    %1118 = vmatpush1.msra.mxu0 0.0
    %1119 = vmatprep.subr.mxu0 0.0
    %1120 = vmatpush1.msra.mxu0 0.0
    %1121 = vmatprep.subr.mxu0 0.0
    %1122 = vmatpush1.msra.mxu0 0.0
    %1123 = vmatprep.subr.mxu0 0.0
    %1124 = vmatpush1.msra.mxu0 0.0
    %1125 = vmatprep.subr.mxu0 0.0
    %1126 = vmatpush1.msra.mxu0 0.0
    %1127 = vmatprep.subr.mxu0 0.0
    %1128 = vmatpush1.msra.mxu0 0.0
    %1129 = vmatprep.subr.mxu0 0.0
    %1130 = vmatpush1.msra.mxu0 %v183
    %1131 = vmatprep.subr.mxu0 0.0
    %1132 = vmatpush1.msra.mxu0 %v182
    %1133 = vmatprep.subr.mxu0 0.0
    %1134 = vmatpush1.msra.mxu0 %v181
    %1135 = vmatprep.subr.mxu0 0.0
    %1136 = vmatpush1.msra.mxu0 %v180
    %1137 = vmatprep.subr.mxu0 0.0
    %1138 = vmatpush1.msra.mxu0 %v179
    %1139 = vmatprep.subr.mxu0 0.0
    %1140 = vmatpush1.msra.mxu0 %v178
    %1141 = vmatprep.subr.mxu0 0.0
    %1142 = vmatpush1.msra.mxu0 %v177
    %1143 = vmatprep.subr.mxu0 0.0
    %1144 = vmatpush1.msra.mxu0 %v176
    %1145 = vmatprep.subr.mxu0 0.0
    %1146 = vmatpush1.msra.mxu0 %v175
    %1147 = vmatprep.subr.mxu0 0.0
    %1148 = vmatpush2.msra.mxu0 0.0
    %1149 = vmatprep.subr.mxu0 0.0
    %1150 = vmatpush2.msra.mxu0 0.0
    %1151 = vmatprep.subr.mxu0 0.0
    %1152 = vmatpush2.msra.mxu0 0.0
    %1153 = vmatprep.subr.mxu0 0.0
    %1154 = vmatpush2.msra.mxu0 0.0
    %1155 = vmatprep.subr.mxu0 0.0
    %1156 = vmatpush2.msra.mxu0 0.0
    %1157 = vmatprep.subr.mxu0 0.0
    %1158 = vmatpush2.msra.mxu0 0.0
    %1159 = vmatprep.subr.mxu0 0.0
    %1160 = vmatpush2.msra.mxu0 0.0
    %1161 = vmatprep.subr.mxu0 0.0
    %1162 = vmatpush2.msra.mxu0 0.0
    %1163 = vmatprep.subr.mxu0 0.0
    %1164 = vmatpush2.msra.mxu0 0.0
    %1165 = vmatprep.subr.mxu0 0.0
    %1166 = vmatpush2.msra.mxu0 0.0
    %1167 = vmatprep.subr.mxu0 0.0
    %1168 = vmatpush2.msra.mxu0 0.0
    %1169 = vmatprep.subr.mxu0 0.0
    %1170 = vmatpush2.msra.mxu0 0.0
    %1171 = vmatprep.subr.mxu0 0.0
    %1172 = vmatpush2.msra.mxu0 0.0
    %1173 = vmatprep.subr.mxu0 0.0
    %1174 = vmatpush2.msra.mxu0 0.0
    %1175 = vmatprep.subr.mxu0 0.0
    %1176 = vmatpush2.msra.mxu0 0.0
    %1177 = vmatprep.subr.mxu0 0.0
    %1178 = vmatpush2.msra.mxu0 0.0
    %1179 = vmatprep.mubr.f32.mxu0 0.0
    %1180 = vmatmul.mubr.f32.gmra.mxu0 %v1113
    %v1181 = vpop.f32.mrf.mxu0
    %v1182 = vadd.f32 0.0, %v1181
    %v1183 = vpop.f32.mrf.mxu0
    %1184 = vdwg.mxu0
    %v1185 = vsel %vm1112, %v1105, 0
    %1187 = vmatprep.subr.mxu0 0.0
    %1188 = vmatpush1.msra.mxu0 0.0
    %1189 = vmatprep.subr.mxu0 0.0
    %1190 = vmatpush1.msra.mxu0 0.0
    %1191 = vmatprep.subr.mxu0 0.0
    %1192 = vmatpush1.msra.mxu0 0.0
    %1193 = vmatprep.subr.mxu0 0.0
    %1194 = vmatpush1.msra.mxu0 0.0
    %1195 = vmatprep.subr.mxu0 0.0
    %1196 = vmatpush1.msra.mxu0 0.0
    %1197 = vmatprep.subr.mxu0 0.0
    %1198 = vmatpush1.msra.mxu0 0.0
    %1199 = vmatprep.subr.mxu0 0.0
    %1200 = vmatpush1.msra.mxu0 0.0
    %1201 = vmatprep.subr.mxu0 0.0
    %1202 = vmatpush1.msra.mxu0 %v173
    %1203 = vmatprep.subr.mxu0 0.0
    %1204 = vmatpush1.msra.mxu0 %v172
    %1205 = vmatprep.subr.mxu0 0.0
    %1206 = vmatpush1.msra.mxu0 %v171
    %1207 = vmatprep.subr.mxu0 0.0
    %1208 = vmatpush1.msra.mxu0 %v170
    %1209 = vmatprep.subr.mxu0 0.0
    %1210 = vmatpush1.msra.mxu0 %v169
    %1211 = vmatprep.subr.mxu0 0.0
    %1212 = vmatpush1.msra.mxu0 %v168
    %1213 = vmatprep.subr.mxu0 0.0
    %1214 = vmatpush1.msra.mxu0 %v167
    %1215 = vmatprep.subr.mxu0 0.0
    %1216 = vmatpush1.msra.mxu0 %v166
    %1217 = vmatprep.subr.mxu0 0.0
    %1218 = vmatpush1.msra.mxu0 %v165
    %1219 = vmatprep.subr.mxu0 0.0
    %1220 = vmatpush2.msra.mxu0 0.0
    %1221 = vmatprep.subr.mxu0 0.0
    %1222 = vmatpush2.msra.mxu0 0.0
    %1223 = vmatprep.subr.mxu0 0.0
    %1224 = vmatpush2.msra.mxu0 0.0
    %1225 = vmatprep.subr.mxu0 0.0
    %1226 = vmatpush2.msra.mxu0 0.0
    %1227 = vmatprep.subr.mxu0 0.0
    %1228 = vmatpush2.msra.mxu0 0.0
    %1229 = vmatprep.subr.mxu0 0.0
    %1230 = vmatpush2.msra.mxu0 0.0
    %1231 = vmatprep.subr.mxu0 0.0
    %1232 = vmatpush2.msra.mxu0 0.0
    %1233 = vmatprep.subr.mxu0 0.0
    %1234 = vmatpush2.msra.mxu0 0.0
    %1235 = vmatprep.subr.mxu0 0.0
    %1236 = vmatpush2.msra.mxu0 0.0
    %1237 = vmatprep.subr.mxu0 0.0
    %1238 = vmatpush2.msra.mxu0 0.0
    %1239 = vmatprep.subr.mxu0 0.0
    %1240 = vmatpush2.msra.mxu0 0.0
    %1241 = vmatprep.subr.mxu0 0.0
    %1242 = vmatpush2.msra.mxu0 0.0
    %1243 = vmatprep.subr.mxu0 0.0
    %1244 = vmatpush2.msra.mxu0 0.0
    %1245 = vmatprep.subr.mxu0 0.0
    %1246 = vmatpush2.msra.mxu0 0.0
    %1247 = vmatprep.subr.mxu0 0.0
    %1248 = vmatpush2.msra.mxu0 0.0
    %1249 = vmatprep.subr.mxu0 0.0
    %1250 = vmatpush2.msra.mxu0 0.0
    %1251 = vmatprep.mubr.f32.mxu0 0.0
    %1252 = vmatmul.mubr.f32.gmra.mxu0 %v1185
    %v1253 = vpop.f32.mrf.mxu0
    %v1254 = vadd.f32 %v1182, %v1253
    %v1255 = vpop.f32.mrf.mxu0
    %1256 = vdwg.mxu0
    %v1257 = vrot.slane %v1105, 2
    %v1258 = vrot.slane %v1106, 2
    %v1259 = vsel %vm487, %v1257, %v1258
    %v1260 = vsel %vm1112, %v1259, 0
    %1262 = vmatprep.subr.mxu0 0.0
    %1263 = vmatpush1.msra.mxu0 0.0
    %1264 = vmatprep.subr.mxu0 0.0
    %1265 = vmatpush1.msra.mxu0 0.0
    %1266 = vmatprep.subr.mxu0 0.0
    %1267 = vmatpush1.msra.mxu0 0.0
    %1268 = vmatprep.subr.mxu0 0.0
    %1269 = vmatpush1.msra.mxu0 0.0
    %1270 = vmatprep.subr.mxu0 0.0
    %1271 = vmatpush1.msra.mxu0 0.0
    %1272 = vmatprep.subr.mxu0 0.0
    %1273 = vmatpush1.msra.mxu0 0.0
    %1274 = vmatprep.subr.mxu0 0.0
    %1275 = vmatpush1.msra.mxu0 0.0
    %1276 = vmatprep.subr.mxu0 0.0
    %1277 = vmatpush1.msra.mxu0 %v193
    %1278 = vmatprep.subr.mxu0 0.0
    %1279 = vmatpush1.msra.mxu0 %v192
    %1280 = vmatprep.subr.mxu0 0.0
    %1281 = vmatpush1.msra.mxu0 %v191
    %1282 = vmatprep.subr.mxu0 0.0
    %1283 = vmatpush1.msra.mxu0 %v190
    %1284 = vmatprep.subr.mxu0 0.0
    %1285 = vmatpush1.msra.mxu0 %v189
    %1286 = vmatprep.subr.mxu0 0.0
    %1287 = vmatpush1.msra.mxu0 %v188
    %1288 = vmatprep.subr.mxu0 0.0
    %1289 = vmatpush1.msra.mxu0 %v187
    %1290 = vmatprep.subr.mxu0 0.0
    %1291 = vmatpush1.msra.mxu0 %v186
    %1292 = vmatprep.subr.mxu0 0.0
    %1293 = vmatpush1.msra.mxu0 %v185
    %1294 = vmatprep.subr.mxu0 0.0
    %1295 = vmatpush2.msra.mxu0 0.0
    %1296 = vmatprep.subr.mxu0 0.0
    %1297 = vmatpush2.msra.mxu0 0.0
    %1298 = vmatprep.subr.mxu0 0.0
    %1299 = vmatpush2.msra.mxu0 0.0
    %1300 = vmatprep.subr.mxu0 0.0
    %1301 = vmatpush2.msra.mxu0 0.0
    %1302 = vmatprep.subr.mxu0 0.0
    %1303 = vmatpush2.msra.mxu0 0.0
    %1304 = vmatprep.subr.mxu0 0.0
    %1305 = vmatpush2.msra.mxu0 0.0
    %1306 = vmatprep.subr.mxu0 0.0
    %1307 = vmatpush2.msra.mxu0 0.0
    %1308 = vmatprep.subr.mxu0 0.0
    %1309 = vmatpush2.msra.mxu0 0.0
    %1310 = vmatprep.subr.mxu0 0.0
    %1311 = vmatpush2.msra.mxu0 0.0
    %1312 = vmatprep.subr.mxu0 0.0
    %1313 = vmatpush2.msra.mxu0 0.0
    %1314 = vmatprep.subr.mxu0 0.0
    %1315 = vmatpush2.msra.mxu0 0.0
    %1316 = vmatprep.subr.mxu0 0.0
    %1317 = vmatpush2.msra.mxu0 0.0
    %1318 = vmatprep.subr.mxu0 0.0
    %1319 = vmatpush2.msra.mxu0 0.0
    %1320 = vmatprep.subr.mxu0 0.0
    %1321 = vmatpush2.msra.mxu0 0.0
    %1322 = vmatprep.subr.mxu0 0.0
    %1323 = vmatpush2.msra.mxu0 0.0
    %1324 = vmatprep.subr.mxu0 0.0
    %1325 = vmatpush2.msra.mxu0 0.0
    %1326 = vmatprep.mubr.f32.mxu0 0.0
    %1327 = vmatmul.mubr.f32.gmra.mxu0 %v1260
    %v1328 = vpop.f32.mrf.mxu0
    %v1329 = vadd.f32 0.0, %v1328
    %v1330 = vpop.f32.mrf.mxu0
    %1331 = vdwg.mxu0
    %v1332 = vadd.f32 %v1254, %v1329
    %v1333 = vrot.slane %v1105, 3
    %v1334 = vrot.slane %v1106, 3
    %v1335 = vsel %vm596, %v1333, %v1334
    %v1336 = vsel %vm1112, %v1335, 0
    %1338 = vmatprep.subr.mxu0 0.0
    %1339 = vmatpush1.msra.mxu0 0.0
    %1340 = vmatprep.subr.mxu0 0.0
    %1341 = vmatpush1.msra.mxu0 0.0
    %1342 = vmatprep.subr.mxu0 0.0
    %1343 = vmatpush1.msra.mxu0 0.0
    %1344 = vmatprep.subr.mxu0 0.0
    %1345 = vmatpush1.msra.mxu0 0.0
    %1346 = vmatprep.subr.mxu0 0.0
    %1347 = vmatpush1.msra.mxu0 0.0
    %1348 = vmatprep.subr.mxu0 0.0
    %1349 = vmatpush1.msra.mxu0 0.0
    %1350 = vmatprep.subr.mxu0 0.0
    %1351 = vmatpush1.msra.mxu0 0.0
    %1352 = vmatprep.subr.mxu0 0.0
    %1353 = vmatpush1.msra.mxu0 %v203
    %1354 = vmatprep.subr.mxu0 0.0
    %1355 = vmatpush1.msra.mxu0 %v202
    %1356 = vmatprep.subr.mxu0 0.0
    %1357 = vmatpush1.msra.mxu0 %v201
    %1358 = vmatprep.subr.mxu0 0.0
    %1359 = vmatpush1.msra.mxu0 %v200
    %1360 = vmatprep.subr.mxu0 0.0
    %1361 = vmatpush1.msra.mxu0 %v199
    %1362 = vmatprep.subr.mxu0 0.0
    %1363 = vmatpush1.msra.mxu0 %v198
    %1364 = vmatprep.subr.mxu0 0.0
    %1365 = vmatpush1.msra.mxu0 %v197
    %1366 = vmatprep.subr.mxu0 0.0
    %1367 = vmatpush1.msra.mxu0 %v196
    %1368 = vmatprep.subr.mxu0 0.0
    %1369 = vmatpush1.msra.mxu0 %v195
    %1370 = vmatprep.subr.mxu0 0.0
    %1371 = vmatpush2.msra.mxu0 0.0
    %1372 = vmatprep.subr.mxu0 0.0
    %1373 = vmatpush2.msra.mxu0 0.0
    %1374 = vmatprep.subr.mxu0 0.0
    %1375 = vmatpush2.msra.mxu0 0.0
    %1376 = vmatprep.subr.mxu0 0.0
    %1377 = vmatpush2.msra.mxu0 0.0
    %1378 = vmatprep.subr.mxu0 0.0
    %1379 = vmatpush2.msra.mxu0 0.0
    %1380 = vmatprep.subr.mxu0 0.0
    %1381 = vmatpush2.msra.mxu0 0.0
    %1382 = vmatprep.subr.mxu0 0.0
    %1383 = vmatpush2.msra.mxu0 0.0
    %1384 = vmatprep.subr.mxu0 0.0
    %1385 = vmatpush2.msra.mxu0 0.0
    %1386 = vmatprep.subr.mxu0 0.0
    %1387 = vmatpush2.msra.mxu0 0.0
    %1388 = vmatprep.subr.mxu0 0.0
    %1389 = vmatpush2.msra.mxu0 0.0
    %1390 = vmatprep.subr.mxu0 0.0
    %1391 = vmatpush2.msra.mxu0 0.0
    %1392 = vmatprep.subr.mxu0 0.0
    %1393 = vmatpush2.msra.mxu0 0.0
    %1394 = vmatprep.subr.mxu0 0.0
    %1395 = vmatpush2.msra.mxu0 0.0
    %1396 = vmatprep.subr.mxu0 0.0
    %1397 = vmatpush2.msra.mxu0 0.0
    %1398 = vmatprep.subr.mxu0 0.0
    %1399 = vmatpush2.msra.mxu0 0.0
    %1400 = vmatprep.subr.mxu0 0.0
    %1401 = vmatpush2.msra.mxu0 0.0
    %1402 = vmatprep.mubr.f32.mxu0 0.0
    %1403 = vmatmul.mubr.f32.gmra.mxu0 %v1336
    %v1404 = vpop.f32.mrf.mxu0
    %v1405 = vadd.f32 0.0, %v1404
    %v1406 = vpop.f32.mrf.mxu0
    %1407 = vdwg.mxu0
    %v1408 = vadd.f32 %v1332, %v1405
    %v1409 = vrot.slane %v1105, 4
    %v1410 = vrot.slane %v1106, 4
    %v1411 = vsel %vm302, %v1409, %v1410
    %v1412 = vsel %vm1112, %v1411, 0
    %1414 = vmatprep.subr.mxu0 0.0
    %1415 = vmatpush1.msra.mxu0 0.0
    %1416 = vmatprep.subr.mxu0 0.0
    %1417 = vmatpush1.msra.mxu0 0.0
    %1418 = vmatprep.subr.mxu0 0.0
    %1419 = vmatpush1.msra.mxu0 0.0
    %1420 = vmatprep.subr.mxu0 0.0
    %1421 = vmatpush1.msra.mxu0 0.0
    %1422 = vmatprep.subr.mxu0 0.0
    %1423 = vmatpush1.msra.mxu0 0.0
    %1424 = vmatprep.subr.mxu0 0.0
    %1425 = vmatpush1.msra.mxu0 0.0
    %1426 = vmatprep.subr.mxu0 0.0
    %1427 = vmatpush1.msra.mxu0 0.0
    %1428 = vmatprep.subr.mxu0 0.0
    %1429 = vmatpush1.msra.mxu0 %v213
    %1430 = vmatprep.subr.mxu0 0.0
    %1431 = vmatpush1.msra.mxu0 %v212
    %1432 = vmatprep.subr.mxu0 0.0
    %1433 = vmatpush1.msra.mxu0 %v211
    %1434 = vmatprep.subr.mxu0 0.0
    %1435 = vmatpush1.msra.mxu0 %v210
    %1436 = vmatprep.subr.mxu0 0.0
    %1437 = vmatpush1.msra.mxu0 %v209
    %1438 = vmatprep.subr.mxu0 0.0
    %1439 = vmatpush1.msra.mxu0 %v208
    %1440 = vmatprep.subr.mxu0 0.0
    %1441 = vmatpush1.msra.mxu0 %v207
    %1442 = vmatprep.subr.mxu0 0.0
    %1443 = vmatpush1.msra.mxu0 %v206
    %1444 = vmatprep.subr.mxu0 0.0
    %1445 = vmatpush1.msra.mxu0 %v205
    %1446 = vmatprep.subr.mxu0 0.0
    %1447 = vmatpush2.msra.mxu0 0.0
    %1448 = vmatprep.subr.mxu0 0.0
    %1449 = vmatpush2.msra.mxu0 0.0
    %1450 = vmatprep.subr.mxu0 0.0
    %1451 = vmatpush2.msra.mxu0 0.0
    %1452 = vmatprep.subr.mxu0 0.0
    %1453 = vmatpush2.msra.mxu0 0.0
    %1454 = vmatprep.subr.mxu0 0.0
    %1455 = vmatpush2.msra.mxu0 0.0
    %1456 = vmatprep.subr.mxu0 0.0
    %1457 = vmatpush2.msra.mxu0 0.0
    %1458 = vmatprep.subr.mxu0 0.0
    %1459 = vmatpush2.msra.mxu0 0.0
    %1460 = vmatprep.subr.mxu0 0.0
    %1461 = vmatpush2.msra.mxu0 0.0
    %1462 = vmatprep.subr.mxu0 0.0
    %1463 = vmatpush2.msra.mxu0 0.0
    %1464 = vmatprep.subr.mxu0 0.0
    %1465 = vmatpush2.msra.mxu0 0.0
    %1466 = vmatprep.subr.mxu0 0.0
    %1467 = vmatpush2.msra.mxu0 0.0
    %1468 = vmatprep.subr.mxu0 0.0
    %1469 = vmatpush2.msra.mxu0 0.0
    %1470 = vmatprep.subr.mxu0 0.0
    %1471 = vmatpush2.msra.mxu0 0.0
    %1472 = vmatprep.subr.mxu0 0.0
    %1473 = vmatpush2.msra.mxu0 0.0
    %1474 = vmatprep.subr.mxu0 0.0
    %1475 = vmatpush2.msra.mxu0 0.0
    %1476 = vmatprep.subr.mxu0 0.0
    %1477 = vmatpush2.msra.mxu0 0.0
    %1478 = vmatprep.mubr.f32.mxu0 0.0
    %1479 = vmatmul.mubr.f32.gmra.mxu0 %v1412
    %v1480 = vpop.f32.mrf.mxu0
    %v1481 = vadd.f32 0.0, %v1480
    %v1482 = vpop.f32.mrf.mxu0
    %1483 = vdwg.mxu0
    %v1484 = vadd.f32 %v1408, %v1481
    %v1486 = vlaneseq
    %v1487 = vshrl.u32 %v1486, 7
    %v1488 = vsub.s32 0, %v1487
    %v1489 = vrot.slane %v215, %v1488
    %v1491 = vadd.f32 %v1484, %v1489
    %v1493 = vrot.slane %v1491, 1
    %v1495 = vmax.f32 %v1491, %v1493
    %vm1496 = vcmask 56320
    %v1498 = vsel %vm1496, %v254, 0
    %v1501 = vsel %vm287, %v1495, 0
    %1503 = vmatprep.subr.mxu0 0.0
    %1504 = vmatpush1.msra.mxu0 0.0
    %1505 = vmatprep.subr.mxu0 0.0
    %1506 = vmatpush1.msra.mxu0 0.0
    %1507 = vmatprep.subr.mxu0 0.0
    %1508 = vmatpush1.msra.mxu0 0.0
    %1509 = vmatprep.subr.mxu0 0.0
    %1510 = vmatpush1.msra.mxu0 0.0
    %1511 = vmatprep.subr.mxu0 0.0
    %1512 = vmatpush1.msra.mxu0 0.0
    %1513 = vmatprep.subr.mxu0 0.0
    %1514 = vmatpush1.msra.mxu0 0.0
    %1515 = vmatprep.subr.mxu0 0.0
    %1516 = vmatpush1.msra.mxu0 0.0
    %1517 = vmatprep.subr.mxu0 0.0
    %1518 = vmatpush1.msra.mxu0 0.0
    %1519 = vmatprep.subr.mxu0 0.0
    %1520 = vmatpush1.msra.mxu0 0.0
    %1521 = vmatprep.subr.mxu0 0.0
    %1522 = vmatpush1.msra.mxu0 0.0
    %1523 = vmatprep.subr.mxu0 0.0
    %1524 = vmatpush1.msra.mxu0 0.0
    %1525 = vmatprep.subr.mxu0 0.0
    %1526 = vmatpush1.msra.mxu0 0.0
    %1527 = vmatprep.subr.mxu0 0.0
    %1528 = vmatpush1.msra.mxu0 0.0
    %1529 = vmatprep.subr.mxu0 0.0
    %1530 = vmatpush1.msra.mxu0 0.0
    %1531 = vmatprep.subr.mxu0 0.0
    %1532 = vmatpush1.msra.mxu0 0.0
    %1533 = vmatprep.subr.mxu0 0.0
    %1534 = vmatpush1.msra.mxu0 %v1501
    %1535 = vmatprep.subr.mxu0 0.0
    %1536 = vmatpush2.msra.mxu0 0.0
    %1537 = vmatprep.subr.mxu0 0.0
    %1538 = vmatpush2.msra.mxu0 0.0
    %1539 = vmatprep.subr.mxu0 0.0
    %1540 = vmatpush2.msra.mxu0 0.0
    %1541 = vmatprep.subr.mxu0 0.0
    %1542 = vmatpush2.msra.mxu0 0.0
    %1543 = vmatprep.subr.mxu0 0.0
    %1544 = vmatpush2.msra.mxu0 0.0
    %1545 = vmatprep.subr.mxu0 0.0
    %1546 = vmatpush2.msra.mxu0 0.0
    %1547 = vmatprep.subr.mxu0 0.0
    %1548 = vmatpush2.msra.mxu0 0.0
    %1549 = vmatprep.subr.mxu0 0.0
    %1550 = vmatpush2.msra.mxu0 0.0
    %1551 = vmatprep.subr.mxu0 0.0
    %1552 = vmatpush2.msra.mxu0 0.0
    %1553 = vmatprep.subr.mxu0 0.0
    %1554 = vmatpush2.msra.mxu0 0.0
    %1555 = vmatprep.subr.mxu0 0.0
    %1556 = vmatpush2.msra.mxu0 0.0
    %1557 = vmatprep.subr.mxu0 0.0
    %1558 = vmatpush2.msra.mxu0 0.0
    %1559 = vmatprep.subr.mxu0 0.0
    %1560 = vmatpush2.msra.mxu0 0.0
    %1561 = vmatprep.subr.mxu0 0.0
    %1562 = vmatpush2.msra.mxu0 0.0
    %1563 = vmatprep.subr.mxu0 0.0
    %1564 = vmatpush2.msra.mxu0 0.0
    %1565 = vmatprep.subr.mxu0 0.0
    %1566 = vmatpush2.msra.mxu0 0.0
    %1567 = vmatprep.mubr.f32.mxu0 0.0
    %1568 = vmatmul.mubr.f32.gmra.mxu0 %v1498
    %v1569 = vpop.f32.mrf.mxu0
    %v1570 = vadd.f32 0.0, %v1569
    %v1571 = vpop.f32.mrf.mxu0
    %1572 = vdwg.mxu0
    %vm1573 = vcmask 785408
    %v1575 = vsel %vm1573, %v1570, 0
    %1577 = vmatprep.subr.mxu0 0.0
    %1578 = vmatpush1.msra.mxu0 0.0
    %1579 = vmatprep.subr.mxu0 0.0
    %1580 = vmatpush1.msra.mxu0 0.0
    %1581 = vmatprep.subr.mxu0 0.0
    %1582 = vmatpush1.msra.mxu0 0.0
    %1583 = vmatprep.subr.mxu0 0.0
    %1584 = vmatpush1.msra.mxu0 0.0
    %1585 = vmatprep.subr.mxu0 0.0
    %1586 = vmatpush1.msra.mxu0 %v266
    %1587 = vmatprep.subr.mxu0 0.0
    %1588 = vmatpush1.msra.mxu0 %v265
    %1589 = vmatprep.subr.mxu0 0.0
    %1590 = vmatpush1.msra.mxu0 %v264
    %1591 = vmatprep.subr.mxu0 0.0
    %1592 = vmatpush1.msra.mxu0 %v263
    %1593 = vmatprep.subr.mxu0 0.0
    %1594 = vmatpush1.msra.mxu0 %v262
    %1595 = vmatprep.subr.mxu0 0.0
    %1596 = vmatpush1.msra.mxu0 %v261
    %1597 = vmatprep.subr.mxu0 0.0
    %1598 = vmatpush1.msra.mxu0 %v260
    %1599 = vmatprep.subr.mxu0 0.0
    %1600 = vmatpush1.msra.mxu0 %v259
    %1601 = vmatprep.subr.mxu0 0.0
    %1602 = vmatpush1.msra.mxu0 %v258
    %1603 = vmatprep.subr.mxu0 0.0
    %1604 = vmatpush1.msra.mxu0 %v257
    %1605 = vmatprep.subr.mxu0 0.0
    %1606 = vmatpush1.msra.mxu0 %v256
    %1607 = vmatprep.subr.mxu0 0.0
    %1608 = vmatpush1.msra.mxu0 %v255
    %1609 = vmatprep.subr.mxu0 0.0
    %1610 = vmatpush2.msra.mxu0 0.0
    %1611 = vmatprep.subr.mxu0 0.0
    %1612 = vmatpush2.msra.mxu0 0.0
    %1613 = vmatprep.subr.mxu0 0.0
    %1614 = vmatpush2.msra.mxu0 0.0
    %1615 = vmatprep.subr.mxu0 0.0
    %1616 = vmatpush2.msra.mxu0 0.0
    %1617 = vmatprep.subr.mxu0 0.0
    %1618 = vmatpush2.msra.mxu0 0.0
    %1619 = vmatprep.subr.mxu0 0.0
    %1620 = vmatpush2.msra.mxu0 0.0
    %1621 = vmatprep.subr.mxu0 0.0
    %1622 = vmatpush2.msra.mxu0 0.0
    %1623 = vmatprep.subr.mxu0 0.0
    %1624 = vmatpush2.msra.mxu0 0.0
    %1625 = vmatprep.subr.mxu0 0.0
    %1626 = vmatpush2.msra.mxu0 0.0
    %1627 = vmatprep.subr.mxu0 0.0
    %1628 = vmatpush2.msra.mxu0 0.0
    %1629 = vmatprep.subr.mxu0 0.0
    %1630 = vmatpush2.msra.mxu0 0.0
    %1631 = vmatprep.subr.mxu0 0.0
    %1632 = vmatpush2.msra.mxu0 0.0
    %1633 = vmatprep.subr.mxu0 0.0
    %1634 = vmatpush2.msra.mxu0 0.0
    %1635 = vmatprep.subr.mxu0 0.0
    %1636 = vmatpush2.msra.mxu0 0.0
    %1637 = vmatprep.subr.mxu0 0.0
    %1638 = vmatpush2.msra.mxu0 0.0
    %1639 = vmatprep.subr.mxu0 0.0
    %1640 = vmatpush2.msra.mxu0 0.0
    %1641 = vmatprep.mubr.f32.mxu0 0.0
    %1642 = vmatmul.mubr.f32.gmra.mxu0 %v1575
    %v1643 = vpop.f32.mrf.mxu0
    %v1644 = vadd.f32 0.0, %v1643
    %v1645 = vpop.f32.mrf.mxu0
    %1646 = vdwg.mxu0
    %1647 = vmatprep.subr.mxu0 0.0
    %1648 = vmatpush1.msra.mxu0 0.0
    %1649 = vmatprep.subr.mxu0 0.0
    %1650 = vmatpush1.msra.mxu0 0.0
    %1651 = vmatprep.subr.mxu0 0.0
    %1652 = vmatpush1.msra.mxu0 0.0
    %1653 = vmatprep.subr.mxu0 0.0
    %1654 = vmatpush1.msra.mxu0 0.0
    %1655 = vmatprep.subr.mxu0 0.0
    %1656 = vmatpush1.msra.mxu0 %v278
    %1657 = vmatprep.subr.mxu0 0.0
    %1658 = vmatpush1.msra.mxu0 %v277
    %1659 = vmatprep.subr.mxu0 0.0
    %1660 = vmatpush1.msra.mxu0 %v276
    %1661 = vmatprep.subr.mxu0 0.0
    %1662 = vmatpush1.msra.mxu0 %v275
    %1663 = vmatprep.subr.mxu0 0.0
    %1664 = vmatpush1.msra.mxu0 %v274
    %1665 = vmatprep.subr.mxu0 0.0
    %1666 = vmatpush1.msra.mxu0 %v273
    %1667 = vmatprep.subr.mxu0 0.0
    %1668 = vmatpush1.msra.mxu0 %v272
    %1669 = vmatprep.subr.mxu0 0.0
    %1670 = vmatpush1.msra.mxu0 %v271
    %1671 = vmatprep.subr.mxu0 0.0
    %1672 = vmatpush1.msra.mxu0 %v270
    %1673 = vmatprep.subr.mxu0 0.0
    %1674 = vmatpush1.msra.mxu0 %v269
    %1675 = vmatprep.subr.mxu0 0.0
    %1676 = vmatpush1.msra.mxu0 %v268
    %1677 = vmatprep.subr.mxu0 0.0
    %1678 = vmatpush1.msra.mxu0 %v267
    %1679 = vmatprep.subr.mxu0 0.0
    %1680 = vmatpush2.msra.mxu0 0.0
    %1681 = vmatprep.subr.mxu0 0.0
    %1682 = vmatpush2.msra.mxu0 0.0
    %1683 = vmatprep.subr.mxu0 0.0
    %1684 = vmatpush2.msra.mxu0 0.0
    %1685 = vmatprep.subr.mxu0 0.0
    %1686 = vmatpush2.msra.mxu0 0.0
    %1687 = vmatprep.subr.mxu0 0.0
    %1688 = vmatpush2.msra.mxu0 0.0
    %1689 = vmatprep.subr.mxu0 0.0
    %1690 = vmatpush2.msra.mxu0 0.0
    %1691 = vmatprep.subr.mxu0 0.0
    %1692 = vmatpush2.msra.mxu0 0.0
    %1693 = vmatprep.subr.mxu0 0.0
    %1694 = vmatpush2.msra.mxu0 0.0
    %1695 = vmatprep.subr.mxu0 0.0
    %1696 = vmatpush2.msra.mxu0 0.0
    %1697 = vmatprep.subr.mxu0 0.0
    %1698 = vmatpush2.msra.mxu0 0.0
    %1699 = vmatprep.subr.mxu0 0.0
    %1700 = vmatpush2.msra.mxu0 0.0
    %1701 = vmatprep.subr.mxu0 0.0
    %1702 = vmatpush2.msra.mxu0 0.0
    %1703 = vmatprep.subr.mxu0 0.0
    %1704 = vmatpush2.msra.mxu0 0.0
    %1705 = vmatprep.subr.mxu0 0.0
    %1706 = vmatpush2.msra.mxu0 0.0
    %1707 = vmatprep.subr.mxu0 0.0
    %1708 = vmatpush2.msra.mxu0 0.0
    %1709 = vmatprep.subr.mxu0 0.0
    %1710 = vmatpush2.msra.mxu0 0.0
    %1711 = vmatprep.mubr.f32.mxu0 0.0
    %1712 = vmatmul.mubr.f32.gmra.mxu0 %v1575
    %v1713 = vpop.f32.mrf.mxu0
    %v1714 = vadd.f32 0.0, %v1713
    %v1715 = vpop.f32.mrf.mxu0
    %1716 = vdwg.mxu0
    %v1717 = vmax.f32 %v1644, %v1714
    %v1719 = vrot.slane %v1717, 1
    %1720 = vrot.lane.b32.xlu0 %v1719, 48
    %v1721 = vpop.permute.xlu0 %1720
    %v1723 = vrot.slane %v1717, 2
    %1724 = vrot.lane.b32.xlu0 %v1723, 96
    %v1725 = vpop.permute.xlu0 %1724
    %v1727 = vrot.slane %v1717, 3
    %1728 = vrot.lane.b32.xlu0 %v1727, 16
    %v1729 = vpop.permute.xlu0 %1728
    %vm1731 = vcmask 392192
    %v1732 = vsel %vm1731, %v1717, %v1721
    %v1733 = vsel %vm1573, %v1732, %v1725
    %v1734 = vsel %vm948, %v1725, %v1729
    %s1735 = scalar_lea.vmem %s0, 32
    %v1736 = vld [vmem:[%s1735] sm:$0xff]
    %v1737 = vld [vmem:[%s1735 + $0x8] sm:$0xff]
    %v1738 = vld [vmem:[%s1735 + $0x10] sm:$0xff]
    %v1739 = vld [vmem:[%s1735 + $0x18] sm:$0xf]
    %v1744 = vrot.slane %v1736, 1
    %v1745 = vrot.slane %v1737, 1
    %v1746 = vsel %vm287, %v1744, %v1745
    %v1747 = vrot.slane %v1738, 1
    %v1748 = vsel %vm287, %v1745, %v1747
    %v1749 = vrot.slane %v1739, 1
    %v1750 = vsel %vm287, %v1747, %v1749
    %v1751 = vsel %vm295, %v1746, 0
    %v1753 = vsel %vm295, %v1748, 0
    %v1755 = vsel %vm295, %v1750, 0
    %1757 = vmatprep.subr.mxu0 0.0
    %1758 = vmatpush1.msra.mxu0 0.0
    %1759 = vmatprep.subr.mxu0 0.0
    %1760 = vmatpush1.msra.mxu0 0.0
    %1761 = vmatprep.subr.mxu0 0.0
    %1762 = vmatpush1.msra.mxu0 0.0
    %1763 = vmatprep.subr.mxu0 0.0
    %1764 = vmatpush1.msra.mxu0 0.0
    %1765 = vmatprep.subr.mxu0 0.0
    %1766 = vmatpush1.msra.mxu0 0.0
    %1767 = vmatprep.subr.mxu0 0.0
    %1768 = vmatpush1.msra.mxu0 0.0
    %1769 = vmatprep.subr.mxu0 0.0
    %1770 = vmatpush1.msra.mxu0 0.0
    %1771 = vmatprep.subr.mxu0 0.0
    %1772 = vmatpush1.msra.mxu0 0.0
    %1773 = vmatprep.subr.mxu0 0.0
    %1774 = vmatpush1.msra.mxu0 0.0
    %1775 = vmatprep.subr.mxu0 0.0
    %1776 = vmatpush1.msra.mxu0 0.0
    %1777 = vmatprep.subr.mxu0 0.0
    %1778 = vmatpush1.msra.mxu0 0.0
    %1779 = vmatprep.subr.mxu0 0.0
    %1780 = vmatpush1.msra.mxu0 0.0
    %1781 = vmatprep.subr.mxu0 %v307
    %1782 = vmatpush1.msra.mxu0 %v304
    %1783 = vmatprep.subr.mxu0 %v135
    %1784 = vmatpush1.msra.mxu0 %v134
    %1785 = vmatprep.subr.mxu0 %v133
    %1786 = vmatpush1.msra.mxu0 %v132
    %1787 = vmatprep.subr.mxu0 %v131
    %1788 = vmatpush1.msra.mxu0 %v130
    %1789 = vmatprep.subr.mxu0 0.0
    %1790 = vmatpush2.msra.mxu0 0.0
    %1791 = vmatprep.subr.mxu0 0.0
    %1792 = vmatpush2.msra.mxu0 0.0
    %1793 = vmatprep.subr.mxu0 0.0
    %1794 = vmatpush2.msra.mxu0 0.0
    %1795 = vmatprep.subr.mxu0 0.0
    %1796 = vmatpush2.msra.mxu0 0.0
    %1797 = vmatprep.subr.mxu0 0.0
    %1798 = vmatpush2.msra.mxu0 0.0
    %1799 = vmatprep.subr.mxu0 0.0
    %1800 = vmatpush2.msra.mxu0 0.0
    %1801 = vmatprep.subr.mxu0 0.0
    %1802 = vmatpush2.msra.mxu0 0.0
    %1803 = vmatprep.subr.mxu0 0.0
    %1804 = vmatpush2.msra.mxu0 0.0
    %1805 = vmatprep.subr.mxu0 0.0
    %1806 = vmatpush2.msra.mxu0 0.0
    %1807 = vmatprep.subr.mxu0 0.0
    %1808 = vmatpush2.msra.mxu0 0.0
    %1809 = vmatprep.subr.mxu0 0.0
    %1810 = vmatpush2.msra.mxu0 0.0
    %1811 = vmatprep.subr.mxu0 0.0
    %1812 = vmatpush2.msra.mxu0 0.0
    %1813 = vmatprep.subr.mxu0 0.0
    %1814 = vmatpush2.msra.mxu0 0.0
    %1815 = vmatprep.subr.mxu0 0.0
    %1816 = vmatpush2.msra.mxu0 0.0
    %1817 = vmatprep.subr.mxu0 0.0
    %1818 = vmatpush2.msra.mxu0 0.0
    %1819 = vmatprep.subr.mxu0 0.0
    %1820 = vmatpush2.msra.mxu0 0.0
    %1821 = vmatprep.mubr.f32.mxu0 0.0
    %1822 = vmatmul.mubr.f32.gmra.mxu0 %v1751
    %v1823 = vpop.f32.mrf.mxu0
    %v1824 = vadd.f32 0.0, %v1823
    %v1825 = vpop.f32.mrf.mxu0
    %v1826 = vadd.f32 0.0, %v1825
    %1827 = vmatprep.mubr.f32.mxu0 0.0
    %1828 = vmatmul.mubr.f32.gmra.mxu0 %v1753
    %v1829 = vpop.f32.mrf.mxu0
    %v1830 = vadd.f32 0.0, %v1829
    %v1831 = vpop.f32.mrf.mxu0
    %v1832 = vadd.f32 0.0, %v1831
    %1833 = vmatprep.mubr.f32.mxu0 0.0
    %1834 = vmatmul.mubr.f32.gmra.mxu0 %v1755
    %v1835 = vpop.f32.mrf.mxu0
    %v1836 = vadd.f32 0.0, %v1835
    %v1837 = vpop.f32.mrf.mxu0
    %v1838 = vadd.f32 0.0, %v1837
    %1839 = vdwg.mxu0
    %v1840 = vsel %vm295, %v1736, 0
    %v1842 = vsel %vm295, %v1737, 0
    %v1844 = vsel %vm295, %v1738, 0
    %1846 = vmatprep.subr.mxu0 0.0
    %1847 = vmatpush1.msra.mxu0 0.0
    %1848 = vmatprep.subr.mxu0 0.0
    %1849 = vmatpush1.msra.mxu0 0.0
    %1850 = vmatprep.subr.mxu0 0.0
    %1851 = vmatpush1.msra.mxu0 0.0
    %1852 = vmatprep.subr.mxu0 0.0
    %1853 = vmatpush1.msra.mxu0 0.0
    %1854 = vmatprep.subr.mxu0 0.0
    %1855 = vmatpush1.msra.mxu0 0.0
    %1856 = vmatprep.subr.mxu0 0.0
    %1857 = vmatpush1.msra.mxu0 0.0
    %1858 = vmatprep.subr.mxu0 0.0
    %1859 = vmatpush1.msra.mxu0 0.0
    %1860 = vmatprep.subr.mxu0 0.0
    %1861 = vmatpush1.msra.mxu0 0.0
    %1862 = vmatprep.subr.mxu0 0.0
    %1863 = vmatpush1.msra.mxu0 0.0
    %1864 = vmatprep.subr.mxu0 0.0
    %1865 = vmatpush1.msra.mxu0 0.0
    %1866 = vmatprep.subr.mxu0 0.0
    %1867 = vmatpush1.msra.mxu0 0.0
    %1868 = vmatprep.subr.mxu0 0.0
    %1869 = vmatpush1.msra.mxu0 0.0
    %1870 = vmatprep.subr.mxu0 %v402
    %1871 = vmatpush1.msra.mxu0 %v399
    %1872 = vmatprep.subr.mxu0 %v126
    %1873 = vmatpush1.msra.mxu0 %v125
    %1874 = vmatprep.subr.mxu0 %v124
    %1875 = vmatpush1.msra.mxu0 %v123
    %1876 = vmatprep.subr.mxu0 %v122
    %1877 = vmatpush1.msra.mxu0 %v121
    %1878 = vmatprep.subr.mxu0 0.0
    %1879 = vmatpush2.msra.mxu0 0.0
    %1880 = vmatprep.subr.mxu0 0.0
    %1881 = vmatpush2.msra.mxu0 0.0
    %1882 = vmatprep.subr.mxu0 0.0
    %1883 = vmatpush2.msra.mxu0 0.0
    %1884 = vmatprep.subr.mxu0 0.0
    %1885 = vmatpush2.msra.mxu0 0.0
    %1886 = vmatprep.subr.mxu0 0.0
    %1887 = vmatpush2.msra.mxu0 0.0
    %1888 = vmatprep.subr.mxu0 0.0
    %1889 = vmatpush2.msra.mxu0 0.0
    %1890 = vmatprep.subr.mxu0 0.0
    %1891 = vmatpush2.msra.mxu0 0.0
    %1892 = vmatprep.subr.mxu0 0.0
    %1893 = vmatpush2.msra.mxu0 0.0
    %1894 = vmatprep.subr.mxu0 0.0
    %1895 = vmatpush2.msra.mxu0 0.0
    %1896 = vmatprep.subr.mxu0 0.0
    %1897 = vmatpush2.msra.mxu0 0.0
    %1898 = vmatprep.subr.mxu0 0.0
    %1899 = vmatpush2.msra.mxu0 0.0
    %1900 = vmatprep.subr.mxu0 0.0
    %1901 = vmatpush2.msra.mxu0 0.0
    %1902 = vmatprep.subr.mxu0 0.0
    %1903 = vmatpush2.msra.mxu0 0.0
    %1904 = vmatprep.subr.mxu0 0.0
    %1905 = vmatpush2.msra.mxu0 0.0
    %1906 = vmatprep.subr.mxu0 0.0
    %1907 = vmatpush2.msra.mxu0 0.0
    %1908 = vmatprep.subr.mxu0 0.0
    %1909 = vmatpush2.msra.mxu0 0.0
    %1910 = vmatprep.mubr.f32.mxu0 0.0
    %1911 = vmatmul.mubr.f32.gmra.mxu0 %v1840
    %v1912 = vpop.f32.mrf.mxu0
    %v1913 = vadd.f32 %v1824, %v1912
    %v1914 = vpop.f32.mrf.mxu0
    %v1915 = vadd.f32 %v1826, %v1914
    %1916 = vmatprep.mubr.f32.mxu0 0.0
    %1917 = vmatmul.mubr.f32.gmra.mxu0 %v1842
    %v1918 = vpop.f32.mrf.mxu0
    %v1919 = vadd.f32 %v1830, %v1918
    %v1920 = vpop.f32.mrf.mxu0
    %v1921 = vadd.f32 %v1832, %v1920
    %1922 = vmatprep.mubr.f32.mxu0 0.0
    %1923 = vmatmul.mubr.f32.gmra.mxu0 %v1844
    %v1924 = vpop.f32.mrf.mxu0
    %v1925 = vadd.f32 %v1836, %v1924
    %v1926 = vpop.f32.mrf.mxu0
    %v1927 = vadd.f32 %v1838, %v1926
    %1928 = vdwg.mxu0
    %v1929 = vrot.slane %v1736, 2
    %v1930 = vrot.slane %v1737, 2
    %v1931 = vsel %vm487, %v1929, %v1930
    %v1932 = vrot.slane %v1738, 2
    %v1933 = vsel %vm487, %v1930, %v1932
    %v1934 = vrot.slane %v1739, 2
    %v1935 = vsel %vm487, %v1932, %v1934
    %v1936 = vsel %vm295, %v1931, 0
    %v1938 = vsel %vm295, %v1933, 0
    %v1940 = vsel %vm295, %v1935, 0
    %1942 = vmatprep.subr.mxu0 0.0
    %1943 = vmatpush1.msra.mxu0 0.0
    %1944 = vmatprep.subr.mxu0 0.0
    %1945 = vmatpush1.msra.mxu0 0.0
    %1946 = vmatprep.subr.mxu0 0.0
    %1947 = vmatpush1.msra.mxu0 0.0
    %1948 = vmatprep.subr.mxu0 0.0
    %1949 = vmatpush1.msra.mxu0 0.0
    %1950 = vmatprep.subr.mxu0 0.0
    %1951 = vmatpush1.msra.mxu0 0.0
    %1952 = vmatprep.subr.mxu0 0.0
    %1953 = vmatpush1.msra.mxu0 0.0
    %1954 = vmatprep.subr.mxu0 0.0
    %1955 = vmatpush1.msra.mxu0 0.0
    %1956 = vmatprep.subr.mxu0 0.0
    %1957 = vmatpush1.msra.mxu0 0.0
    %1958 = vmatprep.subr.mxu0 0.0
    %1959 = vmatpush1.msra.mxu0 0.0
    %1960 = vmatprep.subr.mxu0 0.0
    %1961 = vmatpush1.msra.mxu0 0.0
    %1962 = vmatprep.subr.mxu0 0.0
    %1963 = vmatpush1.msra.mxu0 0.0
    %1964 = vmatprep.subr.mxu0 0.0
    %1965 = vmatpush1.msra.mxu0 0.0
    %1966 = vmatprep.subr.mxu0 %v505
    %1967 = vmatpush1.msra.mxu0 %v502
    %1968 = vmatprep.subr.mxu0 %v144
    %1969 = vmatpush1.msra.mxu0 %v143
    %1970 = vmatprep.subr.mxu0 %v142
    %1971 = vmatpush1.msra.mxu0 %v141
    %1972 = vmatprep.subr.mxu0 %v140
    %1973 = vmatpush1.msra.mxu0 %v139
    %1974 = vmatprep.subr.mxu0 0.0
    %1975 = vmatpush2.msra.mxu0 0.0
    %1976 = vmatprep.subr.mxu0 0.0
    %1977 = vmatpush2.msra.mxu0 0.0
    %1978 = vmatprep.subr.mxu0 0.0
    %1979 = vmatpush2.msra.mxu0 0.0
    %1980 = vmatprep.subr.mxu0 0.0
    %1981 = vmatpush2.msra.mxu0 0.0
    %1982 = vmatprep.subr.mxu0 0.0
    %1983 = vmatpush2.msra.mxu0 0.0
    %1984 = vmatprep.subr.mxu0 0.0
    %1985 = vmatpush2.msra.mxu0 0.0
    %1986 = vmatprep.subr.mxu0 0.0
    %1987 = vmatpush2.msra.mxu0 0.0
    %1988 = vmatprep.subr.mxu0 0.0
    %1989 = vmatpush2.msra.mxu0 0.0
    %1990 = vmatprep.subr.mxu0 0.0
    %1991 = vmatpush2.msra.mxu0 0.0
    %1992 = vmatprep.subr.mxu0 0.0
    %1993 = vmatpush2.msra.mxu0 0.0
    %1994 = vmatprep.subr.mxu0 0.0
    %1995 = vmatpush2.msra.mxu0 0.0
    %1996 = vmatprep.subr.mxu0 0.0
    %1997 = vmatpush2.msra.mxu0 0.0
    %1998 = vmatprep.subr.mxu0 0.0
    %1999 = vmatpush2.msra.mxu0 0.0
    %2000 = vmatprep.subr.mxu0 0.0
    %2001 = vmatpush2.msra.mxu0 0.0
    %2002 = vmatprep.subr.mxu0 0.0
    %2003 = vmatpush2.msra.mxu0 0.0
    %2004 = vmatprep.subr.mxu0 0.0
    %2005 = vmatpush2.msra.mxu0 0.0
    %2006 = vmatprep.mubr.f32.mxu0 0.0
    %2007 = vmatmul.mubr.f32.gmra.mxu0 %v1936
    %v2008 = vpop.f32.mrf.mxu0
    %v2009 = vadd.f32 0.0, %v2008
    %v2010 = vpop.f32.mrf.mxu0
    %v2011 = vadd.f32 0.0, %v2010
    %2012 = vmatprep.mubr.f32.mxu0 0.0
    %2013 = vmatmul.mubr.f32.gmra.mxu0 %v1938
    %v2014 = vpop.f32.mrf.mxu0
    %v2015 = vadd.f32 0.0, %v2014
    %v2016 = vpop.f32.mrf.mxu0
    %v2017 = vadd.f32 0.0, %v2016
    %2018 = vmatprep.mubr.f32.mxu0 0.0
    %2019 = vmatmul.mubr.f32.gmra.mxu0 %v1940
    %v2020 = vpop.f32.mrf.mxu0
    %v2021 = vadd.f32 0.0, %v2020
    %v2022 = vpop.f32.mrf.mxu0
    %v2023 = vadd.f32 0.0, %v2022
    %2024 = vdwg.mxu0
    %v2025 = vadd.f32 %v1913, %v2009
    %v2026 = vadd.f32 %v1915, %v2011
    %v2027 = vadd.f32 %v1919, %v2015
    %v2028 = vadd.f32 %v1921, %v2017
    %v2029 = vadd.f32 %v1925, %v2021
    %v2030 = vadd.f32 %v1927, %v2023
    %v2031 = vrot.slane %v1736, 3
    %v2032 = vrot.slane %v1737, 3
    %v2033 = vsel %vm596, %v2031, %v2032
    %v2034 = vrot.slane %v1738, 3
    %v2035 = vsel %vm596, %v2032, %v2034
    %v2036 = vrot.slane %v1739, 3
    %v2037 = vsel %vm596, %v2034, %v2036
    %v2038 = vsel %vm295, %v2033, 0
    %v2040 = vsel %vm295, %v2035, 0
    %v2042 = vsel %vm295, %v2037, 0
    %2044 = vmatprep.subr.mxu0 0.0
    %2045 = vmatpush1.msra.mxu0 0.0
    %2046 = vmatprep.subr.mxu0 0.0
    %2047 = vmatpush1.msra.mxu0 0.0
    %2048 = vmatprep.subr.mxu0 0.0
    %2049 = vmatpush1.msra.mxu0 0.0
    %2050 = vmatprep.subr.mxu0 0.0
    %2051 = vmatpush1.msra.mxu0 0.0
    %2052 = vmatprep.subr.mxu0 0.0
    %2053 = vmatpush1.msra.mxu0 0.0
    %2054 = vmatprep.subr.mxu0 0.0
    %2055 = vmatpush1.msra.mxu0 0.0
    %2056 = vmatprep.subr.mxu0 0.0
    %2057 = vmatpush1.msra.mxu0 0.0
    %2058 = vmatprep.subr.mxu0 0.0
    %2059 = vmatpush1.msra.mxu0 0.0
    %2060 = vmatprep.subr.mxu0 0.0
    %2061 = vmatpush1.msra.mxu0 0.0
    %2062 = vmatprep.subr.mxu0 0.0
    %2063 = vmatpush1.msra.mxu0 0.0
    %2064 = vmatprep.subr.mxu0 0.0
    %2065 = vmatpush1.msra.mxu0 0.0
    %2066 = vmatprep.subr.mxu0 0.0
    %2067 = vmatpush1.msra.mxu0 0.0
    %2068 = vmatprep.subr.mxu0 %v614
    %2069 = vmatpush1.msra.mxu0 %v611
    %2070 = vmatprep.subr.mxu0 %v153
    %2071 = vmatpush1.msra.mxu0 %v152
    %2072 = vmatprep.subr.mxu0 %v151
    %2073 = vmatpush1.msra.mxu0 %v150
    %2074 = vmatprep.subr.mxu0 %v149
    %2075 = vmatpush1.msra.mxu0 %v148
    %2076 = vmatprep.subr.mxu0 0.0
    %2077 = vmatpush2.msra.mxu0 0.0
    %2078 = vmatprep.subr.mxu0 0.0
    %2079 = vmatpush2.msra.mxu0 0.0
    %2080 = vmatprep.subr.mxu0 0.0
    %2081 = vmatpush2.msra.mxu0 0.0
    %2082 = vmatprep.subr.mxu0 0.0
    %2083 = vmatpush2.msra.mxu0 0.0
    %2084 = vmatprep.subr.mxu0 0.0
    %2085 = vmatpush2.msra.mxu0 0.0
    %2086 = vmatprep.subr.mxu0 0.0
    %2087 = vmatpush2.msra.mxu0 0.0
    %2088 = vmatprep.subr.mxu0 0.0
    %2089 = vmatpush2.msra.mxu0 0.0
    %2090 = vmatprep.subr.mxu0 0.0
    %2091 = vmatpush2.msra.mxu0 0.0
    %2092 = vmatprep.subr.mxu0 0.0
    %2093 = vmatpush2.msra.mxu0 0.0
    %2094 = vmatprep.subr.mxu0 0.0
    %2095 = vmatpush2.msra.mxu0 0.0
    %2096 = vmatprep.subr.mxu0 0.0
    %2097 = vmatpush2.msra.mxu0 0.0
    %2098 = vmatprep.subr.mxu0 0.0
    %2099 = vmatpush2.msra.mxu0 0.0
    %2100 = vmatprep.subr.mxu0 0.0
    %2101 = vmatpush2.msra.mxu0 0.0
    %2102 = vmatprep.subr.mxu0 0.0
    %2103 = vmatpush2.msra.mxu0 0.0
    %2104 = vmatprep.subr.mxu0 0.0
    %2105 = vmatpush2.msra.mxu0 0.0
    %2106 = vmatprep.subr.mxu0 0.0
    %2107 = vmatpush2.msra.mxu0 0.0
    %2108 = vmatprep.mubr.f32.mxu0 0.0
    %2109 = vmatmul.mubr.f32.gmra.mxu0 %v2038
    %v2110 = vpop.f32.mrf.mxu0
    %v2111 = vadd.f32 0.0, %v2110
    %v2112 = vpop.f32.mrf.mxu0
    %v2113 = vadd.f32 0.0, %v2112
    %2114 = vmatprep.mubr.f32.mxu0 0.0
    %2115 = vmatmul.mubr.f32.gmra.mxu0 %v2040
    %v2116 = vpop.f32.mrf.mxu0
    %v2117 = vadd.f32 0.0, %v2116
    %v2118 = vpop.f32.mrf.mxu0
    %v2119 = vadd.f32 0.0, %v2118
    %2120 = vmatprep.mubr.f32.mxu0 0.0
    %2121 = vmatmul.mubr.f32.gmra.mxu0 %v2042
    %v2122 = vpop.f32.mrf.mxu0
    %v2123 = vadd.f32 0.0, %v2122
    %v2124 = vpop.f32.mrf.mxu0
    %v2125 = vadd.f32 0.0, %v2124
    %2126 = vdwg.mxu0
    %v2127 = vadd.f32 %v2025, %v2111
    %v2128 = vadd.f32 %v2026, %v2113
    %v2129 = vadd.f32 %v2027, %v2117
    %v2130 = vadd.f32 %v2028, %v2119
    %v2131 = vadd.f32 %v2029, %v2123
    %v2132 = vadd.f32 %v2030, %v2125
    %v2133 = vrot.slane %v1736, 4
    %v2134 = vrot.slane %v1737, 4
    %v2135 = vsel %vm302, %v2133, %v2134
    %v2136 = vrot.slane %v1738, 4
    %v2137 = vsel %vm302, %v2134, %v2136
    %v2138 = vrot.slane %v1739, 4
    %v2139 = vsel %vm302, %v2136, %v2138
    %v2140 = vsel %vm295, %v2135, 0
    %v2142 = vsel %vm295, %v2137, 0
    %v2144 = vsel %vm295, %v2139, 0
    %2146 = vmatprep.subr.mxu0 0.0
    %2147 = vmatpush1.msra.mxu0 0.0
    %2148 = vmatprep.subr.mxu0 0.0
    %2149 = vmatpush1.msra.mxu0 0.0
    %2150 = vmatprep.subr.mxu0 0.0
    %2151 = vmatpush1.msra.mxu0 0.0
    %2152 = vmatprep.subr.mxu0 0.0
    %2153 = vmatpush1.msra.mxu0 0.0
    %2154 = vmatprep.subr.mxu0 0.0
    %2155 = vmatpush1.msra.mxu0 0.0
    %2156 = vmatprep.subr.mxu0 0.0
    %2157 = vmatpush1.msra.mxu0 0.0
    %2158 = vmatprep.subr.mxu0 0.0
    %2159 = vmatpush1.msra.mxu0 0.0
    %2160 = vmatprep.subr.mxu0 0.0
    %2161 = vmatpush1.msra.mxu0 0.0
    %2162 = vmatprep.subr.mxu0 0.0
    %2163 = vmatpush1.msra.mxu0 0.0
    %2164 = vmatprep.subr.mxu0 0.0
    %2165 = vmatpush1.msra.mxu0 0.0
    %2166 = vmatprep.subr.mxu0 0.0
    %2167 = vmatpush1.msra.mxu0 0.0
    %2168 = vmatprep.subr.mxu0 0.0
    %2169 = vmatpush1.msra.mxu0 0.0
    %2170 = vmatprep.subr.mxu0 %v722
    %2171 = vmatpush1.msra.mxu0 %v719
    %2172 = vmatprep.subr.mxu0 %v162
    %2173 = vmatpush1.msra.mxu0 %v161
    %2174 = vmatprep.subr.mxu0 %v160
    %2175 = vmatpush1.msra.mxu0 %v159
    %2176 = vmatprep.subr.mxu0 %v158
    %2177 = vmatpush1.msra.mxu0 %v157
    %2178 = vmatprep.subr.mxu0 0.0
    %2179 = vmatpush2.msra.mxu0 0.0
    %2180 = vmatprep.subr.mxu0 0.0
    %2181 = vmatpush2.msra.mxu0 0.0
    %2182 = vmatprep.subr.mxu0 0.0
    %2183 = vmatpush2.msra.mxu0 0.0
    %2184 = vmatprep.subr.mxu0 0.0
    %2185 = vmatpush2.msra.mxu0 0.0
    %2186 = vmatprep.subr.mxu0 0.0
    %2187 = vmatpush2.msra.mxu0 0.0
    %2188 = vmatprep.subr.mxu0 0.0
    %2189 = vmatpush2.msra.mxu0 0.0
    %2190 = vmatprep.subr.mxu0 0.0
    %2191 = vmatpush2.msra.mxu0 0.0
    %2192 = vmatprep.subr.mxu0 0.0
    %2193 = vmatpush2.msra.mxu0 0.0
    %2194 = vmatprep.subr.mxu0 0.0
    %2195 = vmatpush2.msra.mxu0 0.0
    %2196 = vmatprep.subr.mxu0 0.0
    %2197 = vmatpush2.msra.mxu0 0.0
    %2198 = vmatprep.subr.mxu0 0.0
    %2199 = vmatpush2.msra.mxu0 0.0
    %2200 = vmatprep.subr.mxu0 0.0
    %2201 = vmatpush2.msra.mxu0 0.0
    %2202 = vmatprep.subr.mxu0 0.0
    %2203 = vmatpush2.msra.mxu0 0.0
    %2204 = vmatprep.subr.mxu0 0.0
    %2205 = vmatpush2.msra.mxu0 0.0
    %2206 = vmatprep.subr.mxu0 0.0
    %2207 = vmatpush2.msra.mxu0 0.0
    %2208 = vmatprep.subr.mxu0 0.0
    %2209 = vmatpush2.msra.mxu0 0.0
    %2210 = vmatprep.mubr.f32.mxu0 0.0
    %2211 = vmatmul.mubr.f32.gmra.mxu0 %v2140
    %v2212 = vpop.f32.mrf.mxu0
    %v2213 = vadd.f32 0.0, %v2212
    %v2214 = vpop.f32.mrf.mxu0
    %v2215 = vadd.f32 0.0, %v2214
    %2216 = vmatprep.mubr.f32.mxu0 0.0
    %2217 = vmatmul.mubr.f32.gmra.mxu0 %v2142
    %v2218 = vpop.f32.mrf.mxu0
    %v2219 = vadd.f32 0.0, %v2218
    %v2220 = vpop.f32.mrf.mxu0
    %v2221 = vadd.f32 0.0, %v2220
    %2222 = vmatprep.mubr.f32.mxu0 0.0
    %2223 = vmatmul.mubr.f32.gmra.mxu0 %v2144
    %v2224 = vpop.f32.mrf.mxu0
    %v2225 = vadd.f32 0.0, %v2224
    %v2226 = vpop.f32.mrf.mxu0
    %v2227 = vadd.f32 0.0, %v2226
    %2228 = vdwg.mxu0
    %v2229 = vadd.f32 %v2127, %v2213
    %v2230 = vadd.f32 %v2128, %v2215
    %v2231 = vadd.f32 %v2129, %v2219
    %v2232 = vadd.f32 %v2130, %v2221
    %v2233 = vadd.f32 %v2131, %v2225
    %v2234 = vadd.f32 %v2132, %v2227
    %v2235 = vadd.f32 %v2229, %v817
    %v2236 = vadd.f32 %v2230, %v821
    %v2237 = vadd.f32 %v2231, %v817
    %v2238 = vadd.f32 %v2232, %v821
    %v2239 = vadd.f32 %v2233, %v817
    %v2240 = vadd.f32 %v2234, %v821
    %v2247 = vrot.slane %v2235, 1
    %v2248 = vrot.slane %v2237, 1
    %v2249 = vsel %vm287, %v2247, %v2248
    %v2250 = vrot.slane %v2236, 1
    %v2251 = vrot.slane %v2238, 1
    %v2252 = vsel %vm287, %v2250, %v2251
    %v2253 = vrot.slane %v2239, 1
    %v2254 = vsel %vm287, %v2248, %v2253
    %v2255 = vrot.slane %v2240, 1
    %v2256 = vsel %vm287, %v2251, %v2255
    %v2263 = vmax.f32 %v2235, %v2249
    %v2264 = vmax.f32 %v2236, %v2252
    %v2265 = vmax.f32 %v2237, %v2254
    %v2266 = vmax.f32 %v2238, %v2256
    %v2267 = vmax.f32 %v2239, %v2253
    %v2268 = vmax.f32 %v2240, %v2255
    %v2270 = vsel %vm287, %v2267, 0
    %v2273 = vsel %vm287, %v2268, 0
    %2275 = vmatprep.subr.mxu0 0.0
    %2276 = vmatpush1.msra.mxu0 0.0
    %2277 = vmatprep.subr.mxu0 0.0
    %2278 = vmatpush1.msra.mxu0 0.0
    %2279 = vmatprep.subr.mxu0 0.0
    %2280 = vmatpush1.msra.mxu0 0.0
    %2281 = vmatprep.subr.mxu0 0.0
    %2282 = vmatpush1.msra.mxu0 0.0
    %2283 = vmatprep.subr.mxu0 0.0
    %2284 = vmatpush1.msra.mxu0 0.0
    %2285 = vmatprep.subr.mxu0 0.0
    %2286 = vmatpush1.msra.mxu0 0.0
    %2287 = vmatprep.subr.mxu0 0.0
    %2288 = vmatpush1.msra.mxu0 0.0
    %2289 = vmatprep.subr.mxu0 0.0
    %2290 = vmatpush1.msra.mxu0 0.0
    %2291 = vmatprep.subr.mxu0 0.0
    %2292 = vmatpush1.msra.mxu0 0.0
    %2293 = vmatprep.subr.mxu0 0.0
    %2294 = vmatpush1.msra.mxu0 0.0
    %2295 = vmatprep.subr.mxu0 0.0
    %2296 = vmatpush1.msra.mxu0 0.0
    %2297 = vmatprep.subr.mxu0 0.0
    %2298 = vmatpush1.msra.mxu0 0.0
    %2299 = vmatprep.subr.mxu0 0.0
    %2300 = vmatpush1.msra.mxu0 0.0
    %2301 = vmatprep.subr.mxu0 %v2273
    %2302 = vmatpush1.msra.mxu0 %v2270
    %2303 = vmatprep.subr.mxu0 %v2266
    %2304 = vmatpush1.msra.mxu0 %v2265
    %2305 = vmatprep.subr.mxu0 %v2264
    %2306 = vmatpush1.msra.mxu0 %v2263
    %2307 = vmatprep.subr.mxu0 0.0
    %2308 = vmatpush2.msra.mxu0 0.0
    %2309 = vmatprep.subr.mxu0 0.0
    %2310 = vmatpush2.msra.mxu0 0.0
    %2311 = vmatprep.subr.mxu0 0.0
    %2312 = vmatpush2.msra.mxu0 0.0
    %2313 = vmatprep.subr.mxu0 0.0
    %2314 = vmatpush2.msra.mxu0 0.0
    %2315 = vmatprep.subr.mxu0 0.0
    %2316 = vmatpush2.msra.mxu0 0.0
    %2317 = vmatprep.subr.mxu0 0.0
    %2318 = vmatpush2.msra.mxu0 0.0
    %2319 = vmatprep.subr.mxu0 0.0
    %2320 = vmatpush2.msra.mxu0 0.0
    %2321 = vmatprep.subr.mxu0 0.0
    %2322 = vmatpush2.msra.mxu0 0.0
    %2323 = vmatprep.subr.mxu0 0.0
    %2324 = vmatpush2.msra.mxu0 0.0
    %2325 = vmatprep.subr.mxu0 0.0
    %2326 = vmatpush2.msra.mxu0 0.0
    %2327 = vmatprep.subr.mxu0 0.0
    %2328 = vmatpush2.msra.mxu0 0.0
    %2329 = vmatprep.subr.mxu0 0.0
    %2330 = vmatpush2.msra.mxu0 0.0
    %2331 = vmatprep.subr.mxu0 0.0
    %2332 = vmatpush2.msra.mxu0 0.0
    %2333 = vmatprep.subr.mxu0 0.0
    %2334 = vmatpush2.msra.mxu0 0.0
    %2335 = vmatprep.subr.mxu0 0.0
    %2336 = vmatpush2.msra.mxu0 0.0
    %2337 = vmatprep.subr.mxu0 0.0
    %2338 = vmatpush2.msra.mxu0 0.0
    %2339 = vmatprep.mubr.f32.mxu0 0.0
    %2340 = vmatmul.mubr.f32.gmra.mxu0 %v860
    %v2341 = vpop.f32.mrf.mxu0
    %v2342 = vadd.f32 0.0, %v2341
    %v2343 = vpop.f32.mrf.mxu0
    %v2344 = vadd.f32 0.0, %v2343
    %2345 = vmatprep.mubr.f32.mxu0 0.0
    %2346 = vmatmul.mubr.f32.gmra.mxu0 %v863
    %v2347 = vpop.f32.mrf.mxu0
    %v2348 = vadd.f32 0.0, %v2347
    %v2349 = vpop.f32.mrf.mxu0
    %v2350 = vadd.f32 0.0, %v2349
    %2351 = vdwg.mxu0
    %v2353 = vsel %vm948, %v2344, 0
    %v2356 = vsel %vm948, %v2350, 0
    %2358 = vmatprep.subr.mxu0 0.0
    %2359 = vmatpush1.msra.mxu0 %v233
    %2360 = vmatprep.subr.mxu0 0.0
    %2361 = vmatpush1.msra.mxu0 %v232
    %2362 = vmatprep.subr.mxu0 0.0
    %2363 = vmatpush1.msra.mxu0 %v231
    %2364 = vmatprep.subr.mxu0 0.0
    %2365 = vmatpush1.msra.mxu0 %v230
    %2366 = vmatprep.subr.mxu0 0.0
    %2367 = vmatpush1.msra.mxu0 %v229
    %2368 = vmatprep.subr.mxu0 0.0
    %2369 = vmatpush1.msra.mxu0 %v228
    %2370 = vmatprep.subr.mxu0 0.0
    %2371 = vmatpush1.msra.mxu0 %v227
    %2372 = vmatprep.subr.mxu0 0.0
    %2373 = vmatpush1.msra.mxu0 %v226
    %2374 = vmatprep.subr.mxu0 0.0
    %2375 = vmatpush1.msra.mxu0 %v225
    %2376 = vmatprep.subr.mxu0 0.0
    %2377 = vmatpush1.msra.mxu0 %v224
    %2378 = vmatprep.subr.mxu0 0.0
    %2379 = vmatpush1.msra.mxu0 %v223
    %2380 = vmatprep.subr.mxu0 0.0
    %2381 = vmatpush1.msra.mxu0 %v222
    %2382 = vmatprep.subr.mxu0 0.0
    %2383 = vmatpush1.msra.mxu0 %v221
    %2384 = vmatprep.subr.mxu0 0.0
    %2385 = vmatpush1.msra.mxu0 %v220
    %2386 = vmatprep.subr.mxu0 0.0
    %2387 = vmatpush1.msra.mxu0 %v219
    %2388 = vmatprep.subr.mxu0 0.0
    %2389 = vmatpush1.msra.mxu0 %v218
    %2390 = vmatprep.subr.mxu0 0.0
    %2391 = vmatpush2.msra.mxu0 0.0
    %2392 = vmatprep.subr.mxu0 0.0
    %2393 = vmatpush2.msra.mxu0 0.0
    %2394 = vmatprep.subr.mxu0 0.0
    %2395 = vmatpush2.msra.mxu0 0.0
    %2396 = vmatprep.subr.mxu0 0.0
    %2397 = vmatpush2.msra.mxu0 0.0
    %2398 = vmatprep.subr.mxu0 0.0
    %2399 = vmatpush2.msra.mxu0 0.0
    %2400 = vmatprep.subr.mxu0 0.0
    %2401 = vmatpush2.msra.mxu0 0.0
    %2402 = vmatprep.subr.mxu0 0.0
    %2403 = vmatpush2.msra.mxu0 0.0
    %2404 = vmatprep.subr.mxu0 0.0
    %2405 = vmatpush2.msra.mxu0 0.0
    %2406 = vmatprep.subr.mxu0 0.0
    %2407 = vmatpush2.msra.mxu0 0.0
    %2408 = vmatprep.subr.mxu0 0.0
    %2409 = vmatpush2.msra.mxu0 0.0
    %2410 = vmatprep.subr.mxu0 0.0
    %2411 = vmatpush2.msra.mxu0 0.0
    %2412 = vmatprep.subr.mxu0 0.0
    %2413 = vmatpush2.msra.mxu0 0.0
    %2414 = vmatprep.subr.mxu0 0.0
    %2415 = vmatpush2.msra.mxu0 0.0
    %2416 = vmatprep.subr.mxu0 0.0
    %2417 = vmatpush2.msra.mxu0 0.0
    %2418 = vmatprep.subr.mxu0 0.0
    %2419 = vmatpush2.msra.mxu0 %v235
    %2420 = vmatprep.subr.mxu0 0.0
    %2421 = vmatpush2.msra.mxu0 %v234
    %2422 = vmatprep.mubr.f32.mxu0 %v2353
    %2423 = vmatmul.mubr.f32.gmra.mxu0 %v2342
    %v2424 = vpop.f32.mrf.mxu0
    %v2425 = vadd.f32 0.0, %v2424
    %v2426 = vpop.f32.mrf.mxu0
    %2427 = vmatprep.mubr.f32.mxu0 %v2356
    %2428 = vmatmul.mubr.f32.gmra.mxu0 %v2348
    %v2429 = vpop.f32.mrf.mxu0
    %v2430 = vadd.f32 0.0, %v2429
    %v2431 = vpop.f32.mrf.mxu0
    %2432 = vdwg.mxu0
    %2433 = vmatprep.subr.mxu0 0.0
    %2434 = vmatpush1.msra.mxu0 %v251
    %2435 = vmatprep.subr.mxu0 0.0
    %2436 = vmatpush1.msra.mxu0 %v250
    %2437 = vmatprep.subr.mxu0 0.0
    %2438 = vmatpush1.msra.mxu0 %v249
    %2439 = vmatprep.subr.mxu0 0.0
    %2440 = vmatpush1.msra.mxu0 %v248
    %2441 = vmatprep.subr.mxu0 0.0
    %2442 = vmatpush1.msra.mxu0 %v247
    %2443 = vmatprep.subr.mxu0 0.0
    %2444 = vmatpush1.msra.mxu0 %v246
    %2445 = vmatprep.subr.mxu0 0.0
    %2446 = vmatpush1.msra.mxu0 %v245
    %2447 = vmatprep.subr.mxu0 0.0
    %2448 = vmatpush1.msra.mxu0 %v244
    %2449 = vmatprep.subr.mxu0 0.0
    %2450 = vmatpush1.msra.mxu0 %v243
    %2451 = vmatprep.subr.mxu0 0.0
    %2452 = vmatpush1.msra.mxu0 %v242
    %2453 = vmatprep.subr.mxu0 0.0
    %2454 = vmatpush1.msra.mxu0 %v241
    %2455 = vmatprep.subr.mxu0 0.0
    %2456 = vmatpush1.msra.mxu0 %v240
    %2457 = vmatprep.subr.mxu0 0.0
    %2458 = vmatpush1.msra.mxu0 %v239
    %2459 = vmatprep.subr.mxu0 0.0
    %2460 = vmatpush1.msra.mxu0 %v238
    %2461 = vmatprep.subr.mxu0 0.0
    %2462 = vmatpush1.msra.mxu0 %v237
    %2463 = vmatprep.subr.mxu0 0.0
    %2464 = vmatpush1.msra.mxu0 %v236
    %2465 = vmatprep.subr.mxu0 0.0
    %2466 = vmatpush2.msra.mxu0 0.0
    %2467 = vmatprep.subr.mxu0 0.0
    %2468 = vmatpush2.msra.mxu0 0.0
    %2469 = vmatprep.subr.mxu0 0.0
    %2470 = vmatpush2.msra.mxu0 0.0
    %2471 = vmatprep.subr.mxu0 0.0
    %2472 = vmatpush2.msra.mxu0 0.0
    %2473 = vmatprep.subr.mxu0 0.0
    %2474 = vmatpush2.msra.mxu0 0.0
    %2475 = vmatprep.subr.mxu0 0.0
    %2476 = vmatpush2.msra.mxu0 0.0
    %2477 = vmatprep.subr.mxu0 0.0
    %2478 = vmatpush2.msra.mxu0 0.0
    %2479 = vmatprep.subr.mxu0 0.0
    %2480 = vmatpush2.msra.mxu0 0.0
    %2481 = vmatprep.subr.mxu0 0.0
    %2482 = vmatpush2.msra.mxu0 0.0
    %2483 = vmatprep.subr.mxu0 0.0
    %2484 = vmatpush2.msra.mxu0 0.0
    %2485 = vmatprep.subr.mxu0 0.0
    %2486 = vmatpush2.msra.mxu0 0.0
    %2487 = vmatprep.subr.mxu0 0.0
    %2488 = vmatpush2.msra.mxu0 0.0
    %2489 = vmatprep.subr.mxu0 0.0
    %2490 = vmatpush2.msra.mxu0 0.0
    %2491 = vmatprep.subr.mxu0 0.0
    %2492 = vmatpush2.msra.mxu0 0.0
    %2493 = vmatprep.subr.mxu0 0.0
    %2494 = vmatpush2.msra.mxu0 %v253
    %2495 = vmatprep.subr.mxu0 0.0
    %2496 = vmatpush2.msra.mxu0 %v252
    %2497 = vmatprep.mubr.f32.mxu0 %v2353
    %2498 = vmatmul.mubr.f32.gmra.mxu0 %v2342
    %v2499 = vpop.f32.mrf.mxu0
    %v2500 = vadd.f32 0.0, %v2499
    %v2501 = vpop.f32.mrf.mxu0
    %2502 = vmatprep.mubr.f32.mxu0 %v2356
    %2503 = vmatmul.mubr.f32.gmra.mxu0 %v2348
    %v2504 = vpop.f32.mrf.mxu0
    %v2505 = vadd.f32 0.0, %v2504
    %v2506 = vpop.f32.mrf.mxu0
    %2507 = vdwg.mxu0
    %v2508 = vmax.f32 %v2425, %v2500
    %v2509 = vmax.f32 %v2430, %v2505
    %v2512 = vrot.slane %v2508, 1
    %v2513 = vrot.slane %v2509, 1
    %v2514 = vsel %vm287, %v2512, %v2513
    %v2515 = vsel %vm1112, %v2514, 0
    %2517 = vmatprep.subr.mxu0 0.0
    %2518 = vmatpush1.msra.mxu0 0.0
    %2519 = vmatprep.subr.mxu0 0.0
    %2520 = vmatpush1.msra.mxu0 0.0
    %2521 = vmatprep.subr.mxu0 0.0
    %2522 = vmatpush1.msra.mxu0 0.0
    %2523 = vmatprep.subr.mxu0 0.0
    %2524 = vmatpush1.msra.mxu0 0.0
    %2525 = vmatprep.subr.mxu0 0.0
    %2526 = vmatpush1.msra.mxu0 0.0
    %2527 = vmatprep.subr.mxu0 0.0
    %2528 = vmatpush1.msra.mxu0 0.0
    %2529 = vmatprep.subr.mxu0 0.0
    %2530 = vmatpush1.msra.mxu0 0.0
    %2531 = vmatprep.subr.mxu0 0.0
    %2532 = vmatpush1.msra.mxu0 %v183
    %2533 = vmatprep.subr.mxu0 0.0
    %2534 = vmatpush1.msra.mxu0 %v182
    %2535 = vmatprep.subr.mxu0 0.0
    %2536 = vmatpush1.msra.mxu0 %v181
    %2537 = vmatprep.subr.mxu0 0.0
    %2538 = vmatpush1.msra.mxu0 %v180
    %2539 = vmatprep.subr.mxu0 0.0
    %2540 = vmatpush1.msra.mxu0 %v179
    %2541 = vmatprep.subr.mxu0 0.0
    %2542 = vmatpush1.msra.mxu0 %v178
    %2543 = vmatprep.subr.mxu0 0.0
    %2544 = vmatpush1.msra.mxu0 %v177
    %2545 = vmatprep.subr.mxu0 0.0
    %2546 = vmatpush1.msra.mxu0 %v176
    %2547 = vmatprep.subr.mxu0 0.0
    %2548 = vmatpush1.msra.mxu0 %v175
    %2549 = vmatprep.subr.mxu0 0.0
    %2550 = vmatpush2.msra.mxu0 0.0
    %2551 = vmatprep.subr.mxu0 0.0
    %2552 = vmatpush2.msra.mxu0 0.0
    %2553 = vmatprep.subr.mxu0 0.0
    %2554 = vmatpush2.msra.mxu0 0.0
    %2555 = vmatprep.subr.mxu0 0.0
    %2556 = vmatpush2.msra.mxu0 0.0
    %2557 = vmatprep.subr.mxu0 0.0
    %2558 = vmatpush2.msra.mxu0 0.0
    %2559 = vmatprep.subr.mxu0 0.0
    %2560 = vmatpush2.msra.mxu0 0.0
    %2561 = vmatprep.subr.mxu0 0.0
    %2562 = vmatpush2.msra.mxu0 0.0
    %2563 = vmatprep.subr.mxu0 0.0
    %2564 = vmatpush2.msra.mxu0 0.0
    %2565 = vmatprep.subr.mxu0 0.0
    %2566 = vmatpush2.msra.mxu0 0.0
    %2567 = vmatprep.subr.mxu0 0.0
    %2568 = vmatpush2.msra.mxu0 0.0
    %2569 = vmatprep.subr.mxu0 0.0
    %2570 = vmatpush2.msra.mxu0 0.0
    %2571 = vmatprep.subr.mxu0 0.0
    %2572 = vmatpush2.msra.mxu0 0.0
    %2573 = vmatprep.subr.mxu0 0.0
    %2574 = vmatpush2.msra.mxu0 0.0
    %2575 = vmatprep.subr.mxu0 0.0
    %2576 = vmatpush2.msra.mxu0 0.0
    %2577 = vmatprep.subr.mxu0 0.0
    %2578 = vmatpush2.msra.mxu0 0.0
    %2579 = vmatprep.subr.mxu0 0.0
    %2580 = vmatpush2.msra.mxu0 0.0
    %2581 = vmatprep.mubr.f32.mxu0 0.0
    %2582 = vmatmul.mubr.f32.gmra.mxu0 %v2515
    %v2583 = vpop.f32.mrf.mxu0
    %v2584 = vadd.f32 0.0, %v2583
    %v2585 = vpop.f32.mrf.mxu0
    %2586 = vdwg.mxu0
    %v2587 = vsel %vm1112, %v2508, 0
    %2589 = vmatprep.subr.mxu0 0.0
    %2590 = vmatpush1.msra.mxu0 0.0
    %2591 = vmatprep.subr.mxu0 0.0
    %2592 = vmatpush1.msra.mxu0 0.0
    %2593 = vmatprep.subr.mxu0 0.0
    %2594 = vmatpush1.msra.mxu0 0.0
    %2595 = vmatprep.subr.mxu0 0.0
    %2596 = vmatpush1.msra.mxu0 0.0
    %2597 = vmatprep.subr.mxu0 0.0
    %2598 = vmatpush1.msra.mxu0 0.0
    %2599 = vmatprep.subr.mxu0 0.0
    %2600 = vmatpush1.msra.mxu0 0.0
    %2601 = vmatprep.subr.mxu0 0.0
    %2602 = vmatpush1.msra.mxu0 0.0
    %2603 = vmatprep.subr.mxu0 0.0
    %2604 = vmatpush1.msra.mxu0 %v173
    %2605 = vmatprep.subr.mxu0 0.0
    %2606 = vmatpush1.msra.mxu0 %v172
    %2607 = vmatprep.subr.mxu0 0.0
    %2608 = vmatpush1.msra.mxu0 %v171
    %2609 = vmatprep.subr.mxu0 0.0
    %2610 = vmatpush1.msra.mxu0 %v170
    %2611 = vmatprep.subr.mxu0 0.0
    %2612 = vmatpush1.msra.mxu0 %v169
    %2613 = vmatprep.subr.mxu0 0.0
    %2614 = vmatpush1.msra.mxu0 %v168
    %2615 = vmatprep.subr.mxu0 0.0
    %2616 = vmatpush1.msra.mxu0 %v167
    %2617 = vmatprep.subr.mxu0 0.0
    %2618 = vmatpush1.msra.mxu0 %v166
    %2619 = vmatprep.subr.mxu0 0.0
    %2620 = vmatpush1.msra.mxu0 %v165
    %2621 = vmatprep.subr.mxu0 0.0
    %2622 = vmatpush2.msra.mxu0 0.0
    %2623 = vmatprep.subr.mxu0 0.0
    %2624 = vmatpush2.msra.mxu0 0.0
    %2625 = vmatprep.subr.mxu0 0.0
    %2626 = vmatpush2.msra.mxu0 0.0
    %2627 = vmatprep.subr.mxu0 0.0
    %2628 = vmatpush2.msra.mxu0 0.0
    %2629 = vmatprep.subr.mxu0 0.0
    %2630 = vmatpush2.msra.mxu0 0.0
    %2631 = vmatprep.subr.mxu0 0.0
    %2632 = vmatpush2.msra.mxu0 0.0
    %2633 = vmatprep.subr.mxu0 0.0
    %2634 = vmatpush2.msra.mxu0 0.0
    %2635 = vmatprep.subr.mxu0 0.0
    %2636 = vmatpush2.msra.mxu0 0.0
    %2637 = vmatprep.subr.mxu0 0.0
    %2638 = vmatpush2.msra.mxu0 0.0
    %2639 = vmatprep.subr.mxu0 0.0
    %2640 = vmatpush2.msra.mxu0 0.0
    %2641 = vmatprep.subr.mxu0 0.0
    %2642 = vmatpush2.msra.mxu0 0.0
    %2643 = vmatprep.subr.mxu0 0.0
    %2644 = vmatpush2.msra.mxu0 0.0
    %2645 = vmatprep.subr.mxu0 0.0
    %2646 = vmatpush2.msra.mxu0 0.0
    %2647 = vmatprep.subr.mxu0 0.0
    %2648 = vmatpush2.msra.mxu0 0.0
    %2649 = vmatprep.subr.mxu0 0.0
    %2650 = vmatpush2.msra.mxu0 0.0
    %2651 = vmatprep.subr.mxu0 0.0
    %2652 = vmatpush2.msra.mxu0 0.0
    %2653 = vmatprep.mubr.f32.mxu0 0.0
    %2654 = vmatmul.mubr.f32.gmra.mxu0 %v2587
    %v2655 = vpop.f32.mrf.mxu0
    %v2656 = vadd.f32 %v2584, %v2655
    %v2657 = vpop.f32.mrf.mxu0
    %2658 = vdwg.mxu0
    %v2659 = vrot.slane %v2508, 2
    %v2660 = vrot.slane %v2509, 2
    %v2661 = vsel %vm487, %v2659, %v2660
    %v2662 = vsel %vm1112, %v2661, 0
    %2664 = vmatprep.subr.mxu0 0.0
    %2665 = vmatpush1.msra.mxu0 0.0
    %2666 = vmatprep.subr.mxu0 0.0
    %2667 = vmatpush1.msra.mxu0 0.0
    %2668 = vmatprep.subr.mxu0 0.0
    %2669 = vmatpush1.msra.mxu0 0.0
    %2670 = vmatprep.subr.mxu0 0.0
    %2671 = vmatpush1.msra.mxu0 0.0
    %2672 = vmatprep.subr.mxu0 0.0
    %2673 = vmatpush1.msra.mxu0 0.0
    %2674 = vmatprep.subr.mxu0 0.0
    %2675 = vmatpush1.msra.mxu0 0.0
    %2676 = vmatprep.subr.mxu0 0.0
    %2677 = vmatpush1.msra.mxu0 0.0
    %2678 = vmatprep.subr.mxu0 0.0
    %2679 = vmatpush1.msra.mxu0 %v193
    %2680 = vmatprep.subr.mxu0 0.0
    %2681 = vmatpush1.msra.mxu0 %v192
    %2682 = vmatprep.subr.mxu0 0.0
    %2683 = vmatpush1.msra.mxu0 %v191
    %2684 = vmatprep.subr.mxu0 0.0
    %2685 = vmatpush1.msra.mxu0 %v190
    %2686 = vmatprep.subr.mxu0 0.0
    %2687 = vmatpush1.msra.mxu0 %v189
    %2688 = vmatprep.subr.mxu0 0.0
    %2689 = vmatpush1.msra.mxu0 %v188
    %2690 = vmatprep.subr.mxu0 0.0
    %2691 = vmatpush1.msra.mxu0 %v187
    %2692 = vmatprep.subr.mxu0 0.0
    %2693 = vmatpush1.msra.mxu0 %v186
    %2694 = vmatprep.subr.mxu0 0.0
    %2695 = vmatpush1.msra.mxu0 %v185
    %2696 = vmatprep.subr.mxu0 0.0
    %2697 = vmatpush2.msra.mxu0 0.0
    %2698 = vmatprep.subr.mxu0 0.0
    %2699 = vmatpush2.msra.mxu0 0.0
    %2700 = vmatprep.subr.mxu0 0.0
    %2701 = vmatpush2.msra.mxu0 0.0
    %2702 = vmatprep.subr.mxu0 0.0
    %2703 = vmatpush2.msra.mxu0 0.0
    %2704 = vmatprep.subr.mxu0 0.0
    %2705 = vmatpush2.msra.mxu0 0.0
    %2706 = vmatprep.subr.mxu0 0.0
    %2707 = vmatpush2.msra.mxu0 0.0
    %2708 = vmatprep.subr.mxu0 0.0
    %2709 = vmatpush2.msra.mxu0 0.0
    %2710 = vmatprep.subr.mxu0 0.0
    %2711 = vmatpush2.msra.mxu0 0.0
    %2712 = vmatprep.subr.mxu0 0.0
    %2713 = vmatpush2.msra.mxu0 0.0
    %2714 = vmatprep.subr.mxu0 0.0
    %2715 = vmatpush2.msra.mxu0 0.0
    %2716 = vmatprep.subr.mxu0 0.0
    %2717 = vmatpush2.msra.mxu0 0.0
    %2718 = vmatprep.subr.mxu0 0.0
    %2719 = vmatpush2.msra.mxu0 0.0
    %2720 = vmatprep.subr.mxu0 0.0
    %2721 = vmatpush2.msra.mxu0 0.0
    %2722 = vmatprep.subr.mxu0 0.0
    %2723 = vmatpush2.msra.mxu0 0.0
    %2724 = vmatprep.subr.mxu0 0.0
    %2725 = vmatpush2.msra.mxu0 0.0
    %2726 = vmatprep.subr.mxu0 0.0
    %2727 = vmatpush2.msra.mxu0 0.0
    %2728 = vmatprep.mubr.f32.mxu0 0.0
    %2729 = vmatmul.mubr.f32.gmra.mxu0 %v2662
    %v2730 = vpop.f32.mrf.mxu0
    %v2731 = vadd.f32 0.0, %v2730
    %v2732 = vpop.f32.mrf.mxu0
    %2733 = vdwg.mxu0
    %v2734 = vadd.f32 %v2656, %v2731
    %v2735 = vrot.slane %v2508, 3
    %v2736 = vrot.slane %v2509, 3
    %v2737 = vsel %vm596, %v2735, %v2736
    %v2738 = vsel %vm1112, %v2737, 0
    %2740 = vmatprep.subr.mxu0 0.0
    %2741 = vmatpush1.msra.mxu0 0.0
    %2742 = vmatprep.subr.mxu0 0.0
    %2743 = vmatpush1.msra.mxu0 0.0
    %2744 = vmatprep.subr.mxu0 0.0
    %2745 = vmatpush1.msra.mxu0 0.0
    %2746 = vmatprep.subr.mxu0 0.0
    %2747 = vmatpush1.msra.mxu0 0.0
    %2748 = vmatprep.subr.mxu0 0.0
    %2749 = vmatpush1.msra.mxu0 0.0
    %2750 = vmatprep.subr.mxu0 0.0
    %2751 = vmatpush1.msra.mxu0 0.0
    %2752 = vmatprep.subr.mxu0 0.0
    %2753 = vmatpush1.msra.mxu0 0.0
    %2754 = vmatprep.subr.mxu0 0.0
    %2755 = vmatpush1.msra.mxu0 %v203
    %2756 = vmatprep.subr.mxu0 0.0
    %2757 = vmatpush1.msra.mxu0 %v202
    %2758 = vmatprep.subr.mxu0 0.0
    %2759 = vmatpush1.msra.mxu0 %v201
    %2760 = vmatprep.subr.mxu0 0.0
    %2761 = vmatpush1.msra.mxu0 %v200
    %2762 = vmatprep.subr.mxu0 0.0
    %2763 = vmatpush1.msra.mxu0 %v199
    %2764 = vmatprep.subr.mxu0 0.0
    %2765 = vmatpush1.msra.mxu0 %v198
    %2766 = vmatprep.subr.mxu0 0.0
    %2767 = vmatpush1.msra.mxu0 %v197
    %2768 = vmatprep.subr.mxu0 0.0
    %2769 = vmatpush1.msra.mxu0 %v196
    %2770 = vmatprep.subr.mxu0 0.0
    %2771 = vmatpush1.msra.mxu0 %v195
    %2772 = vmatprep.subr.mxu0 0.0
    %2773 = vmatpush2.msra.mxu0 0.0
    %2774 = vmatprep.subr.mxu0 0.0
    %2775 = vmatpush2.msra.mxu0 0.0
    %2776 = vmatprep.subr.mxu0 0.0
    %2777 = vmatpush2.msra.mxu0 0.0
    %2778 = vmatprep.subr.mxu0 0.0
    %2779 = vmatpush2.msra.mxu0 0.0
    %2780 = vmatprep.subr.mxu0 0.0
    %2781 = vmatpush2.msra.mxu0 0.0
    %2782 = vmatprep.subr.mxu0 0.0
    %2783 = vmatpush2.msra.mxu0 0.0
    %2784 = vmatprep.subr.mxu0 0.0
    %2785 = vmatpush2.msra.mxu0 0.0
    %2786 = vmatprep.subr.mxu0 0.0
    %2787 = vmatpush2.msra.mxu0 0.0
    %2788 = vmatprep.subr.mxu0 0.0
    %2789 = vmatpush2.msra.mxu0 0.0
    %2790 = vmatprep.subr.mxu0 0.0
    %2791 = vmatpush2.msra.mxu0 0.0
    %2792 = vmatprep.subr.mxu0 0.0
    %2793 = vmatpush2.msra.mxu0 0.0
    %2794 = vmatprep.subr.mxu0 0.0
    %2795 = vmatpush2.msra.mxu0 0.0
    %2796 = vmatprep.subr.mxu0 0.0
    %2797 = vmatpush2.msra.mxu0 0.0
    %2798 = vmatprep.subr.mxu0 0.0
    %2799 = vmatpush2.msra.mxu0 0.0
    %2800 = vmatprep.subr.mxu0 0.0
    %2801 = vmatpush2.msra.mxu0 0.0
    %2802 = vmatprep.subr.mxu0 0.0
    %2803 = vmatpush2.msra.mxu0 0.0
    %2804 = vmatprep.mubr.f32.mxu0 0.0
    %2805 = vmatmul.mubr.f32.gmra.mxu0 %v2738
    %v2806 = vpop.f32.mrf.mxu0
    %v2807 = vadd.f32 0.0, %v2806
    %v2808 = vpop.f32.mrf.mxu0
    %2809 = vdwg.mxu0
    %v2810 = vadd.f32 %v2734, %v2807
    %v2811 = vrot.slane %v2508, 4
    %v2812 = vrot.slane %v2509, 4
    %v2813 = vsel %vm302, %v2811, %v2812
    %v2814 = vsel %vm1112, %v2813, 0
    %2816 = vmatprep.subr.mxu0 0.0
    %2817 = vmatpush1.msra.mxu0 0.0
    %2818 = vmatprep.subr.mxu0 0.0
    %2819 = vmatpush1.msra.mxu0 0.0
    %2820 = vmatprep.subr.mxu0 0.0
    %2821 = vmatpush1.msra.mxu0 0.0
    %2822 = vmatprep.subr.mxu0 0.0
    %2823 = vmatpush1.msra.mxu0 0.0
    %2824 = vmatprep.subr.mxu0 0.0
    %2825 = vmatpush1.msra.mxu0 0.0
    %2826 = vmatprep.subr.mxu0 0.0
    %2827 = vmatpush1.msra.mxu0 0.0
    %2828 = vmatprep.subr.mxu0 0.0
    %2829 = vmatpush1.msra.mxu0 0.0
    %2830 = vmatprep.subr.mxu0 0.0
    %2831 = vmatpush1.msra.mxu0 %v213
    %2832 = vmatprep.subr.mxu0 0.0
    %2833 = vmatpush1.msra.mxu0 %v212
    %2834 = vmatprep.subr.mxu0 0.0
    %2835 = vmatpush1.msra.mxu0 %v211
    %2836 = vmatprep.subr.mxu0 0.0
    %2837 = vmatpush1.msra.mxu0 %v210
    %2838 = vmatprep.subr.mxu0 0.0
    %2839 = vmatpush1.msra.mxu0 %v209
    %2840 = vmatprep.subr.mxu0 0.0
    %2841 = vmatpush1.msra.mxu0 %v208
    %2842 = vmatprep.subr.mxu0 0.0
    %2843 = vmatpush1.msra.mxu0 %v207
    %2844 = vmatprep.subr.mxu0 0.0
    %2845 = vmatpush1.msra.mxu0 %v206
    %2846 = vmatprep.subr.mxu0 0.0
    %2847 = vmatpush1.msra.mxu0 %v205
    %2848 = vmatprep.subr.mxu0 0.0
    %2849 = vmatpush2.msra.mxu0 0.0
    %2850 = vmatprep.subr.mxu0 0.0
    %2851 = vmatpush2.msra.mxu0 0.0
    %2852 = vmatprep.subr.mxu0 0.0
    %2853 = vmatpush2.msra.mxu0 0.0
    %2854 = vmatprep.subr.mxu0 0.0
    %2855 = vmatpush2.msra.mxu0 0.0
    %2856 = vmatprep.subr.mxu0 0.0
    %2857 = vmatpush2.msra.mxu0 0.0
    %2858 = vmatprep.subr.mxu0 0.0
    %2859 = vmatpush2.msra.mxu0 0.0
    %2860 = vmatprep.subr.mxu0 0.0
    %2861 = vmatpush2.msra.mxu0 0.0
    %2862 = vmatprep.subr.mxu0 0.0
    %2863 = vmatpush2.msra.mxu0 0.0
    %2864 = vmatprep.subr.mxu0 0.0
    %2865 = vmatpush2.msra.mxu0 0.0
    %2866 = vmatprep.subr.mxu0 0.0
    %2867 = vmatpush2.msra.mxu0 0.0
    %2868 = vmatprep.subr.mxu0 0.0
    %2869 = vmatpush2.msra.mxu0 0.0
    %2870 = vmatprep.subr.mxu0 0.0
    %2871 = vmatpush2.msra.mxu0 0.0
    %2872 = vmatprep.subr.mxu0 0.0
    %2873 = vmatpush2.msra.mxu0 0.0
    %2874 = vmatprep.subr.mxu0 0.0
    %2875 = vmatpush2.msra.mxu0 0.0
    %2876 = vmatprep.subr.mxu0 0.0
    %2877 = vmatpush2.msra.mxu0 0.0
    %2878 = vmatprep.subr.mxu0 0.0
    %2879 = vmatpush2.msra.mxu0 0.0
    %2880 = vmatprep.mubr.f32.mxu0 0.0
    %2881 = vmatmul.mubr.f32.gmra.mxu0 %v2814
    %v2882 = vpop.f32.mrf.mxu0
    %v2883 = vadd.f32 0.0, %v2882
    %v2884 = vpop.f32.mrf.mxu0
    %2885 = vdwg.mxu0
    %v2886 = vadd.f32 %v2810, %v2883
    %v2887 = vadd.f32 %v2886, %v1489
    %v2889 = vrot.slane %v2887, 1
    %v2891 = vmax.f32 %v2887, %v2889
    %v2893 = vsel %vm287, %v2891, 0
    %2895 = vmatprep.subr.mxu0 0.0
    %2896 = vmatpush1.msra.mxu0 0.0
    %2897 = vmatprep.subr.mxu0 0.0
    %2898 = vmatpush1.msra.mxu0 0.0
    %2899 = vmatprep.subr.mxu0 0.0
    %2900 = vmatpush1.msra.mxu0 0.0
    %2901 = vmatprep.subr.mxu0 0.0
    %2902 = vmatpush1.msra.mxu0 0.0
    %2903 = vmatprep.subr.mxu0 0.0
    %2904 = vmatpush1.msra.mxu0 0.0
    %2905 = vmatprep.subr.mxu0 0.0
    %2906 = vmatpush1.msra.mxu0 0.0
    %2907 = vmatprep.subr.mxu0 0.0
    %2908 = vmatpush1.msra.mxu0 0.0
    %2909 = vmatprep.subr.mxu0 0.0
    %2910 = vmatpush1.msra.mxu0 0.0
    %2911 = vmatprep.subr.mxu0 0.0
    %2912 = vmatpush1.msra.mxu0 0.0
    %2913 = vmatprep.subr.mxu0 0.0
    %2914 = vmatpush1.msra.mxu0 0.0
    %2915 = vmatprep.subr.mxu0 0.0
    %2916 = vmatpush1.msra.mxu0 0.0
    %2917 = vmatprep.subr.mxu0 0.0
    %2918 = vmatpush1.msra.mxu0 0.0
    %2919 = vmatprep.subr.mxu0 0.0
    %2920 = vmatpush1.msra.mxu0 0.0
    %2921 = vmatprep.subr.mxu0 0.0
    %2922 = vmatpush1.msra.mxu0 0.0
    %2923 = vmatprep.subr.mxu0 0.0
    %2924 = vmatpush1.msra.mxu0 0.0
    %2925 = vmatprep.subr.mxu0 0.0
    %2926 = vmatpush1.msra.mxu0 %v2893
    %2927 = vmatprep.subr.mxu0 0.0
    %2928 = vmatpush2.msra.mxu0 0.0
    %2929 = vmatprep.subr.mxu0 0.0
    %2930 = vmatpush2.msra.mxu0 0.0
    %2931 = vmatprep.subr.mxu0 0.0
    %2932 = vmatpush2.msra.mxu0 0.0
    %2933 = vmatprep.subr.mxu0 0.0
    %2934 = vmatpush2.msra.mxu0 0.0
    %2935 = vmatprep.subr.mxu0 0.0
    %2936 = vmatpush2.msra.mxu0 0.0
    %2937 = vmatprep.subr.mxu0 0.0
    %2938 = vmatpush2.msra.mxu0 0.0
    %2939 = vmatprep.subr.mxu0 0.0
    %2940 = vmatpush2.msra.mxu0 0.0
    %2941 = vmatprep.subr.mxu0 0.0
    %2942 = vmatpush2.msra.mxu0 0.0
    %2943 = vmatprep.subr.mxu0 0.0
    %2944 = vmatpush2.msra.mxu0 0.0
    %2945 = vmatprep.subr.mxu0 0.0
    %2946 = vmatpush2.msra.mxu0 0.0
    %2947 = vmatprep.subr.mxu0 0.0
    %2948 = vmatpush2.msra.mxu0 0.0
    %2949 = vmatprep.subr.mxu0 0.0
    %2950 = vmatpush2.msra.mxu0 0.0
    %2951 = vmatprep.subr.mxu0 0.0
    %2952 = vmatpush2.msra.mxu0 0.0
    %2953 = vmatprep.subr.mxu0 0.0
    %2954 = vmatpush2.msra.mxu0 0.0
    %2955 = vmatprep.subr.mxu0 0.0
    %2956 = vmatpush2.msra.mxu0 0.0
    %2957 = vmatprep.subr.mxu0 0.0
    %2958 = vmatpush2.msra.mxu0 0.0
    %2959 = vmatprep.mubr.f32.mxu0 0.0
    %2960 = vmatmul.mubr.f32.gmra.mxu0 %v1498
    %v2961 = vpop.f32.mrf.mxu0
    %v2962 = vadd.f32 0.0, %v2961
    %v2963 = vpop.f32.mrf.mxu0
    %2964 = vdwg.mxu0
    %v2966 = vsel %vm1573, %v2962, 0
    %2968 = vmatprep.subr.mxu0 0.0
    %2969 = vmatpush1.msra.mxu0 0.0
    %2970 = vmatprep.subr.mxu0 0.0
    %2971 = vmatpush1.msra.mxu0 0.0
    %2972 = vmatprep.subr.mxu0 0.0
    %2973 = vmatpush1.msra.mxu0 0.0
    %2974 = vmatprep.subr.mxu0 0.0
    %2975 = vmatpush1.msra.mxu0 0.0
    %2976 = vmatprep.subr.mxu0 0.0
    %2977 = vmatpush1.msra.mxu0 %v266
    %2978 = vmatprep.subr.mxu0 0.0
    %2979 = vmatpush1.msra.mxu0 %v265
    %2980 = vmatprep.subr.mxu0 0.0
    %2981 = vmatpush1.msra.mxu0 %v264
    %2982 = vmatprep.subr.mxu0 0.0
    %2983 = vmatpush1.msra.mxu0 %v263
    %2984 = vmatprep.subr.mxu0 0.0
    %2985 = vmatpush1.msra.mxu0 %v262
    %2986 = vmatprep.subr.mxu0 0.0
    %2987 = vmatpush1.msra.mxu0 %v261
    %2988 = vmatprep.subr.mxu0 0.0
    %2989 = vmatpush1.msra.mxu0 %v260
    %2990 = vmatprep.subr.mxu0 0.0
    %2991 = vmatpush1.msra.mxu0 %v259
    %2992 = vmatprep.subr.mxu0 0.0
    %2993 = vmatpush1.msra.mxu0 %v258
    %2994 = vmatprep.subr.mxu0 0.0
    %2995 = vmatpush1.msra.mxu0 %v257
    %2996 = vmatprep.subr.mxu0 0.0
    %2997 = vmatpush1.msra.mxu0 %v256
    %2998 = vmatprep.subr.mxu0 0.0
    %2999 = vmatpush1.msra.mxu0 %v255
    %3000 = vmatprep.subr.mxu0 0.0
    %3001 = vmatpush2.msra.mxu0 0.0
    %3002 = vmatprep.subr.mxu0 0.0
    %3003 = vmatpush2.msra.mxu0 0.0
    %3004 = vmatprep.subr.mxu0 0.0
    %3005 = vmatpush2.msra.mxu0 0.0
    %3006 = vmatprep.subr.mxu0 0.0
    %3007 = vmatpush2.msra.mxu0 0.0
    %3008 = vmatprep.subr.mxu0 0.0
    %3009 = vmatpush2.msra.mxu0 0.0
    %3010 = vmatprep.subr.mxu0 0.0
    %3011 = vmatpush2.msra.mxu0 0.0
    %3012 = vmatprep.subr.mxu0 0.0
    %3013 = vmatpush2.msra.mxu0 0.0
    %3014 = vmatprep.subr.mxu0 0.0
    %3015 = vmatpush2.msra.mxu0 0.0
    %3016 = vmatprep.subr.mxu0 0.0
    %3017 = vmatpush2.msra.mxu0 0.0
    %3018 = vmatprep.subr.mxu0 0.0
    %3019 = vmatpush2.msra.mxu0 0.0
    %3020 = vmatprep.subr.mxu0 0.0
    %3021 = vmatpush2.msra.mxu0 0.0
    %3022 = vmatprep.subr.mxu0 0.0
    %3023 = vmatpush2.msra.mxu0 0.0
    %3024 = vmatprep.subr.mxu0 0.0
    %3025 = vmatpush2.msra.mxu0 0.0
    %3026 = vmatprep.subr.mxu0 0.0
    %3027 = vmatpush2.msra.mxu0 0.0
    %3028 = vmatprep.subr.mxu0 0.0
    %3029 = vmatpush2.msra.mxu0 0.0
    %3030 = vmatprep.subr.mxu0 0.0
    %3031 = vmatpush2.msra.mxu0 0.0
    %3032 = vmatprep.mubr.f32.mxu0 0.0
    %3033 = vmatmul.mubr.f32.gmra.mxu0 %v2966
    %v3034 = vpop.f32.mrf.mxu0
    %v3035 = vadd.f32 0.0, %v3034
    %v3036 = vpop.f32.mrf.mxu0
    %3037 = vdwg.mxu0
    %3038 = vmatprep.subr.mxu0 0.0
    %3039 = vmatpush1.msra.mxu0 0.0
    %3040 = vmatprep.subr.mxu0 0.0
    %3041 = vmatpush1.msra.mxu0 0.0
    %3042 = vmatprep.subr.mxu0 0.0
    %3043 = vmatpush1.msra.mxu0 0.0
    %3044 = vmatprep.subr.mxu0 0.0
    %3045 = vmatpush1.msra.mxu0 0.0
    %3046 = vmatprep.subr.mxu0 0.0
    %3047 = vmatpush1.msra.mxu0 %v278
    %3048 = vmatprep.subr.mxu0 0.0
    %3049 = vmatpush1.msra.mxu0 %v277
    %3050 = vmatprep.subr.mxu0 0.0
    %3051 = vmatpush1.msra.mxu0 %v276
    %3052 = vmatprep.subr.mxu0 0.0
    %3053 = vmatpush1.msra.mxu0 %v275
    %3054 = vmatprep.subr.mxu0 0.0
    %3055 = vmatpush1.msra.mxu0 %v274
    %3056 = vmatprep.subr.mxu0 0.0
    %3057 = vmatpush1.msra.mxu0 %v273
    %3058 = vmatprep.subr.mxu0 0.0
    %3059 = vmatpush1.msra.mxu0 %v272
    %3060 = vmatprep.subr.mxu0 0.0
    %3061 = vmatpush1.msra.mxu0 %v271
    %3062 = vmatprep.subr.mxu0 0.0
    %3063 = vmatpush1.msra.mxu0 %v270
    %3064 = vmatprep.subr.mxu0 0.0
    %3065 = vmatpush1.msra.mxu0 %v269
    %3066 = vmatprep.subr.mxu0 0.0
    %3067 = vmatpush1.msra.mxu0 %v268
    %3068 = vmatprep.subr.mxu0 0.0
    %3069 = vmatpush1.msra.mxu0 %v267
    %3070 = vmatprep.subr.mxu0 0.0
    %3071 = vmatpush2.msra.mxu0 0.0
    %3072 = vmatprep.subr.mxu0 0.0
    %3073 = vmatpush2.msra.mxu0 0.0
    %3074 = vmatprep.subr.mxu0 0.0
    %3075 = vmatpush2.msra.mxu0 0.0
    %3076 = vmatprep.subr.mxu0 0.0
    %3077 = vmatpush2.msra.mxu0 0.0
    %3078 = vmatprep.subr.mxu0 0.0
    %3079 = vmatpush2.msra.mxu0 0.0
    %3080 = vmatprep.subr.mxu0 0.0
    %3081 = vmatpush2.msra.mxu0 0.0
    %3082 = vmatprep.subr.mxu0 0.0
    %3083 = vmatpush2.msra.mxu0 0.0
    %3084 = vmatprep.subr.mxu0 0.0
    %3085 = vmatpush2.msra.mxu0 0.0
    %3086 = vmatprep.subr.mxu0 0.0
    %3087 = vmatpush2.msra.mxu0 0.0
    %3088 = vmatprep.subr.mxu0 0.0
    %3089 = vmatpush2.msra.mxu0 0.0
    %3090 = vmatprep.subr.mxu0 0.0
    %3091 = vmatpush2.msra.mxu0 0.0
    %3092 = vmatprep.subr.mxu0 0.0
    %3093 = vmatpush2.msra.mxu0 0.0
    %3094 = vmatprep.subr.mxu0 0.0
    %3095 = vmatpush2.msra.mxu0 0.0
    %3096 = vmatprep.subr.mxu0 0.0
    %3097 = vmatpush2.msra.mxu0 0.0
    %3098 = vmatprep.subr.mxu0 0.0
    %3099 = vmatpush2.msra.mxu0 0.0
    %3100 = vmatprep.subr.mxu0 0.0
    %3101 = vmatpush2.msra.mxu0 0.0
    %3102 = vmatprep.mubr.f32.mxu0 0.0
    %3103 = vmatmul.mubr.f32.gmra.mxu0 %v2966
    %v3104 = vpop.f32.mrf.mxu0
    %v3105 = vadd.f32 0.0, %v3104
    %v3106 = vpop.f32.mrf.mxu0
    %3107 = vdwg.mxu0
    %v3108 = vmax.f32 %v3035, %v3105
    %v3110 = vrot.slane %v3108, 1
    %3111 = vrot.lane.b32.xlu0 %v3110, 48
    %v3112 = vpop.permute.xlu0 %3111
    %v3114 = vrot.slane %v3108, 2
    %3115 = vrot.lane.b32.xlu0 %v3114, 96
    %v3116 = vpop.permute.xlu0 %3115
    %v3118 = vrot.slane %v3108, 3
    %3119 = vrot.lane.b32.xlu0 %v3118, 16
    %v3120 = vpop.permute.xlu0 %3119
    %v3122 = vsel %vm1731, %v3108, %v3112
    %v3123 = vsel %vm1573, %v3122, %v3116
    %v3124 = vsel %vm948, %v3116, %v3120
    %v3127 = vrot.slane %v3123, 7
    %v3128 = vrot.slane %v3124, 7
    %vm3131 = vcmask 1040384
    %v3132 = vsel %vm3131, %v1733, %v3127
    %v3133 = vsel %vm3131, %v1734, %v3128
    %v3134 = vld [vmem:[%s11] sm:$0xff]
    %v3135 = vld [vmem:[%s11 + $0x8] sm:$0xff]
    %v3136 = vld [vmem:[%s11 + $0x10] sm:$0xff]
    %v3137 = vld [vmem:[%s11 + $0x18] sm:$0xff]
    %v3138 = vld [vmem:[%s11 + $0x20] sm:$0xff]
    %v3139 = vld [vmem:[%s11 + $0x28] sm:$0xff]
    %v3140 = vld [vmem:[%s11 + $0x30] sm:$0xff]
    %v3141 = vld [vmem:[%s11 + $0x38] sm:$0xff]
    %v3142 = vld [vmem:[%s11 + $0x40] sm:$0xff]
    %v3143 = vld [vmem:[%s11 + $0x48] sm:$0xff]
    %v3144 = vld [vmem:[%s11 + $0x50] sm:$0xff]
    %v3145 = vld [vmem:[%s11 + $0x58] sm:$0xff]
    %v3146 = vld [vmem:[%s11 + $0x60] sm:$0xff]
    %v3147 = vld [vmem:[%s11 + $0x68] sm:$0xff]
    %v3148 = vld [vmem:[%s11 + $0x70] sm:$0xff]
    %v3149 = vld [vmem:[%s11 + $0x78] sm:$0xff]
    %v3150 = vld [vmem:[%s11 + $0x80] sm:$0xff]
    %v3151 = vld [vmem:[%s11 + $0x88] sm:$0xff]
    %v3152 = vld [vmem:[%s11 + $0x90] sm:$0xff]
    %v3153 = vld [vmem:[%s11 + $0x98] sm:$0xff]
    %v3154 = vld [vmem:[%s11 + $0xa0] sm:$0xff]
    %v3155 = vld [vmem:[%s11 + $0xa8] sm:$0xff]
    %v3156 = vld [vmem:[%s11 + $0xb0] sm:$0xff]
    %v3157 = vld [vmem:[%s11 + $0xb8] sm:$0xff]
    %v3158 = vld [vmem:[%s12] sm:$0x1]
    %v3160 = vlaneseq
    %v3161 = vshrl.u32 %v3160, 7
    %v3162 = vsub.s32 0, %v3161
    %v3163 = vrot.slane %v3158, %v3162
    %vm3165 = vcmask 523264
    %v3167 = vsel %vm3165, %v3133, 0
    %3169 = vmatprep.subr.mxu0 0.0
    %3170 = vmatpush1.msra.mxu0 %v3149
    %3171 = vmatprep.subr.mxu0 0.0
    %3172 = vmatpush1.msra.mxu0 %v3148
    %3173 = vmatprep.subr.mxu0 0.0
    %3174 = vmatpush1.msra.mxu0 %v3147
    %3175 = vmatprep.subr.mxu0 0.0
    %3176 = vmatpush1.msra.mxu0 %v3146
    %3177 = vmatprep.subr.mxu0 0.0
    %3178 = vmatpush1.msra.mxu0 %v3145
    %3179 = vmatprep.subr.mxu0 0.0
    %3180 = vmatpush1.msra.mxu0 %v3144
    %3181 = vmatprep.subr.mxu0 0.0
    %3182 = vmatpush1.msra.mxu0 %v3143
    %3183 = vmatprep.subr.mxu0 0.0
    %3184 = vmatpush1.msra.mxu0 %v3142
    %3185 = vmatprep.subr.mxu0 0.0
    %3186 = vmatpush1.msra.mxu0 %v3141
    %3187 = vmatprep.subr.mxu0 0.0
    %3188 = vmatpush1.msra.mxu0 %v3140
    %3189 = vmatprep.subr.mxu0 0.0
    %3190 = vmatpush1.msra.mxu0 %v3139
    %3191 = vmatprep.subr.mxu0 0.0
    %3192 = vmatpush1.msra.mxu0 %v3138
    %3193 = vmatprep.subr.mxu0 0.0
    %3194 = vmatpush1.msra.mxu0 %v3137
    %3195 = vmatprep.subr.mxu0 0.0
    %3196 = vmatpush1.msra.mxu0 %v3136
    %3197 = vmatprep.subr.mxu0 0.0
    %3198 = vmatpush1.msra.mxu0 %v3135
    %3199 = vmatprep.subr.mxu0 0.0
    %3200 = vmatpush1.msra.mxu0 %v3134
    %3201 = vmatprep.subr.mxu0 0.0
    %3202 = vmatpush2.msra.mxu0 0.0
    %3203 = vmatprep.subr.mxu0 0.0
    %3204 = vmatpush2.msra.mxu0 0.0
    %3205 = vmatprep.subr.mxu0 0.0
    %3206 = vmatpush2.msra.mxu0 0.0
    %3207 = vmatprep.subr.mxu0 0.0
    %3208 = vmatpush2.msra.mxu0 0.0
    %3209 = vmatprep.subr.mxu0 0.0
    %3210 = vmatpush2.msra.mxu0 0.0
    %3211 = vmatprep.subr.mxu0 0.0
    %3212 = vmatpush2.msra.mxu0 0.0
    %3213 = vmatprep.subr.mxu0 0.0
    %3214 = vmatpush2.msra.mxu0 0.0
    %3215 = vmatprep.subr.mxu0 0.0
    %3216 = vmatpush2.msra.mxu0 0.0
    %3217 = vmatprep.subr.mxu0 0.0
    %3218 = vmatpush2.msra.mxu0 %v3157
    %3219 = vmatprep.subr.mxu0 0.0
    %3220 = vmatpush2.msra.mxu0 %v3156
    %3221 = vmatprep.subr.mxu0 0.0
    %3222 = vmatpush2.msra.mxu0 %v3155
    %3223 = vmatprep.subr.mxu0 0.0
    %3224 = vmatpush2.msra.mxu0 %v3154
    %3225 = vmatprep.subr.mxu0 0.0
    %3226 = vmatpush2.msra.mxu0 %v3153
    %3227 = vmatprep.subr.mxu0 0.0
    %3228 = vmatpush2.msra.mxu0 %v3152
    %3229 = vmatprep.subr.mxu0 0.0
    %3230 = vmatpush2.msra.mxu0 %v3151
    %3231 = vmatprep.subr.mxu0 0.0
    %3232 = vmatpush2.msra.mxu0 %v3150
    %3233 = vmatprep.mubr.f32.mxu0 %v3167
    %3234 = vmatmul.mubr.f32.gmra.mxu0 %v3132
    %v3235 = vpop.f32.mrf.mxu0
    %v3236 = vadd.f32 %v3163, %v3235
    %v3237 = vpop.f32.mrf.mxu0
    %3238 = vdwg.mxu0
    %v3239 = vmax.f32 %v3236, 0.0
    %v3240 = vld [vmem:[#allocation10] sm:$0xff]
    %v3241 = vld [vmem:[#allocation10 + $0x8] sm:$0xff]
    %v3242 = vld [vmem:[#allocation10 + $0x10] sm:$0xff]
    %v3243 = vld [vmem:[#allocation10 + $0x18] sm:$0xff]
    %v3244 = vld [vmem:[#allocation10 + $0x20] sm:$0xff]
    %v3245 = vld [vmem:[#allocation10 + $0x28] sm:$0xff]
    %v3246 = vld [vmem:[#allocation10 + $0x30] sm:$0x3]
    %v3247 = vld [vmem:[%s14] sm:$0x1]
    %v3249 = vlaneseq
    %v3250 = vshrl.u32 %v3249, 7
    %v3251 = vsub.s32 0, %v3250
    %v3252 = vrot.slane %v3247, %v3251
    %vm3254 = vcmask 408576
    %v3256 = vsel %vm3254, %v3239, 0
    %vm3258 = vcmask 1041408
    %v3260 = vsel %vm3258, %v3246, 0
    %3262 = vmatprep.subr.mxu0 0.0
    %3263 = vmatpush1.msra.mxu0 0.0
    %3264 = vmatprep.subr.mxu0 0.0
    %3265 = vmatpush1.msra.mxu0 0.0
    %3266 = vmatprep.subr.mxu0 0.0
    %3267 = vmatpush1.msra.mxu0 0.0
    %3268 = vmatprep.subr.mxu0 0.0
    %3269 = vmatpush1.msra.mxu0 0.0
    %3270 = vmatprep.subr.mxu0 0.0
    %3271 = vmatpush1.msra.mxu0 0.0
    %3272 = vmatprep.subr.mxu0 0.0
    %3273 = vmatpush1.msra.mxu0 0.0
    %3274 = vmatprep.subr.mxu0 0.0
    %3275 = vmatpush1.msra.mxu0 0.0
    %3276 = vmatprep.subr.mxu0 0.0
    %3277 = vmatpush1.msra.mxu0 0.0
    %3278 = vmatprep.subr.mxu0 0.0
    %3279 = vmatpush1.msra.mxu0 0.0
    %3280 = vmatprep.subr.mxu0 0.0
    %3281 = vmatpush1.msra.mxu0 %v3260
    %3282 = vmatprep.subr.mxu0 0.0
    %3283 = vmatpush1.msra.mxu0 %v3245
    %3284 = vmatprep.subr.mxu0 0.0
    %3285 = vmatpush1.msra.mxu0 %v3244
    %3286 = vmatprep.subr.mxu0 0.0
    %3287 = vmatpush1.msra.mxu0 %v3243
    %3288 = vmatprep.subr.mxu0 0.0
    %3289 = vmatpush1.msra.mxu0 %v3242
    %3290 = vmatprep.subr.mxu0 0.0
    %3291 = vmatpush1.msra.mxu0 %v3241
    %3292 = vmatprep.subr.mxu0 0.0
    %3293 = vmatpush1.msra.mxu0 %v3240
    %3294 = vmatprep.subr.mxu0 0.0
    %3295 = vmatpush2.msra.mxu0 0.0
    %3296 = vmatprep.subr.mxu0 0.0
    %3297 = vmatpush2.msra.mxu0 0.0
    %3298 = vmatprep.subr.mxu0 0.0
    %3299 = vmatpush2.msra.mxu0 0.0
    %3300 = vmatprep.subr.mxu0 0.0
    %3301 = vmatpush2.msra.mxu0 0.0
    %3302 = vmatprep.subr.mxu0 0.0
    %3303 = vmatpush2.msra.mxu0 0.0
    %3304 = vmatprep.subr.mxu0 0.0
    %3305 = vmatpush2.msra.mxu0 0.0
    %3306 = vmatprep.subr.mxu0 0.0
    %3307 = vmatpush2.msra.mxu0 0.0
    %3308 = vmatprep.subr.mxu0 0.0
    %3309 = vmatpush2.msra.mxu0 0.0
    %3310 = vmatprep.subr.mxu0 0.0
    %3311 = vmatpush2.msra.mxu0 0.0
    %3312 = vmatprep.subr.mxu0 0.0
    %3313 = vmatpush2.msra.mxu0 0.0
    %3314 = vmatprep.subr.mxu0 0.0
    %3315 = vmatpush2.msra.mxu0 0.0
    %3316 = vmatprep.subr.mxu0 0.0
    %3317 = vmatpush2.msra.mxu0 0.0
    %3318 = vmatprep.subr.mxu0 0.0
    %3319 = vmatpush2.msra.mxu0 0.0
    %3320 = vmatprep.subr.mxu0 0.0
    %3321 = vmatpush2.msra.mxu0 0.0
    %3322 = vmatprep.subr.mxu0 0.0
    %3323 = vmatpush2.msra.mxu0 0.0
    %3324 = vmatprep.subr.mxu0 0.0
    %3325 = vmatpush2.msra.mxu0 0.0
    %3326 = vmatprep.mubr.f32.mxu0 0.0
    %3327 = vmatmul.mubr.f32.gmra.mxu0 %v3256
    %v3328 = vpop.f32.mrf.mxu0
    %v3329 = vadd.f32 %v3252, %v3328
    %v3330 = vpop.f32.mrf.mxu0
    %3331 = vdwg.mxu0
    %v3332 = vmax.f32 %v3329, 0.0
    %v3333 = vld [vmem:[%s15] sm:$0xff]
    %v3334 = vld [vmem:[%s15 + $0x8] sm:$0xff]
    %v3335 = vld [vmem:[%s15 + $0x10] sm:$0xff]
    %v3336 = vld [vmem:[%s15 + $0x18] sm:$0xff]
    %v3337 = vld [vmem:[%s15 + $0x20] sm:$0xff]
    %v3338 = vld [vmem:[%s15 + $0x28] sm:$0xff]
    %v3339 = vld [vmem:[%s15 + $0x30] sm:$0xff]
    %v3340 = vld [vmem:[%s15 + $0x38] sm:$0xff]
    %v3341 = vld [vmem:[%s15 + $0x40] sm:$0xff]
    %v3342 = vld [vmem:[%s15 + $0x48] sm:$0xff]
    %v3343 = vld [vmem:[%s15 + $0x50] sm:$0xff]
    %v3344 = vld [vmem:[%s15 + $0x58] sm:$0xff]
    %v3345 = vld [vmem:[%s15 + $0x60] sm:$0xf]
    %v3346 = vld [vmem:[%s16] sm:$0x1]
    %v3348 = vlaneseq
    %v3349 = vshrl.u32 %v3348, 7
    %v3350 = vsub.s32 0, %v3349
    %v3351 = vrot.slane %v3346, %v3350
    %vm3353 = vcmask 818176
    %v3355 = vsel %vm3353, %v3332, 0
    %v3358 = vsel %vm302, %v3345, 0
    %3360 = vmatprep.subr.mxu0 0.0
    %3361 = vmatpush1.msra.mxu0 0.0
    %3362 = vmatprep.subr.mxu0 0.0
    %3363 = vmatpush1.msra.mxu0 0.0
    %3364 = vmatprep.subr.mxu0 0.0
    %3365 = vmatpush1.msra.mxu0 0.0
    %3366 = vmatprep.subr.mxu0 0.0
    %3367 = vmatpush1.msra.mxu0 %v3358
    %3368 = vmatprep.subr.mxu0 0.0
    %3369 = vmatpush1.msra.mxu0 %v3344
    %3370 = vmatprep.subr.mxu0 0.0
    %3371 = vmatpush1.msra.mxu0 %v3343
    %3372 = vmatprep.subr.mxu0 0.0
    %3373 = vmatpush1.msra.mxu0 %v3342
    %3374 = vmatprep.subr.mxu0 0.0
    %3375 = vmatpush1.msra.mxu0 %v3341
    %3376 = vmatprep.subr.mxu0 0.0
    %3377 = vmatpush1.msra.mxu0 %v3340
    %3378 = vmatprep.subr.mxu0 0.0
    %3379 = vmatpush1.msra.mxu0 %v3339
    %3380 = vmatprep.subr.mxu0 0.0
    %3381 = vmatpush1.msra.mxu0 %v3338
    %3382 = vmatprep.subr.mxu0 0.0
    %3383 = vmatpush1.msra.mxu0 %v3337
    %3384 = vmatprep.subr.mxu0 0.0
    %3385 = vmatpush1.msra.mxu0 %v3336
    %3386 = vmatprep.subr.mxu0 0.0
    %3387 = vmatpush1.msra.mxu0 %v3335
    %3388 = vmatprep.subr.mxu0 0.0
    %3389 = vmatpush1.msra.mxu0 %v3334
    %3390 = vmatprep.subr.mxu0 0.0
    %3391 = vmatpush1.msra.mxu0 %v3333
    %3392 = vmatprep.subr.mxu0 0.0
    %3393 = vmatpush2.msra.mxu0 0.0
    %3394 = vmatprep.subr.mxu0 0.0
    %3395 = vmatpush2.msra.mxu0 0.0
    %3396 = vmatprep.subr.mxu0 0.0
    %3397 = vmatpush2.msra.mxu0 0.0
    %3398 = vmatprep.subr.mxu0 0.0
    %3399 = vmatpush2.msra.mxu0 0.0
    %3400 = vmatprep.subr.mxu0 0.0
    %3401 = vmatpush2.msra.mxu0 0.0
    %3402 = vmatprep.subr.mxu0 0.0
    %3403 = vmatpush2.msra.mxu0 0.0
    %3404 = vmatprep.subr.mxu0 0.0
    %3405 = vmatpush2.msra.mxu0 0.0
    %3406 = vmatprep.subr.mxu0 0.0
    %3407 = vmatpush2.msra.mxu0 0.0
    %3408 = vmatprep.subr.mxu0 0.0
    %3409 = vmatpush2.msra.mxu0 0.0
    %3410 = vmatprep.subr.mxu0 0.0
    %3411 = vmatpush2.msra.mxu0 0.0
    %3412 = vmatprep.subr.mxu0 0.0
    %3413 = vmatpush2.msra.mxu0 0.0
    %3414 = vmatprep.subr.mxu0 0.0
    %3415 = vmatpush2.msra.mxu0 0.0
    %3416 = vmatprep.subr.mxu0 0.0
    %3417 = vmatpush2.msra.mxu0 0.0
    %3418 = vmatprep.subr.mxu0 0.0
    %3419 = vmatpush2.msra.mxu0 0.0
    %3420 = vmatprep.subr.mxu0 0.0
    %3421 = vmatpush2.msra.mxu0 0.0
    %3422 = vmatprep.subr.mxu0 0.0
    %3423 = vmatpush2.msra.mxu0 0.0
    %3424 = vmatprep.mubr.f32.mxu0 0.0
    %3425 = vmatmul.mubr.f32.gmra.mxu0 %v3355
    %v3426 = vpop.f32.mrf.mxu0
    %v3427 = vadd.f32 %v3351, %v3426
    %v3428 = vpop.f32.mrf.mxu0
    %3429 = vdwg.mxu0
    %vm3430 = vcmask 74752
    %3431 = vst.msk [vmem:[#allocation11] sm:$0x3] %vm3430, %v3427
    // Predicated region
    $region90: #{model_d_forward.1} parent=1 // pred_check
      _
    $region91: #{model_d_forward.1} parent=1 // pred_check_branch
      %3433 = sbr.rel (0) target = $region93
    $region92: #{model_d_forward.1} parent=1 // pred_region
      %s3435 = ssub.s32 32, 32
      %3436 = vsyncadd [#allocation4], %s3435
      %s3438 = sshll.u32 [#allocation11], 4
      %s3439 = int_to_ptr.vmem [resolvable:$true] %s3438
      %3441 = dma.vmem_to_hbm [thread:$0]  %s3439, 32, %s17, [#allocation4]
    $region93: #{model_d_forward.1} parent=1 // pred_fallthru
      _
    // Predicated region
    $region94: #{model_d_forward.1} parent=1 // pred_check
      _
    $region95: #{model_d_forward.1} parent=1 // pred_check_branch
      %3443 = sbr.rel (0) target = $region97
    $region96: #{model_d_forward.1} parent=1 // pred_region
      %3444 = dma.done [#allocation4], 32
    $region97: #{model_d_forward.1} parent=1 // pred_fallthru
      _
    %3445 = vsyncpa [#allocation3], 1
    %3446 = vsyncpa [#allocation6], 1
    %3447 = vsyncpa [#allocation9], 1
    %3448 = vsyncpa [#allocation4], 1

</llo_original>
